<compile_context>
chip_gen: v7x
topology: tpu7x:2x2x1
jax: 0.10.0
libtpu: 0.0.40
codegen_flags: <defaults>
</compile_context>

<pallas_src>
import jax
import jax.numpy as jnp
from jax import lax
from jax.experimental import pallas as pl
from jax.experimental.pallas import tpu as pltpu


def _sigmoid(v):
    return 1.0 / (1.0 + jnp.exp(-v))


# ----------------------------------------------------------------------------
# Pallas kernel: fused LSTM -> temporal mean -> Linear for ONE batch element.
# ----------------------------------------------------------------------------
def _audio_lstm_kernel(x_ref, wih_ref, whh_ref, b_ref, wfc_ref, bfc_ref,
                       out_ref, xg_ref):
    _, T, _ = x_ref.shape
    H = whh_ref.shape[0]

    x = x_ref[0]                                       # (T, C_in)

    # Input projection for all timesteps in one GEMM; combined bias added once.
    xg_ref[...] = (jnp.dot(x, wih_ref[...], preferred_element_type=jnp.float32)
                   + b_ref[...])                       # (T, 4H)

    def step(t, carry):
        h, c, hsum = carry                             # each (1, H)
        g = xg_ref[pl.ds(t, 1), :] + jnp.dot(
            h, whh_ref[...], preferred_element_type=jnp.float32)  # (1, 4H)
        # PyTorch gate order: input, forget, cell, output.
        i = _sigmoid(g[:, 0 * H:1 * H])
        f = _sigmoid(g[:, 1 * H:2 * H])
        gg = jnp.tanh(g[:, 2 * H:3 * H])
        o = _sigmoid(g[:, 3 * H:4 * H])
        c_new = f * c + i * gg
        h_new = o * jnp.tanh(c_new)
        return h_new, c_new, hsum + h_new

    zeros = jnp.zeros((1, H), jnp.float32)
    _, _, hsum = lax.fori_loop(0, T, step, (zeros, zeros, zeros), unroll=True)

    h_mean = hsum * (1.0 / T)                          # mean over time; Dropout = id
    logits = (jnp.dot(h_mean, wfc_ref[...], preferred_element_type=jnp.float32)
              + bfc_ref[...])                          # (1, num_classes)
    out_ref[...] = logits.reshape(out_ref.shape).astype(out_ref.dtype)


# ----------------------------------------------------------------------------
# Wrapper
# ----------------------------------------------------------------------------
def audio_lstm_forward(x, p):
    """x: (N, T, C_in) float32 -> logits (N, num_classes) float32."""
    N, T, C = x.shape
    H = p["whh"].shape[0]
    H4 = 4 * H
    NC = p["wfc"].shape[1]

    def const(shape):
        nd = len(shape)
        return pl.BlockSpec(shape, lambda n, _nd=nd: (0,) * _nd)

    in_specs = [
        pl.BlockSpec((1, T, C), lambda n: (n, 0, 0)),  # audio
        const((C, H4)),                                # W_ih (pre-transposed)
        const((H, H4)),                                # W_hh (pre-transposed)
        const((1, H4)),                                # b_ih + b_hh (folded)
        const((H, NC)),                                # fc weight (pre-transposed)
        const((1, NC)),                                # fc bias
    ]
    out_spec = pl.BlockSpec((1, 1, NC), lambda n: (n, 0, 0))

    out = pl.pallas_call(
        _audio_lstm_kernel,
        out_shape=jax.ShapeDtypeStruct((N, 1, NC), jnp.float32),
        grid_spec=pltpu.PrefetchScalarGridSpec(
            num_scalar_prefetch=0, grid=(N,),
            in_specs=in_specs, out_specs=out_spec,
            scratch_shapes=[pltpu.VMEM((T, H4), jnp.float32)]),
        compiler_params=pltpu.CompilerParams(dimension_semantics=("parallel",)),
    )(x, p["wih"], p["whh"], p["b"], p["wfc"], p["bfc"])
    return out.reshape(N, NC)


# ----------------------------------------------------------------------------
# Deterministic parameter construction (PyTorch-style layout, pre-transposed)
# ----------------------------------------------------------------------------
def make_params(key, c_in, h, num_classes):
    ks = jax.random.split(key, 6)
    s = 1.0 / float(h) ** 0.5
    wih = jax.random.uniform(ks[0], (c_in, 4 * h), jnp.float32, -s, s)
    whh = jax.random.uniform(ks[1], (h, 4 * h), jnp.float32, -s, s)
    b_ih = jax.random.uniform(ks[2], (4 * h,), jnp.float32, -s, s)
    b_hh = jax.random.uniform(ks[3], (4 * h,), jnp.float32, -s, s)
    wfc = jax.random.uniform(ks[4], (h, num_classes), jnp.float32, -s, s)
    bfc = jax.random.uniform(ks[5], (1, num_classes), jnp.float32, -s, s)
    return dict(wih=wih, whh=whh, b=(b_ih + b_hh).reshape(1, 4 * h),
                wfc=wfc, bfc=bfc)


# ----------------------------------------------------------------------------
# Pure-JAX reference (same math) for a correctness check
# ----------------------------------------------------------------------------
def _audio_lstm_ref(x, p):
    N, T, _ = x.shape
    H = p["whh"].shape[0]

    def step(carry, xt):
        h, c = carry
        g = xt @ p["wih"] + h @ p["whh"] + p["b"]
        i = jax.nn.sigmoid(g[:, 0 * H:1 * H])
        f = jax.nn.sigmoid(g[:, 1 * H:2 * H])
        gg = jnp.tanh(g[:, 2 * H:3 * H])
        o = jax.nn.sigmoid(g[:, 3 * H:4 * H])
        c = f * c + i * gg
        h = o * jnp.tanh(c)
        return (h, c), h

    x_tnc = jnp.transpose(x, (1, 0, 2))                # (T, N, C)
    init = (jnp.zeros((N, H), jnp.float32), jnp.zeros((N, H), jnp.float32))
    _, hs = lax.scan(step, init, x_tnc)                # (T, N, H)
    h_mean = jnp.mean(hs, axis=0)                      # (N, H)
    return h_mean @ p["wfc"] + p["bfc"]


# ----------------------------------------------------------------------------
if __name__ == "__main__":
    key = jax.random.PRNGKey(0)
    kx, kp = jax.random.split(key)

    # Small shapes consistent with the module: batch=2, seq_len=16,
    # audio_input_size=23, lstm_hidden_size=64, num_classes=2.
    N, T, C_IN, H, NUM_CLASSES = 2, 16, 23, 64, 2

    audio = jax.random.normal(kx, (N, T, C_IN), jnp.float32)
    params = make_params(kp, C_IN, H, NUM_CLASSES)

    out = jax.block_until_ready(audio_lstm_forward(audio, params))
    assert out.shape == (N, NUM_CLASSES)

    ref = jax.block_until_ready(_audio_lstm_ref(audio, params))
    rel_err = float(jnp.max(jnp.abs(out - ref)) / (jnp.max(jnp.abs(ref)) + 1e-6))
    assert rel_err < 1e-3, f"mismatch vs reference, rel_err={rel_err}"

    print("KERNEL_OK")
</pallas_src>

<mosaic_0001>
module attributes {stable_mosaic.version = 11 : i64} {
  func.func @_audio_lstm_kernel(%arg0: i32, %arg1: memref<1x16x23xf32, #tpu.memory_space<vmem>>, %arg2: memref<23x256xf32, #tpu.memory_space<vmem>>, %arg3: memref<64x256xf32, #tpu.memory_space<vmem>>, %arg4: memref<1x256xf32, #tpu.memory_space<vmem>>, %arg5: memref<64x2xf32, #tpu.memory_space<vmem>>, %arg6: memref<1x2xf32, #tpu.memory_space<vmem>>, %arg7: memref<1x1x2xf32, #tpu.memory_space<vmem>>, %arg8: memref<16x256xf32, #tpu.memory_space<vmem>>) attributes {dimension_semantics = [#tpu.dimension_semantics<parallel>], iteration_bounds = array<i64: 2>, scalar_prefetch = 0 : i64, scratch_operands = 1 : i64, tpu.core_type = #tpu.core_type<tc>, window_params = [{transform_indices = @transform_0, window_bounds = array<i64: 1, 16, 23>}, {pipeline_mode = #tpu.pipeline_mode<synchronous>, transform_indices = @transform_1, window_bounds = array<i64: 23, 256>}, {pipeline_mode = #tpu.pipeline_mode<synchronous>, transform_indices = @transform_2, window_bounds = array<i64: 64, 256>}, {pipeline_mode = #tpu.pipeline_mode<synchronous>, transform_indices = @transform_3, window_bounds = array<i64: 1, 256>}, {pipeline_mode = #tpu.pipeline_mode<synchronous>, transform_indices = @transform_4, window_bounds = array<i64: 64, 2>}, {pipeline_mode = #tpu.pipeline_mode<synchronous>, transform_indices = @transform_5, window_bounds = array<i64: 1, 2>}, {transform_indices = @transform_6, window_bounds = array<i64: 1, 1, 2>}]} {
    %c0 = arith.constant 0 : index
    %c0_0 = arith.constant 0 : index
    %c0_1 = arith.constant 0 : index
    %0 = vector.load %arg1[%c0, %c0_0, %c0_1] : memref<1x16x23xf32, #tpu.memory_space<vmem>>, vector<1x16x23xf32>
    %1 = vector.shape_cast %0 : vector<1x16x23xf32> to vector<16x23xf32>
    %c0_2 = arith.constant 0 : index
    %c0_3 = arith.constant 0 : index
    %2 = vector.load %arg2[%c0_2, %c0_3] : memref<23x256xf32, #tpu.memory_space<vmem>>, vector<23x256xf32>
    %cst = arith.constant dense<0.000000e+00> : vector<16x256xf32>
    %3 = tpu.matmul %1, %2, %cst {dimension_numbers = #tpu.dot_dimension_numbers<[1], [0], [0], [1], [0, 0, 1, 1], [], []>} : vector<16x23xf32>, vector<23x256xf32>, vector<16x256xf32> -> vector<16x256xf32>
    %c0_4 = arith.constant 0 : index
    %c0_5 = arith.constant 0 : index
    %4 = vector.load %arg4[%c0_4, %c0_5] : memref<1x256xf32, #tpu.memory_space<vmem>>, vector<1x256xf32>
    %5 = vector.broadcast %4 : vector<1x256xf32> to vector<16x256xf32>
    %6 = arith.addf %3, %5 : vector<16x256xf32>
    %c0_6 = arith.constant 0 : index
    %c0_7 = arith.constant 0 : index
    %7 = vector.load %arg8[%c0_6, %c0_7] : memref<16x256xf32, #tpu.memory_space<vmem>>, vector<16x256xf32>
    tpu.vector_store %arg8[%c0_6, %c0_7], %6 {strides = array<i32>} : memref<16x256xf32, #tpu.memory_space<vmem>>, vector<16x256xf32>,
    %cst_8 = arith.constant 0.000000e+00 : f32
    %8 = vector.broadcast %cst_8 : f32 to vector<1x64xf32>
    %c0_i32 = arith.constant 0 : i32
    %9 = arith.index_cast %c0_i32 : i32 to index
    %c0_9 = arith.constant 0 : index
    %10 = vector.load %arg8[%9, %c0_9] : memref<16x256xf32, #tpu.memory_space<vmem>>, vector<1x256xf32>
    %c0_10 = arith.constant 0 : index
    %c0_11 = arith.constant 0 : index
    %11 = vector.load %arg3[%c0_10, %c0_11] : memref<64x256xf32, #tpu.memory_space<vmem>>, vector<64x256xf32>
    %cst_12 = arith.constant dense<0.000000e+00> : vector<1x256xf32>
    %12 = tpu.matmul %8, %11, %cst_12 {dimension_numbers = #tpu.dot_dimension_numbers<[1], [0], [0], [1], [0, 0, 1, 1], [], []>} : vector<1x64xf32>, vector<64x256xf32>, vector<1x256xf32> -> vector<1x256xf32>
    %13 = arith.addf %10, %12 : vector<1x256xf32>
    %14 = vector.extract_strided_slice %13 {offsets = [0, 0], sizes = [1, 64], strides = [1, 1]} : vector<1x256xf32> to vector<1x64xf32>
    %cst_13 = arith.constant 0.000000e+00 : f32
    %15 = vector.broadcast %cst_13 : f32 to vector<1x64xf32>
    %16 = arith.subf %15, %14 : vector<1x64xf32>
    %17 = math.exp %16 : vector<1x64xf32>
    %cst_14 = arith.constant 1.000000e+00 : f32
    %18 = vector.broadcast %cst_14 : f32 to vector<1x64xf32>
    %19 = arith.addf %18, %17 : vector<1x64xf32>
    %cst_15 = arith.constant 1.000000e+00 : f32
    %20 = vector.broadcast %cst_15 : f32 to vector<1x64xf32>
    %21 = arith.divf %20, %19 : vector<1x64xf32>
    %22 = vector.extract_strided_slice %13 {offsets = [0, 64], sizes = [1, 64], strides = [1, 1]} : vector<1x256xf32> to vector<1x64xf32>
    %cst_16 = arith.constant 0.000000e+00 : f32
    %23 = vector.broadcast %cst_16 : f32 to vector<1x64xf32>
    %24 = arith.subf %23, %22 : vector<1x64xf32>
    %25 = math.exp %24 : vector<1x64xf32>
    %cst_17 = arith.constant 1.000000e+00 : f32
    %26 = vector.broadcast %cst_17 : f32 to vector<1x64xf32>
    %27 = arith.addf %26, %25 : vector<1x64xf32>
    %cst_18 = arith.constant 1.000000e+00 : f32
    %28 = vector.broadcast %cst_18 : f32 to vector<1x64xf32>
    %29 = arith.divf %28, %27 : vector<1x64xf32>
    %30 = vector.extract_strided_slice %13 {offsets = [0, 128], sizes = [1, 64], strides = [1, 1]} : vector<1x256xf32> to vector<1x64xf32>
    %31 = math.tanh %30 : vector<1x64xf32>
    %32 = vector.extract_strided_slice %13 {offsets = [0, 192], sizes = [1, 64], strides = [1, 1]} : vector<1x256xf32> to vector<1x64xf32>
    %cst_19 = arith.constant 0.000000e+00 : f32
    %33 = vector.broadcast %cst_19 : f32 to vector<1x64xf32>
    %34 = arith.subf %33, %32 : vector<1x64xf32>
    %35 = math.exp %34 : vector<1x64xf32>
    %cst_20 = arith.constant 1.000000e+00 : f32
    %36 = vector.broadcast %cst_20 : f32 to vector<1x64xf32>
    %37 = arith.addf %36, %35 : vector<1x64xf32>
    %cst_21 = arith.constant 1.000000e+00 : f32
    %38 = vector.broadcast %cst_21 : f32 to vector<1x64xf32>
    %39 = arith.divf %38, %37 : vector<1x64xf32>
    %40 = arith.mulf %29, %8 : vector<1x64xf32>
    %41 = arith.mulf %21, %31 : vector<1x64xf32>
    %42 = arith.addf %40, %41 : vector<1x64xf32>
    %43 = math.tanh %42 : vector<1x64xf32>
    %44 = arith.mulf %39, %43 : vector<1x64xf32>
    %45 = arith.addf %8, %44 : vector<1x64xf32>
    %c1_i32 = arith.constant 1 : i32
    %46 = arith.index_cast %c1_i32 : i32 to index
    %c0_22 = arith.constant 0 : index
    %47 = vector.load %arg8[%46, %c0_22] : memref<16x256xf32, #tpu.memory_space<vmem>>, vector<1x256xf32>
    %c0_23 = arith.constant 0 : index
    %c0_24 = arith.constant 0 : index
    %48 = vector.load %arg3[%c0_23, %c0_24] : memref<64x256xf32, #tpu.memory_space<vmem>>, vector<64x256xf32>
    %cst_25 = arith.constant dense<0.000000e+00> : vector<1x256xf32>
    %49 = tpu.matmul %44, %48, %cst_25 {dimension_numbers = #tpu.dot_dimension_numbers<[1], [0], [0], [1], [0, 0, 1, 1], [], []>} : vector<1x64xf32>, vector<64x256xf32>, vector<1x256xf32> -> vector<1x256xf32>
    %50 = arith.addf %47, %49 : vector<1x256xf32>
    %51 = vector.extract_strided_slice %50 {offsets = [0, 0], sizes = [1, 64], strides = [1, 1]} : vector<1x256xf32> to vector<1x64xf32>
    %cst_26 = arith.constant 0.000000e+00 : f32
    %52 = vector.broadcast %cst_26 : f32 to vector<1x64xf32>
    %53 = arith.subf %52, %51 : vector<1x64xf32>
    %54 = math.exp %53 : vector<1x64xf32>
    %cst_27 = arith.constant 1.000000e+00 : f32
    %55 = vector.broadcast %cst_27 : f32 to vector<1x64xf32>
    %56 = arith.addf %55, %54 : vector<1x64xf32>
    %cst_28 = arith.constant 1.000000e+00 : f32
    %57 = vector.broadcast %cst_28 : f32 to vector<1x64xf32>
    %58 = arith.divf %57, %56 : vector<1x64xf32>
    %59 = vector.extract_strided_slice %50 {offsets = [0, 64], sizes = [1, 64], strides = [1, 1]} : vector<1x256xf32> to vector<1x64xf32>
    %cst_29 = arith.constant 0.000000e+00 : f32
    %60 = vector.broadcast %cst_29 : f32 to vector<1x64xf32>
    %61 = arith.subf %60, %59 : vector<1x64xf32>
    %62 = math.exp %61 : vector<1x64xf32>
    %cst_30 = arith.constant 1.000000e+00 : f32
    %63 = vector.broadcast %cst_30 : f32 to vector<1x64xf32>
    %64 = arith.addf %63, %62 : vector<1x64xf32>
    %cst_31 = arith.constant 1.000000e+00 : f32
    %65 = vector.broadcast %cst_31 : f32 to vector<1x64xf32>
    %66 = arith.divf %65, %64 : vector<1x64xf32>
    %67 = vector.extract_strided_slice %50 {offsets = [0, 128], sizes = [1, 64], strides = [1, 1]} : vector<1x256xf32> to vector<1x64xf32>
    %68 = math.tanh %67 : vector<1x64xf32>
    %69 = vector.extract_strided_slice %50 {offsets = [0, 192], sizes = [1, 64], strides = [1, 1]} : vector<1x256xf32> to vector<1x64xf32>
    %cst_32 = arith.constant 0.000000e+00 : f32
    %70 = vector.broadcast %cst_32 : f32 to vector<1x64xf32>
    %71 = arith.subf %70, %69 : vector<1x64xf32>
    %72 = math.exp %71 : vector<1x64xf32>
    %cst_33 = arith.constant 1.000000e+00 : f32
    %73 = vector.broadcast %cst_33 : f32 to vector<1x64xf32>
    %74 = arith.addf %73, %72 : vector<1x64xf32>
    %cst_34 = arith.constant 1.000000e+00 : f32
    %75 = vector.broadcast %cst_34 : f32 to vector<1x64xf32>
    %76 = arith.divf %75, %74 : vector<1x64xf32>
    %77 = arith.mulf %66, %42 : vector<1x64xf32>
    %78 = arith.mulf %58, %68 : vector<1x64xf32>
    %79 = arith.addf %77, %78 : vector<1x64xf32>
    %80 = math.tanh %79 : vector<1x64xf32>
    %81 = arith.mulf %76, %80 : vector<1x64xf32>
    %82 = arith.addf %45, %81 : vector<1x64xf32>
    %c2_i32 = arith.constant 2 : i32
    %83 = arith.index_cast %c2_i32 : i32 to index
    %c0_35 = arith.constant 0 : index
    %84 = vector.load %arg8[%83, %c0_35] : memref<16x256xf32, #tpu.memory_space<vmem>>, vector<1x256xf32>
    %c0_36 = arith.constant 0 : index
    %c0_37 = arith.constant 0 : index
    %85 = vector.load %arg3[%c0_36, %c0_37] : memref<64x256xf32, #tpu.memory_space<vmem>>, vector<64x256xf32>
    %cst_38 = arith.constant dense<0.000000e+00> : vector<1x256xf32>
    %86 = tpu.matmul %81, %85, %cst_38 {dimension_numbers = #tpu.dot_dimension_numbers<[1], [0], [0], [1], [0, 0, 1, 1], [], []>} : vector<1x64xf32>, vector<64x256xf32>, vector<1x256xf32> -> vector<1x256xf32>
    %87 = arith.addf %84, %86 : vector<1x256xf32>
    %88 = vector.extract_strided_slice %87 {offsets = [0, 0], sizes = [1, 64], strides = [1, 1]} : vector<1x256xf32> to vector<1x64xf32>
    %cst_39 = arith.constant 0.000000e+00 : f32
    %89 = vector.broadcast %cst_39 : f32 to vector<1x64xf32>
    %90 = arith.subf %89, %88 : vector<1x64xf32>
    %91 = math.exp %90 : vector<1x64xf32>
    %cst_40 = arith.constant 1.000000e+00 : f32
    %92 = vector.broadcast %cst_40 : f32 to vector<1x64xf32>
    %93 = arith.addf %92, %91 : vector<1x64xf32>
    %cst_41 = arith.constant 1.000000e+00 : f32
    %94 = vector.broadcast %cst_41 : f32 to vector<1x64xf32>
    %95 = arith.divf %94, %93 : vector<1x64xf32>
    %96 = vector.extract_strided_slice %87 {offsets = [0, 64], sizes = [1, 64], strides = [1, 1]} : vector<1x256xf32> to vector<1x64xf32>
    %cst_42 = arith.constant 0.000000e+00 : f32
    %97 = vector.broadcast %cst_42 : f32 to vector<1x64xf32>
    %98 = arith.subf %97, %96 : vector<1x64xf32>
    %99 = math.exp %98 : vector<1x64xf32>
    %cst_43 = arith.constant 1.000000e+00 : f32
    %100 = vector.broadcast %cst_43 : f32 to vector<1x64xf32>
    %101 = arith.addf %100, %99 : vector<1x64xf32>
    %cst_44 = arith.constant 1.000000e+00 : f32
    %102 = vector.broadcast %cst_44 : f32 to vector<1x64xf32>
    %103 = arith.divf %102, %101 : vector<1x64xf32>
    %104 = vector.extract_strided_slice %87 {offsets = [0, 128], sizes = [1, 64], strides = [1, 1]} : vector<1x256xf32> to vector<1x64xf32>
    %105 = math.tanh %104 : vector<1x64xf32>
    %106 = vector.extract_strided_slice %87 {offsets = [0, 192], sizes = [1, 64], strides = [1, 1]} : vector<1x256xf32> to vector<1x64xf32>
    %cst_45 = arith.constant 0.000000e+00 : f32
    %107 = vector.broadcast %cst_45 : f32 to vector<1x64xf32>
    %108 = arith.subf %107, %106 : vector<1x64xf32>
    %109 = math.exp %108 : vector<1x64xf32>
    %cst_46 = arith.constant 1.000000e+00 : f32
    %110 = vector.broadcast %cst_46 : f32 to vector<1x64xf32>
    %111 = arith.addf %110, %109 : vector<1x64xf32>
    %cst_47 = arith.constant 1.000000e+00 : f32
    %112 = vector.broadcast %cst_47 : f32 to vector<1x64xf32>
    %113 = arith.divf %112, %111 : vector<1x64xf32>
    %114 = arith.mulf %103, %79 : vector<1x64xf32>
    %115 = arith.mulf %95, %105 : vector<1x64xf32>
    %116 = arith.addf %114, %115 : vector<1x64xf32>
    %117 = math.tanh %116 : vector<1x64xf32>
    %118 = arith.mulf %113, %117 : vector<1x64xf32>
    %119 = arith.addf %82, %118 : vector<1x64xf32>
    %c3_i32 = arith.constant 3 : i32
    %120 = arith.index_cast %c3_i32 : i32 to index
    %c0_48 = arith.constant 0 : index
    %121 = vector.load %arg8[%120, %c0_48] : memref<16x256xf32, #tpu.memory_space<vmem>>, vector<1x256xf32>
    %c0_49 = arith.constant 0 : index
    %c0_50 = arith.constant 0 : index
    %122 = vector.load %arg3[%c0_49, %c0_50] : memref<64x256xf32, #tpu.memory_space<vmem>>, vector<64x256xf32>
    %cst_51 = arith.constant dense<0.000000e+00> : vector<1x256xf32>
    %123 = tpu.matmul %118, %122, %cst_51 {dimension_numbers = #tpu.dot_dimension_numbers<[1], [0], [0], [1], [0, 0, 1, 1], [], []>} : vector<1x64xf32>, vector<64x256xf32>, vector<1x256xf32> -> vector<1x256xf32>
    %124 = arith.addf %121, %123 : vector<1x256xf32>
    %125 = vector.extract_strided_slice %124 {offsets = [0, 0], sizes = [1, 64], strides = [1, 1]} : vector<1x256xf32> to vector<1x64xf32>
    %cst_52 = arith.constant 0.000000e+00 : f32
    %126 = vector.broadcast %cst_52 : f32 to vector<1x64xf32>
    %127 = arith.subf %126, %125 : vector<1x64xf32>
    %128 = math.exp %127 : vector<1x64xf32>
    %cst_53 = arith.constant 1.000000e+00 : f32
    %129 = vector.broadcast %cst_53 : f32 to vector<1x64xf32>
    %130 = arith.addf %129, %128 : vector<1x64xf32>
    %cst_54 = arith.constant 1.000000e+00 : f32
    %131 = vector.broadcast %cst_54 : f32 to vector<1x64xf32>
    %132 = arith.divf %131, %130 : vector<1x64xf32>
    %133 = vector.extract_strided_slice %124 {offsets = [0, 64], sizes = [1, 64], strides = [1, 1]} : vector<1x256xf32> to vector<1x64xf32>
    %cst_55 = arith.constant 0.000000e+00 : f32
    %134 = vector.broadcast %cst_55 : f32 to vector<1x64xf32>
    %135 = arith.subf %134, %133 : vector<1x64xf32>
    %136 = math.exp %135 : vector<1x64xf32>
    %cst_56 = arith.constant 1.000000e+00 : f32
    %137 = vector.broadcast %cst_56 : f32 to vector<1x64xf32>
    %138 = arith.addf %137, %136 : vector<1x64xf32>
    %cst_57 = arith.constant 1.000000e+00 : f32
    %139 = vector.broadcast %cst_57 : f32 to vector<1x64xf32>
    %140 = arith.divf %139, %138 : vector<1x64xf32>
    %141 = vector.extract_strided_slice %124 {offsets = [0, 128], sizes = [1, 64], strides = [1, 1]} : vector<1x256xf32> to vector<1x64xf32>
    %142 = math.tanh %141 : vector<1x64xf32>
    %143 = vector.extract_strided_slice %124 {offsets = [0, 192], sizes = [1, 64], strides = [1, 1]} : vector<1x256xf32> to vector<1x64xf32>
    %cst_58 = arith.constant 0.000000e+00 : f32
    %144 = vector.broadcast %cst_58 : f32 to vector<1x64xf32>
    %145 = arith.subf %144, %143 : vector<1x64xf32>
    %146 = math.exp %145 : vector<1x64xf32>
    %cst_59 = arith.constant 1.000000e+00 : f32
    %147 = vector.broadcast %cst_59 : f32 to vector<1x64xf32>
    %148 = arith.addf %147, %146 : vector<1x64xf32>
    %cst_60 = arith.constant 1.000000e+00 : f32
    %149 = vector.broadcast %cst_60 : f32 to vector<1x64xf32>
    %150 = arith.divf %149, %148 : vector<1x64xf32>
    %151 = arith.mulf %140, %116 : vector<1x64xf32>
    %152 = arith.mulf %132, %142 : vector<1x64xf32>
    %153 = arith.addf %151, %152 : vector<1x64xf32>
    %154 = math.tanh %153 : vector<1x64xf32>
    %155 = arith.mulf %150, %154 : vector<1x64xf32>
    %156 = arith.addf %119, %155 : vector<1x64xf32>
    %c4_i32 = arith.constant 4 : i32
    %157 = arith.index_cast %c4_i32 : i32 to index
    %c0_61 = arith.constant 0 : index
    %158 = vector.load %arg8[%157, %c0_61] : memref<16x256xf32, #tpu.memory_space<vmem>>, vector<1x256xf32>
    %c0_62 = arith.constant 0 : index
    %c0_63 = arith.constant 0 : index
    %159 = vector.load %arg3[%c0_62, %c0_63] : memref<64x256xf32, #tpu.memory_space<vmem>>, vector<64x256xf32>
    %cst_64 = arith.constant dense<0.000000e+00> : vector<1x256xf32>
    %160 = tpu.matmul %155, %159, %cst_64 {dimension_numbers = #tpu.dot_dimension_numbers<[1], [0], [0], [1], [0, 0, 1, 1], [], []>} : vector<1x64xf32>, vector<64x256xf32>, vector<1x256xf32> -> vector<1x256xf32>
    %161 = arith.addf %158, %160 : vector<1x256xf32>
    %162 = vector.extract_strided_slice %161 {offsets = [0, 0], sizes = [1, 64], strides = [1, 1]} : vector<1x256xf32> to vector<1x64xf32>
    %cst_65 = arith.constant 0.000000e+00 : f32
    %163 = vector.broadcast %cst_65 : f32 to vector<1x64xf32>
    %164 = arith.subf %163, %162 : vector<1x64xf32>
    %165 = math.exp %164 : vector<1x64xf32>
    %cst_66 = arith.constant 1.000000e+00 : f32
    %166 = vector.broadcast %cst_66 : f32 to vector<1x64xf32>
    %167 = arith.addf %166, %165 : vector<1x64xf32>
    %cst_67 = arith.constant 1.000000e+00 : f32
    %168 = vector.broadcast %cst_67 : f32 to vector<1x64xf32>
    %169 = arith.divf %168, %167 : vector<1x64xf32>
    %170 = vector.extract_strided_slice %161 {offsets = [0, 64], sizes = [1, 64], strides = [1, 1]} : vector<1x256xf32> to vector<1x64xf32>
    %cst_68 = arith.constant 0.000000e+00 : f32
    %171 = vector.broadcast %cst_68 : f32 to vector<1x64xf32>
    %172 = arith.subf %171, %170 : vector<1x64xf32>
    %173 = math.exp %172 : vector<1x64xf32>
    %cst_69 = arith.constant 1.000000e+00 : f32
    %174 = vector.broadcast %cst_69 : f32 to vector<1x64xf32>
    %175 = arith.addf %174, %173 : vector<1x64xf32>
    %cst_70 = arith.constant 1.000000e+00 : f32
    %176 = vector.broadcast %cst_70 : f32 to vector<1x64xf32>
    %177 = arith.divf %176, %175 : vector<1x64xf32>
    %178 = vector.extract_strided_slice %161 {offsets = [0, 128], sizes = [1, 64], strides = [1, 1]} : vector<1x256xf32> to vector<1x64xf32>
    %179 = math.tanh %178 : vector<1x64xf32>
    %180 = vector.extract_strided_slice %161 {offsets = [0, 192], sizes = [1, 64], strides = [1, 1]} : vector<1x256xf32> to vector<1x64xf32>
    %cst_71 = arith.constant 0.000000e+00 : f32
    %181 = vector.broadcast %cst_71 : f32 to vector<1x64xf32>
    %182 = arith.subf %181, %180 : vector<1x64xf32>
    %183 = math.exp %182 : vector<1x64xf32>
    %cst_72 = arith.constant 1.000000e+00 : f32
    %184 = vector.broadcast %cst_72 : f32 to vector<1x64xf32>
    %185 = arith.addf %184, %183 : vector<1x64xf32>
    %cst_73 = arith.constant 1.000000e+00 : f32
    %186 = vector.broadcast %cst_73 : f32 to vector<1x64xf32>
    %187 = arith.divf %186, %185 : vector<1x64xf32>
    %188 = arith.mulf %177, %153 : vector<1x64xf32>
    %189 = arith.mulf %169, %179 : vector<1x64xf32>
    %190 = arith.addf %188, %189 : vector<1x64xf32>
    %191 = math.tanh %190 : vector<1x64xf32>
    %192 = arith.mulf %187, %191 : vector<1x64xf32>
    %193 = arith.addf %156, %192 : vector<1x64xf32>
    %c5_i32 = arith.constant 5 : i32
    %194 = arith.index_cast %c5_i32 : i32 to index
    %c0_74 = arith.constant 0 : index
    %195 = vector.load %arg8[%194, %c0_74] : memref<16x256xf32, #tpu.memory_space<vmem>>, vector<1x256xf32>
    %c0_75 = arith.constant 0 : index
    %c0_76 = arith.constant 0 : index
    %196 = vector.load %arg3[%c0_75, %c0_76] : memref<64x256xf32, #tpu.memory_space<vmem>>, vector<64x256xf32>
    %cst_77 = arith.constant dense<0.000000e+00> : vector<1x256xf32>
    %197 = tpu.matmul %192, %196, %cst_77 {dimension_numbers = #tpu.dot_dimension_numbers<[1], [0], [0], [1], [0, 0, 1, 1], [], []>} : vector<1x64xf32>, vector<64x256xf32>, vector<1x256xf32> -> vector<1x256xf32>
    %198 = arith.addf %195, %197 : vector<1x256xf32>
    %199 = vector.extract_strided_slice %198 {offsets = [0, 0], sizes = [1, 64], strides = [1, 1]} : vector<1x256xf32> to vector<1x64xf32>
    %cst_78 = arith.constant 0.000000e+00 : f32
    %200 = vector.broadcast %cst_78 : f32 to vector<1x64xf32>
    %201 = arith.subf %200, %199 : vector<1x64xf32>
    %202 = math.exp %201 : vector<1x64xf32>
    %cst_79 = arith.constant 1.000000e+00 : f32
    %203 = vector.broadcast %cst_79 : f32 to vector<1x64xf32>
    %204 = arith.addf %203, %202 : vector<1x64xf32>
    %cst_80 = arith.constant 1.000000e+00 : f32
    %205 = vector.broadcast %cst_80 : f32 to vector<1x64xf32>
    %206 = arith.divf %205, %204 : vector<1x64xf32>
    %207 = vector.extract_strided_slice %198 {offsets = [0, 64], sizes = [1, 64], strides = [1, 1]} : vector<1x256xf32> to vector<1x64xf32>
    %cst_81 = arith.constant 0.000000e+00 : f32
    %208 = vector.broadcast %cst_81 : f32 to vector<1x64xf32>
    %209 = arith.subf %208, %207 : vector<1x64xf32>
    %210 = math.exp %209 : vector<1x64xf32>
    %cst_82 = arith.constant 1.000000e+00 : f32
    %211 = vector.broadcast %cst_82 : f32 to vector<1x64xf32>
    %212 = arith.addf %211, %210 : vector<1x64xf32>
    %cst_83 = arith.constant 1.000000e+00 : f32
    %213 = vector.broadcast %cst_83 : f32 to vector<1x64xf32>
    %214 = arith.divf %213, %212 : vector<1x64xf32>
    %215 = vector.extract_strided_slice %198 {offsets = [0, 128], sizes = [1, 64], strides = [1, 1]} : vector<1x256xf32> to vector<1x64xf32>
    %216 = math.tanh %215 : vector<1x64xf32>
    %217 = vector.extract_strided_slice %198 {offsets = [0, 192], sizes = [1, 64], strides = [1, 1]} : vector<1x256xf32> to vector<1x64xf32>
    %cst_84 = arith.constant 0.000000e+00 : f32
    %218 = vector.broadcast %cst_84 : f32 to vector<1x64xf32>
    %219 = arith.subf %218, %217 : vector<1x64xf32>
    %220 = math.exp %219 : vector<1x64xf32>
    %cst_85 = arith.constant 1.000000e+00 : f32
    %221 = vector.broadcast %cst_85 : f32 to vector<1x64xf32>
    %222 = arith.addf %221, %220 : vector<1x64xf32>
    %cst_86 = arith.constant 1.000000e+00 : f32
    %223 = vector.broadcast %cst_86 : f32 to vector<1x64xf32>
    %224 = arith.divf %223, %222 : vector<1x64xf32>
    %225 = arith.mulf %214, %190 : vector<1x64xf32>
    %226 = arith.mulf %206, %216 : vector<1x64xf32>
    %227 = arith.addf %225, %226 : vector<1x64xf32>
    %228 = math.tanh %227 : vector<1x64xf32>
    %229 = arith.mulf %224, %228 : vector<1x64xf32>
    %230 = arith.addf %193, %229 : vector<1x64xf32>
    %c6_i32 = arith.constant 6 : i32
    %231 = arith.index_cast %c6_i32 : i32 to index
    %c0_87 = arith.constant 0 : index
    %232 = vector.load %arg8[%231, %c0_87] : memref<16x256xf32, #tpu.memory_space<vmem>>, vector<1x256xf32>
    %c0_88 = arith.constant 0 : index
    %c0_89 = arith.constant 0 : index
    %233 = vector.load %arg3[%c0_88, %c0_89] : memref<64x256xf32, #tpu.memory_space<vmem>>, vector<64x256xf32>
    %cst_90 = arith.constant dense<0.000000e+00> : vector<1x256xf32>
    %234 = tpu.matmul %229, %233, %cst_90 {dimension_numbers = #tpu.dot_dimension_numbers<[1], [0], [0], [1], [0, 0, 1, 1], [], []>} : vector<1x64xf32>, vector<64x256xf32>, vector<1x256xf32> -> vector<1x256xf32>
    %235 = arith.addf %232, %234 : vector<1x256xf32>
    %236 = vector.extract_strided_slice %235 {offsets = [0, 0], sizes = [1, 64], strides = [1, 1]} : vector<1x256xf32> to vector<1x64xf32>
    %cst_91 = arith.constant 0.000000e+00 : f32
    %237 = vector.broadcast %cst_91 : f32 to vector<1x64xf32>
    %238 = arith.subf %237, %236 : vector<1x64xf32>
    %239 = math.exp %238 : vector<1x64xf32>
    %cst_92 = arith.constant 1.000000e+00 : f32
    %240 = vector.broadcast %cst_92 : f32 to vector<1x64xf32>
    %241 = arith.addf %240, %239 : vector<1x64xf32>
    %cst_93 = arith.constant 1.000000e+00 : f32
    %242 = vector.broadcast %cst_93 : f32 to vector<1x64xf32>
    %243 = arith.divf %242, %241 : vector<1x64xf32>
    %244 = vector.extract_strided_slice %235 {offsets = [0, 64], sizes = [1, 64], strides = [1, 1]} : vector<1x256xf32> to vector<1x64xf32>
    %cst_94 = arith.constant 0.000000e+00 : f32
    %245 = vector.broadcast %cst_94 : f32 to vector<1x64xf32>
    %246 = arith.subf %245, %244 : vector<1x64xf32>
    %247 = math.exp %246 : vector<1x64xf32>
    %cst_95 = arith.constant 1.000000e+00 : f32
    %248 = vector.broadcast %cst_95 : f32 to vector<1x64xf32>
    %249 = arith.addf %248, %247 : vector<1x64xf32>
    %cst_96 = arith.constant 1.000000e+00 : f32
    %250 = vector.broadcast %cst_96 : f32 to vector<1x64xf32>
    %251 = arith.divf %250, %249 : vector<1x64xf32>
    %252 = vector.extract_strided_slice %235 {offsets = [0, 128], sizes = [1, 64], strides = [1, 1]} : vector<1x256xf32> to vector<1x64xf32>
    %253 = math.tanh %252 : vector<1x64xf32>
    %254 = vector.extract_strided_slice %235 {offsets = [0, 192], sizes = [1, 64], strides = [1, 1]} : vector<1x256xf32> to vector<1x64xf32>
    %cst_97 = arith.constant 0.000000e+00 : f32
    %255 = vector.broadcast %cst_97 : f32 to vector<1x64xf32>
    %256 = arith.subf %255, %254 : vector<1x64xf32>
    %257 = math.exp %256 : vector<1x64xf32>
    %cst_98 = arith.constant 1.000000e+00 : f32
    %258 = vector.broadcast %cst_98 : f32 to vector<1x64xf32>
    %259 = arith.addf %258, %257 : vector<1x64xf32>
    %cst_99 = arith.constant 1.000000e+00 : f32
    %260 = vector.broadcast %cst_99 : f32 to vector<1x64xf32>
    %261 = arith.divf %260, %259 : vector<1x64xf32>
    %262 = arith.mulf %251, %227 : vector<1x64xf32>
    %263 = arith.mulf %243, %253 : vector<1x64xf32>
    %264 = arith.addf %262, %263 : vector<1x64xf32>
    %265 = math.tanh %264 : vector<1x64xf32>
    %266 = arith.mulf %261, %265 : vector<1x64xf32>
    %267 = arith.addf %230, %266 : vector<1x64xf32>
    %c7_i32 = arith.constant 7 : i32
    %268 = arith.index_cast %c7_i32 : i32 to index
    %c0_100 = arith.constant 0 : index
    %269 = vector.load %arg8[%268, %c0_100] : memref<16x256xf32, #tpu.memory_space<vmem>>, vector<1x256xf32>
    %c0_101 = arith.constant 0 : index
    %c0_102 = arith.constant 0 : index
    %270 = vector.load %arg3[%c0_101, %c0_102] : memref<64x256xf32, #tpu.memory_space<vmem>>, vector<64x256xf32>
    %cst_103 = arith.constant dense<0.000000e+00> : vector<1x256xf32>
    %271 = tpu.matmul %266, %270, %cst_103 {dimension_numbers = #tpu.dot_dimension_numbers<[1], [0], [0], [1], [0, 0, 1, 1], [], []>} : vector<1x64xf32>, vector<64x256xf32>, vector<1x256xf32> -> vector<1x256xf32>
    %272 = arith.addf %269, %271 : vector<1x256xf32>
    %273 = vector.extract_strided_slice %272 {offsets = [0, 0], sizes = [1, 64], strides = [1, 1]} : vector<1x256xf32> to vector<1x64xf32>
    %cst_104 = arith.constant 0.000000e+00 : f32
    %274 = vector.broadcast %cst_104 : f32 to vector<1x64xf32>
    %275 = arith.subf %274, %273 : vector<1x64xf32>
    %276 = math.exp %275 : vector<1x64xf32>
    %cst_105 = arith.constant 1.000000e+00 : f32
    %277 = vector.broadcast %cst_105 : f32 to vector<1x64xf32>
    %278 = arith.addf %277, %276 : vector<1x64xf32>
    %cst_106 = arith.constant 1.000000e+00 : f32
    %279 = vector.broadcast %cst_106 : f32 to vector<1x64xf32>
    %280 = arith.divf %279, %278 : vector<1x64xf32>
    %281 = vector.extract_strided_slice %272 {offsets = [0, 64], sizes = [1, 64], strides = [1, 1]} : vector<1x256xf32> to vector<1x64xf32>
    %cst_107 = arith.constant 0.000000e+00 : f32
    %282 = vector.broadcast %cst_107 : f32 to vector<1x64xf32>
    %283 = arith.subf %282, %281 : vector<1x64xf32>
    %284 = math.exp %283 : vector<1x64xf32>
    %cst_108 = arith.constant 1.000000e+00 : f32
    %285 = vector.broadcast %cst_108 : f32 to vector<1x64xf32>
    %286 = arith.addf %285, %284 : vector<1x64xf32>
    %cst_109 = arith.constant 1.000000e+00 : f32
    %287 = vector.broadcast %cst_109 : f32 to vector<1x64xf32>
    %288 = arith.divf %287, %286 : vector<1x64xf32>
    %289 = vector.extract_strided_slice %272 {offsets = [0, 128], sizes = [1, 64], strides = [1, 1]} : vector<1x256xf32> to vector<1x64xf32>
    %290 = math.tanh %289 : vector<1x64xf32>
    %291 = vector.extract_strided_slice %272 {offsets = [0, 192], sizes = [1, 64], strides = [1, 1]} : vector<1x256xf32> to vector<1x64xf32>
    %cst_110 = arith.constant 0.000000e+00 : f32
    %292 = vector.broadcast %cst_110 : f32 to vector<1x64xf32>
    %293 = arith.subf %292, %291 : vector<1x64xf32>
    %294 = math.exp %293 : vector<1x64xf32>
    %cst_111 = arith.constant 1.000000e+00 : f32
    %295 = vector.broadcast %cst_111 : f32 to vector<1x64xf32>
    %296 = arith.addf %295, %294 : vector<1x64xf32>
    %cst_112 = arith.constant 1.000000e+00 : f32
    %297 = vector.broadcast %cst_112 : f32 to vector<1x64xf32>
    %298 = arith.divf %297, %296 : vector<1x64xf32>
    %299 = arith.mulf %288, %264 : vector<1x64xf32>
    %300 = arith.mulf %280, %290 : vector<1x64xf32>
    %301 = arith.addf %299, %300 : vector<1x64xf32>
    %302 = math.tanh %301 : vector<1x64xf32>
    %303 = arith.mulf %298, %302 : vector<1x64xf32>
    %304 = arith.addf %267, %303 : vector<1x64xf32>
    %c8_i32 = arith.constant 8 : i32
    %305 = arith.index_cast %c8_i32 : i32 to index
    %c0_113 = arith.constant 0 : index
    %306 = vector.load %arg8[%305, %c0_113] : memref<16x256xf32, #tpu.memory_space<vmem>>, vector<1x256xf32>
    %c0_114 = arith.constant 0 : index
    %c0_115 = arith.constant 0 : index
    %307 = vector.load %arg3[%c0_114, %c0_115] : memref<64x256xf32, #tpu.memory_space<vmem>>, vector<64x256xf32>
    %cst_116 = arith.constant dense<0.000000e+00> : vector<1x256xf32>
    %308 = tpu.matmul %303, %307, %cst_116 {dimension_numbers = #tpu.dot_dimension_numbers<[1], [0], [0], [1], [0, 0, 1, 1], [], []>} : vector<1x64xf32>, vector<64x256xf32>, vector<1x256xf32> -> vector<1x256xf32>
    %309 = arith.addf %306, %308 : vector<1x256xf32>
    %310 = vector.extract_strided_slice %309 {offsets = [0, 0], sizes = [1, 64], strides = [1, 1]} : vector<1x256xf32> to vector<1x64xf32>
    %cst_117 = arith.constant 0.000000e+00 : f32
    %311 = vector.broadcast %cst_117 : f32 to vector<1x64xf32>
    %312 = arith.subf %311, %310 : vector<1x64xf32>
    %313 = math.exp %312 : vector<1x64xf32>
    %cst_118 = arith.constant 1.000000e+00 : f32
    %314 = vector.broadcast %cst_118 : f32 to vector<1x64xf32>
    %315 = arith.addf %314, %313 : vector<1x64xf32>
    %cst_119 = arith.constant 1.000000e+00 : f32
    %316 = vector.broadcast %cst_119 : f32 to vector<1x64xf32>
    %317 = arith.divf %316, %315 : vector<1x64xf32>
    %318 = vector.extract_strided_slice %309 {offsets = [0, 64], sizes = [1, 64], strides = [1, 1]} : vector<1x256xf32> to vector<1x64xf32>
    %cst_120 = arith.constant 0.000000e+00 : f32
    %319 = vector.broadcast %cst_120 : f32 to vector<1x64xf32>
    %320 = arith.subf %319, %318 : vector<1x64xf32>
    %321 = math.exp %320 : vector<1x64xf32>
    %cst_121 = arith.constant 1.000000e+00 : f32
    %322 = vector.broadcast %cst_121 : f32 to vector<1x64xf32>
    %323 = arith.addf %322, %321 : vector<1x64xf32>
    %cst_122 = arith.constant 1.000000e+00 : f32
    %324 = vector.broadcast %cst_122 : f32 to vector<1x64xf32>
    %325 = arith.divf %324, %323 : vector<1x64xf32>
    %326 = vector.extract_strided_slice %309 {offsets = [0, 128], sizes = [1, 64], strides = [1, 1]} : vector<1x256xf32> to vector<1x64xf32>
    %327 = math.tanh %326 : vector<1x64xf32>
    %328 = vector.extract_strided_slice %309 {offsets = [0, 192], sizes = [1, 64], strides = [1, 1]} : vector<1x256xf32> to vector<1x64xf32>
    %cst_123 = arith.constant 0.000000e+00 : f32
    %329 = vector.broadcast %cst_123 : f32 to vector<1x64xf32>
    %330 = arith.subf %329, %328 : vector<1x64xf32>
    %331 = math.exp %330 : vector<1x64xf32>
    %cst_124 = arith.constant 1.000000e+00 : f32
    %332 = vector.broadcast %cst_124 : f32 to vector<1x64xf32>
    %333 = arith.addf %332, %331 : vector<1x64xf32>
    %cst_125 = arith.constant 1.000000e+00 : f32
    %334 = vector.broadcast %cst_125 : f32 to vector<1x64xf32>
    %335 = arith.divf %334, %333 : vector<1x64xf32>
    %336 = arith.mulf %325, %301 : vector<1x64xf32>
    %337 = arith.mulf %317, %327 : vector<1x64xf32>
    %338 = arith.addf %336, %337 : vector<1x64xf32>
    %339 = math.tanh %338 : vector<1x64xf32>
    %340 = arith.mulf %335, %339 : vector<1x64xf32>
    %341 = arith.addf %304, %340 : vector<1x64xf32>
    %c9_i32 = arith.constant 9 : i32
    %342 = arith.index_cast %c9_i32 : i32 to index
    %c0_126 = arith.constant 0 : index
    %343 = vector.load %arg8[%342, %c0_126] : memref<16x256xf32, #tpu.memory_space<vmem>>, vector<1x256xf32>
    %c0_127 = arith.constant 0 : index
    %c0_128 = arith.constant 0 : index
    %344 = vector.load %arg3[%c0_127, %c0_128] : memref<64x256xf32, #tpu.memory_space<vmem>>, vector<64x256xf32>
    %cst_129 = arith.constant dense<0.000000e+00> : vector<1x256xf32>
    %345 = tpu.matmul %340, %344, %cst_129 {dimension_numbers = #tpu.dot_dimension_numbers<[1], [0], [0], [1], [0, 0, 1, 1], [], []>} : vector<1x64xf32>, vector<64x256xf32>, vector<1x256xf32> -> vector<1x256xf32>
    %346 = arith.addf %343, %345 : vector<1x256xf32>
    %347 = vector.extract_strided_slice %346 {offsets = [0, 0], sizes = [1, 64], strides = [1, 1]} : vector<1x256xf32> to vector<1x64xf32>
    %cst_130 = arith.constant 0.000000e+00 : f32
    %348 = vector.broadcast %cst_130 : f32 to vector<1x64xf32>
    %349 = arith.subf %348, %347 : vector<1x64xf32>
    %350 = math.exp %349 : vector<1x64xf32>
    %cst_131 = arith.constant 1.000000e+00 : f32
    %351 = vector.broadcast %cst_131 : f32 to vector<1x64xf32>
    %352 = arith.addf %351, %350 : vector<1x64xf32>
    %cst_132 = arith.constant 1.000000e+00 : f32
    %353 = vector.broadcast %cst_132 : f32 to vector<1x64xf32>
    %354 = arith.divf %353, %352 : vector<1x64xf32>
    %355 = vector.extract_strided_slice %346 {offsets = [0, 64], sizes = [1, 64], strides = [1, 1]} : vector<1x256xf32> to vector<1x64xf32>
    %cst_133 = arith.constant 0.000000e+00 : f32
    %356 = vector.broadcast %cst_133 : f32 to vector<1x64xf32>
    %357 = arith.subf %356, %355 : vector<1x64xf32>
    %358 = math.exp %357 : vector<1x64xf32>
    %cst_134 = arith.constant 1.000000e+00 : f32
    %359 = vector.broadcast %cst_134 : f32 to vector<1x64xf32>
    %360 = arith.addf %359, %358 : vector<1x64xf32>
    %cst_135 = arith.constant 1.000000e+00 : f32
    %361 = vector.broadcast %cst_135 : f32 to vector<1x64xf32>
    %362 = arith.divf %361, %360 : vector<1x64xf32>
    %363 = vector.extract_strided_slice %346 {offsets = [0, 128], sizes = [1, 64], strides = [1, 1]} : vector<1x256xf32> to vector<1x64xf32>
    %364 = math.tanh %363 : vector<1x64xf32>
    %365 = vector.extract_strided_slice %346 {offsets = [0, 192], sizes = [1, 64], strides = [1, 1]} : vector<1x256xf32> to vector<1x64xf32>
    %cst_136 = arith.constant 0.000000e+00 : f32
    %366 = vector.broadcast %cst_136 : f32 to vector<1x64xf32>
    %367 = arith.subf %366, %365 : vector<1x64xf32>
    %368 = math.exp %367 : vector<1x64xf32>
    %cst_137 = arith.constant 1.000000e+00 : f32
    %369 = vector.broadcast %cst_137 : f32 to vector<1x64xf32>
    %370 = arith.addf %369, %368 : vector<1x64xf32>
    %cst_138 = arith.constant 1.000000e+00 : f32
    %371 = vector.broadcast %cst_138 : f32 to vector<1x64xf32>
    %372 = arith.divf %371, %370 : vector<1x64xf32>
    %373 = arith.mulf %362, %338 : vector<1x64xf32>
    %374 = arith.mulf %354, %364 : vector<1x64xf32>
    %375 = arith.addf %373, %374 : vector<1x64xf32>
    %376 = math.tanh %375 : vector<1x64xf32>
    %377 = arith.mulf %372, %376 : vector<1x64xf32>
    %378 = arith.addf %341, %377 : vector<1x64xf32>
    %c10_i32 = arith.constant 10 : i32
    %379 = arith.index_cast %c10_i32 : i32 to index
    %c0_139 = arith.constant 0 : index
    %380 = vector.load %arg8[%379, %c0_139] : memref<16x256xf32, #tpu.memory_space<vmem>>, vector<1x256xf32>
    %c0_140 = arith.constant 0 : index
    %c0_141 = arith.constant 0 : index
    %381 = vector.load %arg3[%c0_140, %c0_141] : memref<64x256xf32, #tpu.memory_space<vmem>>, vector<64x256xf32>
    %cst_142 = arith.constant dense<0.000000e+00> : vector<1x256xf32>
    %382 = tpu.matmul %377, %381, %cst_142 {dimension_numbers = #tpu.dot_dimension_numbers<[1], [0], [0], [1], [0, 0, 1, 1], [], []>} : vector<1x64xf32>, vector<64x256xf32>, vector<1x256xf32> -> vector<1x256xf32>
    %383 = arith.addf %380, %382 : vector<1x256xf32>
    %384 = vector.extract_strided_slice %383 {offsets = [0, 0], sizes = [1, 64], strides = [1, 1]} : vector<1x256xf32> to vector<1x64xf32>
    %cst_143 = arith.constant 0.000000e+00 : f32
    %385 = vector.broadcast %cst_143 : f32 to vector<1x64xf32>
    %386 = arith.subf %385, %384 : vector<1x64xf32>
    %387 = math.exp %386 : vector<1x64xf32>
    %cst_144 = arith.constant 1.000000e+00 : f32
    %388 = vector.broadcast %cst_144 : f32 to vector<1x64xf32>
    %389 = arith.addf %388, %387 : vector<1x64xf32>
    %cst_145 = arith.constant 1.000000e+00 : f32
    %390 = vector.broadcast %cst_145 : f32 to vector<1x64xf32>
    %391 = arith.divf %390, %389 : vector<1x64xf32>
    %392 = vector.extract_strided_slice %383 {offsets = [0, 64], sizes = [1, 64], strides = [1, 1]} : vector<1x256xf32> to vector<1x64xf32>
    %cst_146 = arith.constant 0.000000e+00 : f32
    %393 = vector.broadcast %cst_146 : f32 to vector<1x64xf32>
    %394 = arith.subf %393, %392 : vector<1x64xf32>
    %395 = math.exp %394 : vector<1x64xf32>
    %cst_147 = arith.constant 1.000000e+00 : f32
    %396 = vector.broadcast %cst_147 : f32 to vector<1x64xf32>
    %397 = arith.addf %396, %395 : vector<1x64xf32>
    %cst_148 = arith.constant 1.000000e+00 : f32
    %398 = vector.broadcast %cst_148 : f32 to vector<1x64xf32>
    %399 = arith.divf %398, %397 : vector<1x64xf32>
    %400 = vector.extract_strided_slice %383 {offsets = [0, 128], sizes = [1, 64], strides = [1, 1]} : vector<1x256xf32> to vector<1x64xf32>
    %401 = math.tanh %400 : vector<1x64xf32>
    %402 = vector.extract_strided_slice %383 {offsets = [0, 192], sizes = [1, 64], strides = [1, 1]} : vector<1x256xf32> to vector<1x64xf32>
    %cst_149 = arith.constant 0.000000e+00 : f32
    %403 = vector.broadcast %cst_149 : f32 to vector<1x64xf32>
    %404 = arith.subf %403, %402 : vector<1x64xf32>
    %405 = math.exp %404 : vector<1x64xf32>
    %cst_150 = arith.constant 1.000000e+00 : f32
    %406 = vector.broadcast %cst_150 : f32 to vector<1x64xf32>
    %407 = arith.addf %406, %405 : vector<1x64xf32>
    %cst_151 = arith.constant 1.000000e+00 : f32
    %408 = vector.broadcast %cst_151 : f32 to vector<1x64xf32>
    %409 = arith.divf %408, %407 : vector<1x64xf32>
    %410 = arith.mulf %399, %375 : vector<1x64xf32>
    %411 = arith.mulf %391, %401 : vector<1x64xf32>
    %412 = arith.addf %410, %411 : vector<1x64xf32>
    %413 = math.tanh %412 : vector<1x64xf32>
    %414 = arith.mulf %409, %413 : vector<1x64xf32>
    %415 = arith.addf %378, %414 : vector<1x64xf32>
    %c11_i32 = arith.constant 11 : i32
    %416 = arith.index_cast %c11_i32 : i32 to index
    %c0_152 = arith.constant 0 : index
    %417 = vector.load %arg8[%416, %c0_152] : memref<16x256xf32, #tpu.memory_space<vmem>>, vector<1x256xf32>
    %c0_153 = arith.constant 0 : index
    %c0_154 = arith.constant 0 : index
    %418 = vector.load %arg3[%c0_153, %c0_154] : memref<64x256xf32, #tpu.memory_space<vmem>>, vector<64x256xf32>
    %cst_155 = arith.constant dense<0.000000e+00> : vector<1x256xf32>
    %419 = tpu.matmul %414, %418, %cst_155 {dimension_numbers = #tpu.dot_dimension_numbers<[1], [0], [0], [1], [0, 0, 1, 1], [], []>} : vector<1x64xf32>, vector<64x256xf32>, vector<1x256xf32> -> vector<1x256xf32>
    %420 = arith.addf %417, %419 : vector<1x256xf32>
    %421 = vector.extract_strided_slice %420 {offsets = [0, 0], sizes = [1, 64], strides = [1, 1]} : vector<1x256xf32> to vector<1x64xf32>
    %cst_156 = arith.constant 0.000000e+00 : f32
    %422 = vector.broadcast %cst_156 : f32 to vector<1x64xf32>
    %423 = arith.subf %422, %421 : vector<1x64xf32>
    %424 = math.exp %423 : vector<1x64xf32>
    %cst_157 = arith.constant 1.000000e+00 : f32
    %425 = vector.broadcast %cst_157 : f32 to vector<1x64xf32>
    %426 = arith.addf %425, %424 : vector<1x64xf32>
    %cst_158 = arith.constant 1.000000e+00 : f32
    %427 = vector.broadcast %cst_158 : f32 to vector<1x64xf32>
    %428 = arith.divf %427, %426 : vector<1x64xf32>
    %429 = vector.extract_strided_slice %420 {offsets = [0, 64], sizes = [1, 64], strides = [1, 1]} : vector<1x256xf32> to vector<1x64xf32>
    %cst_159 = arith.constant 0.000000e+00 : f32
    %430 = vector.broadcast %cst_159 : f32 to vector<1x64xf32>
    %431 = arith.subf %430, %429 : vector<1x64xf32>
    %432 = math.exp %431 : vector<1x64xf32>
    %cst_160 = arith.constant 1.000000e+00 : f32
    %433 = vector.broadcast %cst_160 : f32 to vector<1x64xf32>
    %434 = arith.addf %433, %432 : vector<1x64xf32>
    %cst_161 = arith.constant 1.000000e+00 : f32
    %435 = vector.broadcast %cst_161 : f32 to vector<1x64xf32>
    %436 = arith.divf %435, %434 : vector<1x64xf32>
    %437 = vector.extract_strided_slice %420 {offsets = [0, 128], sizes = [1, 64], strides = [1, 1]} : vector<1x256xf32> to vector<1x64xf32>
    %438 = math.tanh %437 : vector<1x64xf32>
    %439 = vector.extract_strided_slice %420 {offsets = [0, 192], sizes = [1, 64], strides = [1, 1]} : vector<1x256xf32> to vector<1x64xf32>
    %cst_162 = arith.constant 0.000000e+00 : f32
    %440 = vector.broadcast %cst_162 : f32 to vector<1x64xf32>
    %441 = arith.subf %440, %439 : vector<1x64xf32>
    %442 = math.exp %441 : vector<1x64xf32>
    %cst_163 = arith.constant 1.000000e+00 : f32
    %443 = vector.broadcast %cst_163 : f32 to vector<1x64xf32>
    %444 = arith.addf %443, %442 : vector<1x64xf32>
    %cst_164 = arith.constant 1.000000e+00 : f32
    %445 = vector.broadcast %cst_164 : f32 to vector<1x64xf32>
    %446 = arith.divf %445, %444 : vector<1x64xf32>
    %447 = arith.mulf %436, %412 : vector<1x64xf32>
    %448 = arith.mulf %428, %438 : vector<1x64xf32>
    %449 = arith.addf %447, %448 : vector<1x64xf32>
    %450 = math.tanh %449 : vector<1x64xf32>
    %451 = arith.mulf %446, %450 : vector<1x64xf32>
    %452 = arith.addf %415, %451 : vector<1x64xf32>
    %c12_i32 = arith.constant 12 : i32
    %453 = arith.index_cast %c12_i32 : i32 to index
    %c0_165 = arith.constant 0 : index
    %454 = vector.load %arg8[%453, %c0_165] : memref<16x256xf32, #tpu.memory_space<vmem>>, vector<1x256xf32>
    %c0_166 = arith.constant 0 : index
    %c0_167 = arith.constant 0 : index
    %455 = vector.load %arg3[%c0_166, %c0_167] : memref<64x256xf32, #tpu.memory_space<vmem>>, vector<64x256xf32>
    %cst_168 = arith.constant dense<0.000000e+00> : vector<1x256xf32>
    %456 = tpu.matmul %451, %455, %cst_168 {dimension_numbers = #tpu.dot_dimension_numbers<[1], [0], [0], [1], [0, 0, 1, 1], [], []>} : vector<1x64xf32>, vector<64x256xf32>, vector<1x256xf32> -> vector<1x256xf32>
    %457 = arith.addf %454, %456 : vector<1x256xf32>
    %458 = vector.extract_strided_slice %457 {offsets = [0, 0], sizes = [1, 64], strides = [1, 1]} : vector<1x256xf32> to vector<1x64xf32>
    %cst_169 = arith.constant 0.000000e+00 : f32
    %459 = vector.broadcast %cst_169 : f32 to vector<1x64xf32>
    %460 = arith.subf %459, %458 : vector<1x64xf32>
    %461 = math.exp %460 : vector<1x64xf32>
    %cst_170 = arith.constant 1.000000e+00 : f32
    %462 = vector.broadcast %cst_170 : f32 to vector<1x64xf32>
    %463 = arith.addf %462, %461 : vector<1x64xf32>
    %cst_171 = arith.constant 1.000000e+00 : f32
    %464 = vector.broadcast %cst_171 : f32 to vector<1x64xf32>
    %465 = arith.divf %464, %463 : vector<1x64xf32>
    %466 = vector.extract_strided_slice %457 {offsets = [0, 64], sizes = [1, 64], strides = [1, 1]} : vector<1x256xf32> to vector<1x64xf32>
    %cst_172 = arith.constant 0.000000e+00 : f32
    %467 = vector.broadcast %cst_172 : f32 to vector<1x64xf32>
    %468 = arith.subf %467, %466 : vector<1x64xf32>
    %469 = math.exp %468 : vector<1x64xf32>
    %cst_173 = arith.constant 1.000000e+00 : f32
    %470 = vector.broadcast %cst_173 : f32 to vector<1x64xf32>
    %471 = arith.addf %470, %469 : vector<1x64xf32>
    %cst_174 = arith.constant 1.000000e+00 : f32
    %472 = vector.broadcast %cst_174 : f32 to vector<1x64xf32>
    %473 = arith.divf %472, %471 : vector<1x64xf32>
    %474 = vector.extract_strided_slice %457 {offsets = [0, 128], sizes = [1, 64], strides = [1, 1]} : vector<1x256xf32> to vector<1x64xf32>
    %475 = math.tanh %474 : vector<1x64xf32>
    %476 = vector.extract_strided_slice %457 {offsets = [0, 192], sizes = [1, 64], strides = [1, 1]} : vector<1x256xf32> to vector<1x64xf32>
    %cst_175 = arith.constant 0.000000e+00 : f32
    %477 = vector.broadcast %cst_175 : f32 to vector<1x64xf32>
    %478 = arith.subf %477, %476 : vector<1x64xf32>
    %479 = math.exp %478 : vector<1x64xf32>
    %cst_176 = arith.constant 1.000000e+00 : f32
    %480 = vector.broadcast %cst_176 : f32 to vector<1x64xf32>
    %481 = arith.addf %480, %479 : vector<1x64xf32>
    %cst_177 = arith.constant 1.000000e+00 : f32
    %482 = vector.broadcast %cst_177 : f32 to vector<1x64xf32>
    %483 = arith.divf %482, %481 : vector<1x64xf32>
    %484 = arith.mulf %473, %449 : vector<1x64xf32>
    %485 = arith.mulf %465, %475 : vector<1x64xf32>
    %486 = arith.addf %484, %485 : vector<1x64xf32>
    %487 = math.tanh %486 : vector<1x64xf32>
    %488 = arith.mulf %483, %487 : vector<1x64xf32>
    %489 = arith.addf %452, %488 : vector<1x64xf32>
    %c13_i32 = arith.constant 13 : i32
    %490 = arith.index_cast %c13_i32 : i32 to index
    %c0_178 = arith.constant 0 : index
    %491 = vector.load %arg8[%490, %c0_178] : memref<16x256xf32, #tpu.memory_space<vmem>>, vector<1x256xf32>
    %c0_179 = arith.constant 0 : index
    %c0_180 = arith.constant 0 : index
    %492 = vector.load %arg3[%c0_179, %c0_180] : memref<64x256xf32, #tpu.memory_space<vmem>>, vector<64x256xf32>
    %cst_181 = arith.constant dense<0.000000e+00> : vector<1x256xf32>
    %493 = tpu.matmul %488, %492, %cst_181 {dimension_numbers = #tpu.dot_dimension_numbers<[1], [0], [0], [1], [0, 0, 1, 1], [], []>} : vector<1x64xf32>, vector<64x256xf32>, vector<1x256xf32> -> vector<1x256xf32>
    %494 = arith.addf %491, %493 : vector<1x256xf32>
    %495 = vector.extract_strided_slice %494 {offsets = [0, 0], sizes = [1, 64], strides = [1, 1]} : vector<1x256xf32> to vector<1x64xf32>
    %cst_182 = arith.constant 0.000000e+00 : f32
    %496 = vector.broadcast %cst_182 : f32 to vector<1x64xf32>
    %497 = arith.subf %496, %495 : vector<1x64xf32>
    %498 = math.exp %497 : vector<1x64xf32>
    %cst_183 = arith.constant 1.000000e+00 : f32
    %499 = vector.broadcast %cst_183 : f32 to vector<1x64xf32>
    %500 = arith.addf %499, %498 : vector<1x64xf32>
    %cst_184 = arith.constant 1.000000e+00 : f32
    %501 = vector.broadcast %cst_184 : f32 to vector<1x64xf32>
    %502 = arith.divf %501, %500 : vector<1x64xf32>
    %503 = vector.extract_strided_slice %494 {offsets = [0, 64], sizes = [1, 64], strides = [1, 1]} : vector<1x256xf32> to vector<1x64xf32>
    %cst_185 = arith.constant 0.000000e+00 : f32
    %504 = vector.broadcast %cst_185 : f32 to vector<1x64xf32>
    %505 = arith.subf %504, %503 : vector<1x64xf32>
    %506 = math.exp %505 : vector<1x64xf32>
    %cst_186 = arith.constant 1.000000e+00 : f32
    %507 = vector.broadcast %cst_186 : f32 to vector<1x64xf32>
    %508 = arith.addf %507, %506 : vector<1x64xf32>
    %cst_187 = arith.constant 1.000000e+00 : f32
    %509 = vector.broadcast %cst_187 : f32 to vector<1x64xf32>
    %510 = arith.divf %509, %508 : vector<1x64xf32>
    %511 = vector.extract_strided_slice %494 {offsets = [0, 128], sizes = [1, 64], strides = [1, 1]} : vector<1x256xf32> to vector<1x64xf32>
    %512 = math.tanh %511 : vector<1x64xf32>
    %513 = vector.extract_strided_slice %494 {offsets = [0, 192], sizes = [1, 64], strides = [1, 1]} : vector<1x256xf32> to vector<1x64xf32>
    %cst_188 = arith.constant 0.000000e+00 : f32
    %514 = vector.broadcast %cst_188 : f32 to vector<1x64xf32>
    %515 = arith.subf %514, %513 : vector<1x64xf32>
    %516 = math.exp %515 : vector<1x64xf32>
    %cst_189 = arith.constant 1.000000e+00 : f32
    %517 = vector.broadcast %cst_189 : f32 to vector<1x64xf32>
    %518 = arith.addf %517, %516 : vector<1x64xf32>
    %cst_190 = arith.constant 1.000000e+00 : f32
    %519 = vector.broadcast %cst_190 : f32 to vector<1x64xf32>
    %520 = arith.divf %519, %518 : vector<1x64xf32>
    %521 = arith.mulf %510, %486 : vector<1x64xf32>
    %522 = arith.mulf %502, %512 : vector<1x64xf32>
    %523 = arith.addf %521, %522 : vector<1x64xf32>
    %524 = math.tanh %523 : vector<1x64xf32>
    %525 = arith.mulf %520, %524 : vector<1x64xf32>
    %526 = arith.addf %489, %525 : vector<1x64xf32>
    %c14_i32 = arith.constant 14 : i32
    %527 = arith.index_cast %c14_i32 : i32 to index
    %c0_191 = arith.constant 0 : index
    %528 = vector.load %arg8[%527, %c0_191] : memref<16x256xf32, #tpu.memory_space<vmem>>, vector<1x256xf32>
    %c0_192 = arith.constant 0 : index
    %c0_193 = arith.constant 0 : index
    %529 = vector.load %arg3[%c0_192, %c0_193] : memref<64x256xf32, #tpu.memory_space<vmem>>, vector<64x256xf32>
    %cst_194 = arith.constant dense<0.000000e+00> : vector<1x256xf32>
    %530 = tpu.matmul %525, %529, %cst_194 {dimension_numbers = #tpu.dot_dimension_numbers<[1], [0], [0], [1], [0, 0, 1, 1], [], []>} : vector<1x64xf32>, vector<64x256xf32>, vector<1x256xf32> -> vector<1x256xf32>
    %531 = arith.addf %528, %530 : vector<1x256xf32>
    %532 = vector.extract_strided_slice %531 {offsets = [0, 0], sizes = [1, 64], strides = [1, 1]} : vector<1x256xf32> to vector<1x64xf32>
    %cst_195 = arith.constant 0.000000e+00 : f32
    %533 = vector.broadcast %cst_195 : f32 to vector<1x64xf32>
    %534 = arith.subf %533, %532 : vector<1x64xf32>
    %535 = math.exp %534 : vector<1x64xf32>
    %cst_196 = arith.constant 1.000000e+00 : f32
    %536 = vector.broadcast %cst_196 : f32 to vector<1x64xf32>
    %537 = arith.addf %536, %535 : vector<1x64xf32>
    %cst_197 = arith.constant 1.000000e+00 : f32
    %538 = vector.broadcast %cst_197 : f32 to vector<1x64xf32>
    %539 = arith.divf %538, %537 : vector<1x64xf32>
    %540 = vector.extract_strided_slice %531 {offsets = [0, 64], sizes = [1, 64], strides = [1, 1]} : vector<1x256xf32> to vector<1x64xf32>
    %cst_198 = arith.constant 0.000000e+00 : f32
    %541 = vector.broadcast %cst_198 : f32 to vector<1x64xf32>
    %542 = arith.subf %541, %540 : vector<1x64xf32>
    %543 = math.exp %542 : vector<1x64xf32>
    %cst_199 = arith.constant 1.000000e+00 : f32
    %544 = vector.broadcast %cst_199 : f32 to vector<1x64xf32>
    %545 = arith.addf %544, %543 : vector<1x64xf32>
    %cst_200 = arith.constant 1.000000e+00 : f32
    %546 = vector.broadcast %cst_200 : f32 to vector<1x64xf32>
    %547 = arith.divf %546, %545 : vector<1x64xf32>
    %548 = vector.extract_strided_slice %531 {offsets = [0, 128], sizes = [1, 64], strides = [1, 1]} : vector<1x256xf32> to vector<1x64xf32>
    %549 = math.tanh %548 : vector<1x64xf32>
    %550 = vector.extract_strided_slice %531 {offsets = [0, 192], sizes = [1, 64], strides = [1, 1]} : vector<1x256xf32> to vector<1x64xf32>
    %cst_201 = arith.constant 0.000000e+00 : f32
    %551 = vector.broadcast %cst_201 : f32 to vector<1x64xf32>
    %552 = arith.subf %551, %550 : vector<1x64xf32>
    %553 = math.exp %552 : vector<1x64xf32>
    %cst_202 = arith.constant 1.000000e+00 : f32
    %554 = vector.broadcast %cst_202 : f32 to vector<1x64xf32>
    %555 = arith.addf %554, %553 : vector<1x64xf32>
    %cst_203 = arith.constant 1.000000e+00 : f32
    %556 = vector.broadcast %cst_203 : f32 to vector<1x64xf32>
    %557 = arith.divf %556, %555 : vector<1x64xf32>
    %558 = arith.mulf %547, %523 : vector<1x64xf32>
    %559 = arith.mulf %539, %549 : vector<1x64xf32>
    %560 = arith.addf %558, %559 : vector<1x64xf32>
    %561 = math.tanh %560 : vector<1x64xf32>
    %562 = arith.mulf %557, %561 : vector<1x64xf32>
    %563 = arith.addf %526, %562 : vector<1x64xf32>
    %c15_i32 = arith.constant 15 : i32
    %564 = arith.index_cast %c15_i32 : i32 to index
    %c0_204 = arith.constant 0 : index
    %565 = vector.load %arg8[%564, %c0_204] : memref<16x256xf32, #tpu.memory_space<vmem>>, vector<1x256xf32>
    %c0_205 = arith.constant 0 : index
    %c0_206 = arith.constant 0 : index
    %566 = vector.load %arg3[%c0_205, %c0_206] : memref<64x256xf32, #tpu.memory_space<vmem>>, vector<64x256xf32>
    %cst_207 = arith.constant dense<0.000000e+00> : vector<1x256xf32>
    %567 = tpu.matmul %562, %566, %cst_207 {dimension_numbers = #tpu.dot_dimension_numbers<[1], [0], [0], [1], [0, 0, 1, 1], [], []>} : vector<1x64xf32>, vector<64x256xf32>, vector<1x256xf32> -> vector<1x256xf32>
    %568 = arith.addf %565, %567 : vector<1x256xf32>
    %569 = vector.extract_strided_slice %568 {offsets = [0, 0], sizes = [1, 64], strides = [1, 1]} : vector<1x256xf32> to vector<1x64xf32>
    %cst_208 = arith.constant 0.000000e+00 : f32
    %570 = vector.broadcast %cst_208 : f32 to vector<1x64xf32>
    %571 = arith.subf %570, %569 : vector<1x64xf32>
    %572 = math.exp %571 : vector<1x64xf32>
    %cst_209 = arith.constant 1.000000e+00 : f32
    %573 = vector.broadcast %cst_209 : f32 to vector<1x64xf32>
    %574 = arith.addf %573, %572 : vector<1x64xf32>
    %cst_210 = arith.constant 1.000000e+00 : f32
    %575 = vector.broadcast %cst_210 : f32 to vector<1x64xf32>
    %576 = arith.divf %575, %574 : vector<1x64xf32>
    %577 = vector.extract_strided_slice %568 {offsets = [0, 64], sizes = [1, 64], strides = [1, 1]} : vector<1x256xf32> to vector<1x64xf32>
    %cst_211 = arith.constant 0.000000e+00 : f32
    %578 = vector.broadcast %cst_211 : f32 to vector<1x64xf32>
    %579 = arith.subf %578, %577 : vector<1x64xf32>
    %580 = math.exp %579 : vector<1x64xf32>
    %cst_212 = arith.constant 1.000000e+00 : f32
    %581 = vector.broadcast %cst_212 : f32 to vector<1x64xf32>
    %582 = arith.addf %581, %580 : vector<1x64xf32>
    %cst_213 = arith.constant 1.000000e+00 : f32
    %583 = vector.broadcast %cst_213 : f32 to vector<1x64xf32>
    %584 = arith.divf %583, %582 : vector<1x64xf32>
    %585 = vector.extract_strided_slice %568 {offsets = [0, 128], sizes = [1, 64], strides = [1, 1]} : vector<1x256xf32> to vector<1x64xf32>
    %586 = math.tanh %585 : vector<1x64xf32>
    %587 = vector.extract_strided_slice %568 {offsets = [0, 192], sizes = [1, 64], strides = [1, 1]} : vector<1x256xf32> to vector<1x64xf32>
    %cst_214 = arith.constant 0.000000e+00 : f32
    %588 = vector.broadcast %cst_214 : f32 to vector<1x64xf32>
    %589 = arith.subf %588, %587 : vector<1x64xf32>
    %590 = math.exp %589 : vector<1x64xf32>
    %cst_215 = arith.constant 1.000000e+00 : f32
    %591 = vector.broadcast %cst_215 : f32 to vector<1x64xf32>
    %592 = arith.addf %591, %590 : vector<1x64xf32>
    %cst_216 = arith.constant 1.000000e+00 : f32
    %593 = vector.broadcast %cst_216 : f32 to vector<1x64xf32>
    %594 = arith.divf %593, %592 : vector<1x64xf32>
    %595 = arith.mulf %584, %560 : vector<1x64xf32>
    %596 = arith.mulf %576, %586 : vector<1x64xf32>
    %597 = arith.addf %595, %596 : vector<1x64xf32>
    %598 = math.tanh %597 : vector<1x64xf32>
    %599 = arith.mulf %594, %598 : vector<1x64xf32>
    %600 = arith.addf %563, %599 : vector<1x64xf32>
    %c16_i32 = arith.constant 16 : i32
    %cst_217 = arith.constant 6.250000e-02 : f32
    %601 = vector.broadcast %cst_217 : f32 to vector<1x64xf32>
    %602 = arith.mulf %600, %601 : vector<1x64xf32>
    %c0_218 = arith.constant 0 : index
    %c0_219 = arith.constant 0 : index
    %603 = vector.load %arg5[%c0_218, %c0_219] : memref<64x2xf32, #tpu.memory_space<vmem>>, vector<64x2xf32>
    %cst_220 = arith.constant dense<0.000000e+00> : vector<1x2xf32>
    %604 = tpu.matmul %602, %603, %cst_220 {dimension_numbers = #tpu.dot_dimension_numbers<[1], [0], [0], [1], [0, 0, 1, 1], [], []>} : vector<1x64xf32>, vector<64x2xf32>, vector<1x2xf32> -> vector<1x2xf32>
    %c0_221 = arith.constant 0 : index
    %c0_222 = arith.constant 0 : index
    %605 = vector.load %arg6[%c0_221, %c0_222] : memref<1x2xf32, #tpu.memory_space<vmem>>, vector<1x2xf32>
    %606 = arith.addf %604, %605 : vector<1x2xf32>
    %607 = vector.shape_cast %606 : vector<1x2xf32> to vector<1x1x2xf32>
    %c0_223 = arith.constant 0 : index
    %c0_224 = arith.constant 0 : index
    %c0_225 = arith.constant 0 : index
    %608 = vector.load %arg7[%c0_223, %c0_224, %c0_225] : memref<1x1x2xf32, #tpu.memory_space<vmem>>, vector<1x1x2xf32>
    tpu.vector_store %arg7[%c0_223, %c0_224, %c0_225], %607 {strides = array<i32>} : memref<1x1x2xf32, #tpu.memory_space<vmem>>, vector<1x1x2xf32>,
    return
  }
  func.func @transform_0(%arg0: i32) -> (i32, i32, i32) {
    %c0_i32 = arith.constant 0 : i32
    %c0_i32_0 = arith.constant 0 : i32
    %c0_i32_1 = arith.constant 0 : i32
    return %arg0, %c0_i32, %c0_i32_0 : i32, i32, i32
  }
  func.func @transform_1(%arg0: i32) -> (i32, i32) {
    %c0_i32 = arith.constant 0 : i32
    %c0_i32_0 = arith.constant 0 : i32
    %c0_i32_1 = arith.constant 0 : i32
    return %c0_i32, %c0_i32_0 : i32, i32
  }
  func.func @transform_2(%arg0: i32) -> (i32, i32) {
    %c0_i32 = arith.constant 0 : i32
    %c0_i32_0 = arith.constant 0 : i32
    %c0_i32_1 = arith.constant 0 : i32
    return %c0_i32, %c0_i32_0 : i32, i32
  }
  func.func @transform_3(%arg0: i32) -> (i32, i32) {
    %c0_i32 = arith.constant 0 : i32
    %c0_i32_0 = arith.constant 0 : i32
    %c0_i32_1 = arith.constant 0 : i32
    return %c0_i32, %c0_i32_0 : i32, i32
  }
  func.func @transform_4(%arg0: i32) -> (i32, i32) {
    %c0_i32 = arith.constant 0 : i32
    %c0_i32_0 = arith.constant 0 : i32
    %c0_i32_1 = arith.constant 0 : i32
    return %c0_i32, %c0_i32_0 : i32, i32
  }
  func.func @transform_5(%arg0: i32) -> (i32, i32) {
    %c0_i32 = arith.constant 0 : i32
    %c0_i32_0 = arith.constant 0 : i32
    %c0_i32_1 = arith.constant 0 : i32
    return %c0_i32, %c0_i32_0 : i32, i32
  }
  func.func @transform_6(%arg0: i32) -> (i32, i32, i32) {
    %c0_i32 = arith.constant 0 : i32
    %c0_i32_0 = arith.constant 0 : i32
    %c0_i32_1 = arith.constant 0 : i32
    return %arg0, %c0_i32, %c0_i32_0 : i32, i32, i32
  }
}

</mosaic_0001>

<llo_original>
// kernel: tpu_custom_call.1
$region0: #{tpu_custom_call.1}
  #allocation0 [shape = 'u32[]', space=smem, size = 0x4, offset = 0x4, fixed_abs, tag = 'smem constant byte address 0x4 - core index']
  #allocation1 [shape = 'u32[144,128]{1,0:T(1,128)}', space=vmem, size = 0x12000, scoped, tag = 'internal scratch']
  #allocation2 [shape = 'f32[16,256]{1,0:T(8,128)}', space=vmem, size = 0x4000, scoped, tag = 'scratch operand']
  %s0 = inlined_call_operand.hbm [shape: f32[2,16,23], index: 0, kind: input, shape index: {}]
  %s1 = inlined_call_operand.vmem [shape: f32[23,256], index: 1, kind: input, shape index: {}]
  %s2 = inlined_call_operand.hbm [shape: f32[64,256], index: 2, kind: input, shape index: {}]
  %s3 = inlined_call_operand.vmem [shape: f32[1,256], index: 3, kind: input, shape index: {}]
  %s4 = inlined_call_operand.vmem [shape: f32[64,2], index: 4, kind: input, shape index: {}]
  %s5 = inlined_call_operand.vmem [shape: f32[1,2], index: 5, kind: input, shape index: {}]
  %s6 = inlined_call_operand.hbm [shape: f32[2,1,2], index: 6, kind: output, shape index: {}]
  %s7 = sld [smem:[#allocation0]]
  $region65: #{tpu_custom_call.1} parent=0
    _
  %s9 = ssub.s32 1, %s7
  %s10 = scalar_select 0, %s9, %s7
  $region1: #{tpu_custom_call.1} parent=0
    #allocation3 [shape = 'u8[16384]{0}', space=vmem, size = 0x4000, scoped, tag = 'input window, operand 0']
    #allocation4 [shape = 's32[2]{0}', space=sflag, size = 0x8, scoped, tag = 'scoped memory for tpu_custom_call.1']
    #allocation5 [shape = 's32[2]{0}', space=sflag, size = 0x8, scoped, tag = 'scoped memory for tpu_custom_call.1']
    #allocation6 [shape = 'u8[65536]{0}', space=vmem, size = 0x10000, scoped, tag = 'input window, operand 2, single buffered']
    #allocation7 [shape = 's32[1]{0}', space=sflag, size = 0x4, scoped, tag = 'scoped memory for tpu_custom_call.1']
    #allocation8 [shape = 'u8[1024]{0}', space=vmem, size = 0x400, scoped, tag = 'output window, operand 0']
    %11 = vsyncpa [#allocation4], 0
    %s12 = scalar_lea.sflag [#allocation4], 1
    %13 = vsyncpa %s12, 0
    %14 = vsyncpa [#allocation7], 0
    %15 = vsyncpa [#allocation5], 0
    %s16 = scalar_lea.sflag [#allocation5], 1
    %17 = vsyncpa %s16, 0
    loop: start=0, step=1, limit=4
    $region2: #{tpu_custom_call.1} parent=1 // loop_pre_header
      _
    $region3: #{tpu_custom_call.1} parent=1 // loop_header
      %s19 = sphi 0, %s23
      %p20 = scmp.ge.s32.totalorder %s19, 4
      %s29 = sphi 0, %s31
      %s32 = sphi 0, %s29
      %s33 = sphi 0, %s32
      %s49 = sphi 0, %s33
      %s53 = sphi 0, %s53
      %s55 = sphi 0, %s53
      %s56 = sphi 0, %s55
      %s70 = sphi 0, %s56
      %s74 = sphi 0, %s74
      %s76 = sphi 0, %s74
      %s77 = sphi 0, %s76
      %s91 = sphi 0, %s77
      %s95 = sphi 0, %s95
      %s97 = sphi 0, %s95
      %s98 = sphi 0, %s97
      %s112 = sphi 0, %s98
      %s116 = sphi 0, %s116
      %s118 = sphi 0, %s116
      %s119 = sphi 0, %s118
      %s133 = sphi 0, %s119
      %s137 = sphi 0, %s137
      %s139 = sphi 0, %s137
      %s140 = sphi 0, %s139
      %s154 = sphi 0, %s140
      %s160 = sphi 0, %s162
      %s163 = sphi 0, %s160
      %s164 = sphi 0, %s163
      %s180 = sphi 0, %s164
    $region4: #{tpu_custom_call.1} parent=1 // loop_header_branch
      %22 = sbr.rel (%p20) target = $region8
    $region5: #{tpu_custom_call.1} parent=1 // loop_body
      %s24 = ssub.s32 %s19, 1
      %s25 = ssub.s32 %s19, 2
      %s26 = sadd.s32 %s19, 1
      %s27 = ssub.s32 %s19, %s26
      %p28 = scmp.eq.s32.totalorder %s27, 0
      %s30 = sadd.s32 %s29, 1
      %s31 = scalar_select %p28, %s29, %s30
      %p34 = pneg %p28
      %p35 = scmp.eq.s32.totalorder %s19, 1
      %p36 = por %p34, %p35
      %p37 = scmp.ne.s32.totalorder %s29, %s32
      %p38 = scmp.eq.s32.totalorder %s19, 0
      %p39 = por %p37, %p38
      %p40 = scmp.ne.s32.totalorder %s29, %s32
      %p41 = scmp.eq.s32.totalorder %s24, 1
      %p42 = por %p40, %p41
      %p43 = scmp.ne.s32.totalorder %s32, %s33
      %p44 = scmp.eq.s32.totalorder %s24, 0
      %p45 = por %p43, %p44
      %p46 = scmp.ne.s32.totalorder %s32, %s33
      %p47 = scmp.eq.s32.totalorder %s25, 1
      %p48 = por %p46, %p47
      %p50 = scmp.ne.s32.totalorder %s33, %s49
      %p51 = scmp.eq.s32.totalorder %s25, 0
      %p52 = por %p50, %p51
      %s54 = sadd.s32 %s53, 1
      %p57 = scmp.eq.s32.totalorder %s19, 1
      %p58 = scmp.ne.s32.totalorder %s53, %s55
      %p59 = scmp.eq.s32.totalorder %s19, 0
      %p60 = por %p58, %p59
      %p61 = scmp.ne.s32.totalorder %s53, %s55
      %p62 = scmp.eq.s32.totalorder %s24, 1
      %p63 = por %p61, %p62
      %p64 = scmp.ne.s32.totalorder %s55, %s56
      %p65 = scmp.eq.s32.totalorder %s24, 0
      %p66 = por %p64, %p65
      %p67 = scmp.ne.s32.totalorder %s55, %s56
      %p68 = scmp.eq.s32.totalorder %s25, 1
      %p69 = por %p67, %p68
      %p71 = scmp.ne.s32.totalorder %s56, %s70
      %p72 = scmp.eq.s32.totalorder %s25, 0
      %p73 = por %p71, %p72
      %s75 = sadd.s32 %s74, 1
      %p78 = scmp.eq.s32.totalorder %s19, 1
      %p79 = scmp.ne.s32.totalorder %s74, %s76
      %p80 = scmp.eq.s32.totalorder %s19, 0
      %p81 = por %p79, %p80
      %p82 = scmp.ne.s32.totalorder %s74, %s76
      %p83 = scmp.eq.s32.totalorder %s24, 1
      %p84 = por %p82, %p83
      %p85 = scmp.ne.s32.totalorder %s76, %s77
      %p86 = scmp.eq.s32.totalorder %s24, 0
      %p87 = por %p85, %p86
      %p88 = scmp.ne.s32.totalorder %s76, %s77
      %p89 = scmp.eq.s32.totalorder %s25, 1
      %p90 = por %p88, %p89
      %p92 = scmp.ne.s32.totalorder %s77, %s91
      %p93 = scmp.eq.s32.totalorder %s25, 0
      %p94 = por %p92, %p93
      %s96 = sadd.s32 %s95, 1
      %p99 = scmp.eq.s32.totalorder %s19, 1
      %p100 = scmp.ne.s32.totalorder %s95, %s97
      %p101 = scmp.eq.s32.totalorder %s19, 0
      %p102 = por %p100, %p101
      %p103 = scmp.ne.s32.totalorder %s95, %s97
      %p104 = scmp.eq.s32.totalorder %s24, 1
      %p105 = por %p103, %p104
      %p106 = scmp.ne.s32.totalorder %s97, %s98
      %p107 = scmp.eq.s32.totalorder %s24, 0
      %p108 = por %p106, %p107
      %p109 = scmp.ne.s32.totalorder %s97, %s98
      %p110 = scmp.eq.s32.totalorder %s25, 1
      %p111 = por %p109, %p110
      %p113 = scmp.ne.s32.totalorder %s98, %s112
      %p114 = scmp.eq.s32.totalorder %s25, 0
      %p115 = por %p113, %p114
      %s117 = sadd.s32 %s116, 1
      %p120 = scmp.eq.s32.totalorder %s19, 1
      %p121 = scmp.ne.s32.totalorder %s116, %s118
      %p122 = scmp.eq.s32.totalorder %s19, 0
      %p123 = por %p121, %p122
      %p124 = scmp.ne.s32.totalorder %s116, %s118
      %p125 = scmp.eq.s32.totalorder %s24, 1
      %p126 = por %p124, %p125
      %p127 = scmp.ne.s32.totalorder %s118, %s119
      %p128 = scmp.eq.s32.totalorder %s24, 0
      %p129 = por %p127, %p128
      %p130 = scmp.ne.s32.totalorder %s118, %s119
      %p131 = scmp.eq.s32.totalorder %s25, 1
      %p132 = por %p130, %p131
      %p134 = scmp.ne.s32.totalorder %s119, %s133
      %p135 = scmp.eq.s32.totalorder %s25, 0
      %p136 = por %p134, %p135
      %s138 = sadd.s32 %s137, 1
      %p141 = scmp.eq.s32.totalorder %s19, 1
      %p142 = scmp.ne.s32.totalorder %s137, %s139
      %p143 = scmp.eq.s32.totalorder %s19, 0
      %p144 = por %p142, %p143
      %p145 = scmp.ne.s32.totalorder %s137, %s139
      %p146 = scmp.eq.s32.totalorder %s24, 1
      %p147 = por %p145, %p146
      %p148 = scmp.ne.s32.totalorder %s139, %s140
      %p149 = scmp.eq.s32.totalorder %s24, 0
      %p150 = por %p148, %p149
      %p151 = scmp.ne.s32.totalorder %s139, %s140
      %p152 = scmp.eq.s32.totalorder %s25, 1
      %p153 = por %p151, %p152
      %p155 = scmp.ne.s32.totalorder %s140, %s154
      %p156 = scmp.eq.s32.totalorder %s25, 0
      %p157 = por %p155, %p156
      %s158 = ssub.s32 %s19, %s26
      %p159 = scmp.eq.s32.totalorder %s158, 0
      %s161 = sadd.s32 %s160, 1
      %s162 = scalar_select %p159, %s160, %s161
      %p165 = pneg %p159
      %p166 = scmp.eq.s32.totalorder %s19, 1
      %p167 = por %p165, %p166
      %p168 = scmp.ne.s32.totalorder %s160, %s163
      %p169 = scmp.eq.s32.totalorder %s19, 0
      %p170 = por %p168, %p169
      %p171 = scmp.ne.s32.totalorder %s160, %s163
      %p172 = scmp.eq.s32.totalorder %s24, 1
      %p173 = por %p171, %p172
      %p174 = scmp.ne.s32.totalorder %s163, %s164
      %p175 = scmp.eq.s32.totalorder %s24, 0
      %p176 = por %p174, %p175
      %p177 = scmp.ne.s32.totalorder %s163, %s164
      %p178 = scmp.eq.s32.totalorder %s25, 1
      %p179 = por %p177, %p178
      %p181 = scmp.ne.s32.totalorder %s164, %s180
      %p182 = scmp.eq.s32.totalorder %s25, 0
      %p183 = por %p181, %p182
      %p184 = scmp.le.s32.totalorder 1, %s19
      %p185 = scmp.lt.s32.totalorder %s19, 3
      %p186 = pnand %p184, %p185
      %p187 = pneg %p186
      // Predicated region
      $region9: #{tpu_custom_call.1} parent=5 // pred_check
        _
      $region10: #{tpu_custom_call.1} parent=5 // pred_check_branch
        %189 = sbr.rel (%p186) target = $region12
      $region11: #{tpu_custom_call.1} parent=5 // pred_region
        %s190 = ssub.s32 %s19, 1
        // Predicated region
        $region13: #{tpu_custom_call.1} parent=11 // pred_check
          %p191 = pneg %p66
        $region14: #{tpu_custom_call.1} parent=11 // pred_check_branch
          %193 = sbr.rel (%p191) target = $region16
        $region15: #{tpu_custom_call.1} parent=11 // pred_region
          _
        $region16: #{tpu_custom_call.1} parent=11 // pred_fallthru
          _
        // Predicated region
        $region17: #{tpu_custom_call.1} parent=11 // pred_check
          %p194 = pneg %p87
        $region18: #{tpu_custom_call.1} parent=11 // pred_check_branch
          %196 = sbr.rel (%p194) target = $region20
        $region19: #{tpu_custom_call.1} parent=11 // pred_region
          %s198 = ssub.s32 2048, 2048
          %199 = vsyncadd [#allocation7], %s198
          %s200 = sshll.u32 [#allocation6], 4
          %s201 = int_to_ptr.vmem [resolvable:$true] %s200
          %206 = dma.hbm_to_vmem [thread:$0]  %s2, 2048, %s201, [#allocation7], 256, 256, 16
        $region20: #{tpu_custom_call.1} parent=11 // pred_fallthru
          _
        // Predicated region
        $region21: #{tpu_custom_call.1} parent=11 // pred_check
          %p207 = pneg %p108
        $region22: #{tpu_custom_call.1} parent=11 // pred_check_branch
          %209 = sbr.rel (%p207) target = $region24
        $region23: #{tpu_custom_call.1} parent=11 // pred_region
          _
        $region24: #{tpu_custom_call.1} parent=11 // pred_fallthru
          _
        // Predicated region
        $region25: #{tpu_custom_call.1} parent=11 // pred_check
          %p210 = pneg %p129
        $region26: #{tpu_custom_call.1} parent=11 // pred_check_branch
          %212 = sbr.rel (%p210) target = $region28
        $region27: #{tpu_custom_call.1} parent=11 // pred_region
          _
        $region28: #{tpu_custom_call.1} parent=11 // pred_fallthru
          _
        // Predicated region
        $region29: #{tpu_custom_call.1} parent=11 // pred_check
          %p213 = pneg %p150
        $region30: #{tpu_custom_call.1} parent=11 // pred_check_branch
          %215 = sbr.rel (%p213) target = $region32
        $region31: #{tpu_custom_call.1} parent=11 // pred_region
          _
        $region32: #{tpu_custom_call.1} parent=11 // pred_fallthru
          _
      $region12: #{tpu_custom_call.1} parent=5 // pred_fallthru
        _
      %p216 = scmp.lt.s32.totalorder %s19, 2
      // Predicated region
      $region33: #{tpu_custom_call.1} parent=5 // pred_check
        %p217 = pneg %p216
      $region34: #{tpu_custom_call.1} parent=5 // pred_check_branch
        %219 = sbr.rel (%p217) target = $region36
      $region35: #{tpu_custom_call.1} parent=5 // pred_region
        // Predicated region
        $region37: #{tpu_custom_call.1} parent=35 // pred_check
          %p220 = pneg %p39
        $region38: #{tpu_custom_call.1} parent=35 // pred_check_branch
          %222 = sbr.rel (%p220) target = $region40
        $region39: #{tpu_custom_call.1} parent=35 // pred_region
          %s223 = sand.u32 %s29, 1
          %s224 = scalar_lea.sflag [#allocation4], %s223
          %s225 = sand.u32 %s29, 1
          %s226 = smul.addr %s225, 16
          %s227 = scalar_lea.vmem [#allocation3], %s226
          %s229 = ssub.s32 256, 256
          %230 = vsyncadd %s224, %s229
          %s231 = smul.addr %s19, 2
          %s232 = smul.addr %s231, 128
          %s233 = scalar_lea.hbm %s0, %s232
          %s234 = sshll.u32 %s227, 4
          %s235 = int_to_ptr.vmem [resolvable:$true] %s234
          %240 = dma.hbm_to_vmem [thread:$0]  %s233, 256, %s235, %s224, 128, 128, 8
        $region40: #{tpu_custom_call.1} parent=35 // pred_fallthru
          _
      $region36: #{tpu_custom_call.1} parent=5 // pred_fallthru
        _
      %p241 = scmp.le.s32.totalorder 1, %s19
      %p242 = scmp.lt.s32.totalorder %s19, 3
      %p243 = pnand %p241, %p242
      %p244 = pneg %p243
      // Predicated region
      $region41: #{tpu_custom_call.1} parent=5 // pred_check
        _
      $region42: #{tpu_custom_call.1} parent=5 // pred_check_branch
        %246 = sbr.rel (%p243) target = $region44
      $region43: #{tpu_custom_call.1} parent=5 // pred_region
        %s247 = ssub.s32 %s19, 1
        %s248 = sand.u32 %s32, 1
        %s249 = scalar_lea.sflag [#allocation4], %s248
        %s250 = sand.u32 %s32, 1
        %s251 = smul.addr %s250, 16
        %s252 = scalar_lea.vmem [#allocation3], %s251
        // Predicated region
        $region45: #{tpu_custom_call.1} parent=43 // pred_check
          %p253 = pneg %p45
        $region46: #{tpu_custom_call.1} parent=43 // pred_check_branch
          %255 = sbr.rel (%p253) target = $region48
        $region47: #{tpu_custom_call.1} parent=43 // pred_region
          %256 = dma.done %s249, 256
        $region48: #{tpu_custom_call.1} parent=43 // pred_fallthru
          _
        // Predicated region
        $region49: #{tpu_custom_call.1} parent=43 // pred_check
          %p257 = pneg %p87
        $region50: #{tpu_custom_call.1} parent=43 // pred_check_branch
          %259 = sbr.rel (%p257) target = $region52
        $region51: #{tpu_custom_call.1} parent=43 // pred_region
          %260 = dma.done [#allocation7], 2048
        $region52: #{tpu_custom_call.1} parent=43 // pred_fallthru
          _
        %s261 = sand.u32 %s32, 1
        %s262 = scalar_lea.sflag [#allocation4], %s261
        %s263 = sand.u32 %s32, 1
        %s264 = smul.addr %s263, 16
        %s265 = scalar_lea.vmem [#allocation3], %s264
        %p266 = pneg %p45
        %p267 = pneg %p42
        %p268 = pneg %p66
        %p269 = pneg %p63
        %p270 = pneg %p87
        %p271 = pneg %p84
        %p272 = pneg %p108
        %p273 = pneg %p105
        %p274 = pneg %p129
        %p275 = pneg %p126
        %p276 = pneg %p150
        %p277 = pneg %p147
        %p278 = pneg %p176
        %p279 = pneg %p173
        %s280 = sand.u32 %s163, 1
        %s281 = scalar_lea.sflag [#allocation5], %s280
        %s282 = sand.u32 %s163, 1
        %s283 = scalar_lea.vmem [#allocation8], %s282
        %v284 = vld [vmem:[%s252] sm:$0xff]
        %v285 = vld [vmem:[%s252 + $0x8] sm:$0xff]
        %v286 = vld [vmem:[%s1] sm:$0xff]
        %v287 = vld [vmem:[%s1 + $0x8] sm:$0xff]
        %v288 = vld [vmem:[%s1 + $0x10] sm:$0xff]
        %v289 = vld [vmem:[%s1 + $0x18] sm:$0xff]
        %v290 = vld [vmem:[%s1 + $0x20] sm:$0x7f]
        %v291 = vld [vmem:[%s1 + $0x28] sm:$0x7f]
        %v292 = vld [vmem:[%s3] sm:$0x3]
        %v294 = vlaneseq
        %v295 = vshrl.u32 %v294, 7
        %v296 = vsub.s32 0, %v295
        %v297 = vrot.slane %v292, %v296
        %v298 = vlaneseq
        %v299 = vshrl.u32 %v298, 7
        %v300 = vsub.s32 1, %v299
        %v301 = vrot.slane %v292, %v300
        %vm304 = vcmask 187392
        %v306 = vsel %vm304, %v284, 0
        %v309 = vsel %vm304, %v285, 0
        %vm311 = vcmask 1046528
        %v313 = vsel %vm311, %v290, 0
        %v316 = vsel %vm311, %v291, 0
        %318 = vmatprep.subr.mxu0 %v287
        %319 = vmatpush1.msra.mxu0 %v286
        %320 = vmatprep.subr.mxu0 %v289
        %321 = vmatpush1.msra.mxu0 %v288
        %322 = vmatprep.subr.mxu0 %v316
        %323 = vmatpush1.msra.mxu0 %v313
        %324 = vmatprep.subr.mxu0 0.0
        %325 = vmatpush1.msra.mxu0 0.0
        %326 = vmatprep.subr.mxu0 0.0
        %327 = vmatpush1.msra.mxu0 0.0
        %328 = vmatprep.subr.mxu0 0.0
        %329 = vmatpush1.msra.mxu0 0.0
        %330 = vmatprep.subr.mxu0 0.0
        %331 = vmatpush1.msra.mxu0 0.0
        %332 = vmatprep.subr.mxu0 0.0
        %333 = vmatpush1.msra.mxu0 0.0
        %334 = vmatprep.subr.mxu0 0.0
        %335 = vmatpush1.msra.mxu0 0.0
        %336 = vmatprep.subr.mxu0 0.0
        %337 = vmatpush1.msra.mxu0 0.0
        %338 = vmatprep.subr.mxu0 0.0
        %339 = vmatpush1.msra.mxu0 0.0
        %340 = vmatprep.subr.mxu0 0.0
        %341 = vmatpush1.msra.mxu0 0.0
        %342 = vmatprep.subr.mxu0 0.0
        %343 = vmatpush1.msra.mxu0 0.0
        %344 = vmatprep.subr.mxu0 0.0
        %345 = vmatpush1.msra.mxu0 0.0
        %346 = vmatprep.subr.mxu0 0.0
        %347 = vmatpush1.msra.mxu0 0.0
        %348 = vmatprep.subr.mxu0 0.0
        %349 = vmatpush1.msra.mxu0 0.0
        %350 = vmatprep.subr.mxu0 0.0
        %351 = vmatpush1.msra.mxu0 0.0
        %352 = vmatprep.subr.mxu0 0.0
        %353 = vmatpush1.msra.mxu0 0.0
        %354 = vmatprep.subr.mxu0 0.0
        %355 = vmatpush1.msra.mxu0 0.0
        %356 = vmatprep.subr.mxu0 0.0
        %357 = vmatpush1.msra.mxu0 0.0
        %358 = vmatprep.subr.mxu0 0.0
        %359 = vmatpush1.msra.mxu0 0.0
        %360 = vmatprep.subr.mxu0 0.0
        %361 = vmatpush1.msra.mxu0 0.0
        %362 = vmatprep.subr.mxu0 0.0
        %363 = vmatpush1.msra.mxu0 0.0
        %364 = vmatprep.subr.mxu0 0.0
        %365 = vmatpush1.msra.mxu0 0.0
        %366 = vmatprep.subr.mxu0 0.0
        %367 = vmatpush1.msra.mxu0 0.0
        %368 = vmatprep.subr.mxu0 0.0
        %369 = vmatpush1.msra.mxu0 0.0
        %370 = vmatprep.subr.mxu0 0.0
        %371 = vmatpush1.msra.mxu0 0.0
        %372 = vmatprep.subr.mxu0 0.0
        %373 = vmatpush1.msra.mxu0 0.0
        %374 = vmatprep.subr.mxu0 0.0
        %375 = vmatpush1.msra.mxu0 0.0
        %376 = vmatprep.subr.mxu0 0.0
        %377 = vmatpush1.msra.mxu0 0.0
        %378 = vmatprep.subr.mxu0 0.0
        %379 = vmatpush1.msra.mxu0 0.0
        %380 = vmatprep.subr.mxu0 0.0
        %381 = vmatpush1.msra.mxu0 0.0
        %382 = vmatprep.mubr.f32.mxu0 0.0
        %383 = vmatmul.mubr.f32.gmra.mrb[0].mxu0 %v306
        %v384 = vpop.f32.mrb[0].mxu0
        %v385 = vadd.f32 %v297, %v384
        %v386 = vpop.f32.mrb[0].mxu0
        %v387 = vadd.f32 %v301, %v386
        %388 = vmatprep.mubr.f32.mxu0 0.0
        %389 = vmatmul.mubr.f32.gmra.mrb[0].mxu0 %v309
        %v390 = vpop.f32.mrb[0].mxu0
        %v391 = vadd.f32 %v297, %v390
        %v392 = vpop.f32.mrb[0].mxu0
        %v393 = vadd.f32 %v301, %v392
        %394 = vdwg.mxu0
        %395 = vst [vmem:[#allocation2] sm:$0xff] %v385
        %396 = vst [vmem:[#allocation2 + $0x8] sm:$0xff] %v387
        %397 = vst [vmem:[#allocation2 + $0x10] sm:$0xff] %v391
        %398 = vst [vmem:[#allocation2 + $0x18] sm:$0xff] %v393
        %v399 = vld [vmem:[#allocation2] ss:$8 sm:$0x3]
        %v400 = vld [vmem:[#allocation6] sm:$0xff]
        %v401 = vld [vmem:[#allocation6 + $0x8] sm:$0xff]
        %v402 = vld [vmem:[#allocation6 + $0x10] sm:$0xff]
        %v403 = vld [vmem:[#allocation6 + $0x18] sm:$0xff]
        %v404 = vld [vmem:[#allocation6 + $0x20] sm:$0xff]
        %v405 = vld [vmem:[#allocation6 + $0x28] sm:$0xff]
        %v406 = vld [vmem:[#allocation6 + $0x30] sm:$0xff]
        %v407 = vld [vmem:[#allocation6 + $0x38] sm:$0xff]
        %v408 = vld [vmem:[#allocation6 + $0x40] sm:$0xff]
        %v409 = vld [vmem:[#allocation6 + $0x48] sm:$0xff]
        %v410 = vld [vmem:[#allocation6 + $0x50] sm:$0xff]
        %v411 = vld [vmem:[#allocation6 + $0x58] sm:$0xff]
        %v412 = vld [vmem:[#allocation6 + $0x60] sm:$0xff]
        %v413 = vld [vmem:[#allocation6 + $0x68] sm:$0xff]
        %v414 = vld [vmem:[#allocation6 + $0x70] sm:$0xff]
        %v415 = vld [vmem:[#allocation6 + $0x78] sm:$0xff]
        %vm416 = vcmask 523264
        %v418 = vsel %vm416, 0.0, 0
        %420 = vmatprep.subr.mxu0 %v401
        %421 = vmatpush1.msra.mxu0 %v400
        %422 = vmatprep.subr.mxu0 %v403
        %423 = vmatpush1.msra.mxu0 %v402
        %424 = vmatprep.subr.mxu0 %v405
        %425 = vmatpush1.msra.mxu0 %v404
        %426 = vmatprep.subr.mxu0 %v407
        %427 = vmatpush1.msra.mxu0 %v406
        %428 = vmatprep.subr.mxu0 %v409
        %429 = vmatpush1.msra.mxu0 %v408
        %430 = vmatprep.subr.mxu0 %v411
        %431 = vmatpush1.msra.mxu0 %v410
        %432 = vmatprep.subr.mxu0 %v413
        %433 = vmatpush1.msra.mxu0 %v412
        %434 = vmatprep.subr.mxu0 %v415
        %435 = vmatpush1.msra.mxu0 %v414
        %436 = vmatprep.subr.mxu0 0.0
        %437 = vmatpush1.msra.mxu0 0.0
        %438 = vmatprep.subr.mxu0 0.0
        %439 = vmatpush1.msra.mxu0 0.0
        %440 = vmatprep.subr.mxu0 0.0
        %441 = vmatpush1.msra.mxu0 0.0
        %442 = vmatprep.subr.mxu0 0.0
        %443 = vmatpush1.msra.mxu0 0.0
        %444 = vmatprep.subr.mxu0 0.0
        %445 = vmatpush1.msra.mxu0 0.0
        %446 = vmatprep.subr.mxu0 0.0
        %447 = vmatpush1.msra.mxu0 0.0
        %448 = vmatprep.subr.mxu0 0.0
        %449 = vmatpush1.msra.mxu0 0.0
        %450 = vmatprep.subr.mxu0 0.0
        %451 = vmatpush1.msra.mxu0 0.0
        %452 = vmatprep.subr.mxu0 0.0
        %453 = vmatpush1.msra.mxu0 0.0
        %454 = vmatprep.subr.mxu0 0.0
        %455 = vmatpush1.msra.mxu0 0.0
        %456 = vmatprep.subr.mxu0 0.0
        %457 = vmatpush1.msra.mxu0 0.0
        %458 = vmatprep.subr.mxu0 0.0
        %459 = vmatpush1.msra.mxu0 0.0
        %460 = vmatprep.subr.mxu0 0.0
        %461 = vmatpush1.msra.mxu0 0.0
        %462 = vmatprep.subr.mxu0 0.0
        %463 = vmatpush1.msra.mxu0 0.0
        %464 = vmatprep.subr.mxu0 0.0
        %465 = vmatpush1.msra.mxu0 0.0
        %466 = vmatprep.subr.mxu0 0.0
        %467 = vmatpush1.msra.mxu0 0.0
        %468 = vmatprep.subr.mxu0 0.0
        %469 = vmatpush1.msra.mxu0 0.0
        %470 = vmatprep.subr.mxu0 0.0
        %471 = vmatpush1.msra.mxu0 0.0
        %472 = vmatprep.subr.mxu0 0.0
        %473 = vmatpush1.msra.mxu0 0.0
        %474 = vmatprep.subr.mxu0 0.0
        %475 = vmatpush1.msra.mxu0 0.0
        %476 = vmatprep.subr.mxu0 0.0
        %477 = vmatpush1.msra.mxu0 0.0
        %478 = vmatprep.subr.mxu0 0.0
        %479 = vmatpush1.msra.mxu0 0.0
        %480 = vmatprep.subr.mxu0 0.0
        %481 = vmatpush1.msra.mxu0 0.0
        %482 = vmatprep.subr.mxu0 0.0
        %483 = vmatpush1.msra.mxu0 0.0
        %484 = vmatprep.mubr.f32.mxu0 0.0
        %485 = vmatmul.mubr.f32.gmra.mrb[0].mxu0 %v418
        %v486 = vpop.f32.mrb[0].mxu0
        %v487 = vadd.f32 0.0, %v486
        %v488 = vpop.f32.mrb[0].mxu0
        %v489 = vadd.f32 0.0, %v488
        %490 = vdwg.mxu0
        %v493 = vcombine.low %v487, %v489
        %v495 = vunpack.c.l.s4 1966171168
        %v496 = vunpack.c.0.s8 %v495
        %v497 = vlaneseq
        %v498 = vshrl.u32 %v497, 7
        %v499 = vsub.s32 %v496, %v498
        %v500 = vrot.slane %v493, %v499
        %v502 = vunpack.c.l.s4 1966171168
        %v503 = vunpack.c.0.s8 %v502
        %v504 = vlaneseq
        %v505 = vshrl.u32 %v504, 7
        %v506 = vsub.s32 %v503, %v505
        %v507 = vrot.slane %v500, %v506
        %v509 = vadd.f32 %v399, %v507
        %v510 = vsub.f32 0.0, %v509
        %v511 = vmul.f32 %v510, 1.442695
        %v512 = vpow.pop %v511
        %v513 = vadd.f32 %v512, 1.0
        %v514 = vrcp.pop %v513
        %v515 = vmul.f32 1.0, %v514
        %v517 = vrot.slane %v509, 1
        %v519 = vtanh.pop %v517
        %520 = vrot.lane.b32.xlu0 %v509, 64
        %v521 = vpop.permute.xlu0 %520
        %v522 = vrot.slane %v521, 1
        %v524 = vsub.f32 0.0, %v522
        %v525 = vmul.f32 %v524, 1.442695
        %v526 = vpow.pop %v525
        %v527 = vadd.f32 %v526, 1.0
        %v528 = vrcp.pop %v527
        %v529 = vmul.f32 1.0, %v528
        %v530 = vmul.f32 %v515, 0.0
        %v531 = vmul.f32 %v515, %v519
        %533 = vrot.lane.b32.xlu0 %v531, 64
        %v534 = vpop.permute.xlu0 %533
        %v536 = vadd.f32 %v530, %v534
        %v537 = vtanh.pop %v536
        %539 = vrot.lane.b32.xlu0 %v537, 64
        %v540 = vpop.permute.xlu0 %539
        %v542 = vmul.f32 %v529, %v540
        %v543 = vadd.f32 %v542, 0.0
        %s544 = scalar_lea.vmem [#allocation2], 1
        %v545 = vld [vmem:[%s544] ss:$8 sm:$0x3]
        %v547 = vsel %vm416, %v542, 0
        %549 = vmatprep.subr.mxu0 %v401
        %550 = vmatpush1.msra.mxu0 %v400
        %551 = vmatprep.subr.mxu0 %v403
        %552 = vmatpush1.msra.mxu0 %v402
        %553 = vmatprep.subr.mxu0 %v405
        %554 = vmatpush1.msra.mxu0 %v404
        %555 = vmatprep.subr.mxu0 %v407
        %556 = vmatpush1.msra.mxu0 %v406
        %557 = vmatprep.subr.mxu0 %v409
        %558 = vmatpush1.msra.mxu0 %v408
        %559 = vmatprep.subr.mxu0 %v411
        %560 = vmatpush1.msra.mxu0 %v410
        %561 = vmatprep.subr.mxu0 %v413
        %562 = vmatpush1.msra.mxu0 %v412
        %563 = vmatprep.subr.mxu0 %v415
        %564 = vmatpush1.msra.mxu0 %v414
        %565 = vmatprep.subr.mxu0 0.0
        %566 = vmatpush1.msra.mxu0 0.0
        %567 = vmatprep.subr.mxu0 0.0
        %568 = vmatpush1.msra.mxu0 0.0
        %569 = vmatprep.subr.mxu0 0.0
        %570 = vmatpush1.msra.mxu0 0.0
        %571 = vmatprep.subr.mxu0 0.0
        %572 = vmatpush1.msra.mxu0 0.0
        %573 = vmatprep.subr.mxu0 0.0
        %574 = vmatpush1.msra.mxu0 0.0
        %575 = vmatprep.subr.mxu0 0.0
        %576 = vmatpush1.msra.mxu0 0.0
        %577 = vmatprep.subr.mxu0 0.0
        %578 = vmatpush1.msra.mxu0 0.0
        %579 = vmatprep.subr.mxu0 0.0
        %580 = vmatpush1.msra.mxu0 0.0
        %581 = vmatprep.subr.mxu0 0.0
        %582 = vmatpush1.msra.mxu0 0.0
        %583 = vmatprep.subr.mxu0 0.0
        %584 = vmatpush1.msra.mxu0 0.0
        %585 = vmatprep.subr.mxu0 0.0
        %586 = vmatpush1.msra.mxu0 0.0
        %587 = vmatprep.subr.mxu0 0.0
        %588 = vmatpush1.msra.mxu0 0.0
        %589 = vmatprep.subr.mxu0 0.0
        %590 = vmatpush1.msra.mxu0 0.0
        %591 = vmatprep.subr.mxu0 0.0
        %592 = vmatpush1.msra.mxu0 0.0
        %593 = vmatprep.subr.mxu0 0.0
        %594 = vmatpush1.msra.mxu0 0.0
        %595 = vmatprep.subr.mxu0 0.0
        %596 = vmatpush1.msra.mxu0 0.0
        %597 = vmatprep.subr.mxu0 0.0
        %598 = vmatpush1.msra.mxu0 0.0
        %599 = vmatprep.subr.mxu0 0.0
        %600 = vmatpush1.msra.mxu0 0.0
        %601 = vmatprep.subr.mxu0 0.0
        %602 = vmatpush1.msra.mxu0 0.0
        %603 = vmatprep.subr.mxu0 0.0
        %604 = vmatpush1.msra.mxu0 0.0
        %605 = vmatprep.subr.mxu0 0.0
        %606 = vmatpush1.msra.mxu0 0.0
        %607 = vmatprep.subr.mxu0 0.0
        %608 = vmatpush1.msra.mxu0 0.0
        %609 = vmatprep.subr.mxu0 0.0
        %610 = vmatpush1.msra.mxu0 0.0
        %611 = vmatprep.subr.mxu0 0.0
        %612 = vmatpush1.msra.mxu0 0.0
        %613 = vmatprep.mubr.f32.mxu0 0.0
        %614 = vmatmul.mubr.f32.gmra.mrb[0].mxu0 %v547
        %v615 = vpop.f32.mrb[0].mxu0
        %v616 = vadd.f32 0.0, %v615
        %v617 = vpop.f32.mrb[0].mxu0
        %v618 = vadd.f32 0.0, %v617
        %619 = vdwg.mxu0
        %v622 = vcombine.low %v616, %v618
        %v624 = vunpack.c.l.s4 1966171168
        %v625 = vunpack.c.0.s8 %v624
        %v626 = vlaneseq
        %v627 = vshrl.u32 %v626, 7
        %v628 = vsub.s32 %v625, %v627
        %v629 = vrot.slane %v622, %v628
        %v631 = vunpack.c.l.s4 1966171168
        %v632 = vunpack.c.0.s8 %v631
        %v633 = vlaneseq
        %v634 = vshrl.u32 %v633, 7
        %v635 = vsub.s32 %v632, %v634
        %v636 = vrot.slane %v629, %v635
        %v638 = vadd.f32 %v545, %v636
        %v639 = vsub.f32 0.0, %v638
        %v640 = vmul.f32 %v639, 1.442695
        %v641 = vpow.pop %v640
        %v642 = vadd.f32 %v641, 1.0
        %v643 = vrcp.pop %v642
        %v644 = vmul.f32 1.0, %v643
        %v646 = vrot.slane %v638, 1
        %v648 = vtanh.pop %v646
        %649 = vrot.lane.b32.xlu0 %v638, 64
        %v650 = vpop.permute.xlu0 %649
        %v651 = vrot.slane %v650, 1
        %v653 = vsub.f32 0.0, %v651
        %v654 = vmul.f32 %v653, 1.442695
        %v655 = vpow.pop %v654
        %v656 = vadd.f32 %v655, 1.0
        %v657 = vrcp.pop %v656
        %v658 = vmul.f32 1.0, %v657
        %v659 = vmul.f32 %v644, %v536
        %v660 = vmul.f32 %v644, %v648
        %662 = vrot.lane.b32.xlu0 %v660, 64
        %v663 = vpop.permute.xlu0 %662
        %v665 = vadd.f32 %v659, %v663
        %v666 = vtanh.pop %v665
        %668 = vrot.lane.b32.xlu0 %v666, 64
        %v669 = vpop.permute.xlu0 %668
        %v671 = vmul.f32 %v658, %v669
        %v672 = vadd.f32 %v543, %v671
        %s673 = scalar_lea.vmem [#allocation2], 2
        %v674 = vld [vmem:[%s673] ss:$8 sm:$0x3]
        %v676 = vsel %vm416, %v671, 0
        %678 = vmatprep.subr.mxu0 %v401
        %679 = vmatpush1.msra.mxu0 %v400
        %680 = vmatprep.subr.mxu0 %v403
        %681 = vmatpush1.msra.mxu0 %v402
        %682 = vmatprep.subr.mxu0 %v405
        %683 = vmatpush1.msra.mxu0 %v404
        %684 = vmatprep.subr.mxu0 %v407
        %685 = vmatpush1.msra.mxu0 %v406
        %686 = vmatprep.subr.mxu0 %v409
        %687 = vmatpush1.msra.mxu0 %v408
        %688 = vmatprep.subr.mxu0 %v411
        %689 = vmatpush1.msra.mxu0 %v410
        %690 = vmatprep.subr.mxu0 %v413
        %691 = vmatpush1.msra.mxu0 %v412
        %692 = vmatprep.subr.mxu0 %v415
        %693 = vmatpush1.msra.mxu0 %v414
        %694 = vmatprep.subr.mxu0 0.0
        %695 = vmatpush1.msra.mxu0 0.0
        %696 = vmatprep.subr.mxu0 0.0
        %697 = vmatpush1.msra.mxu0 0.0
        %698 = vmatprep.subr.mxu0 0.0
        %699 = vmatpush1.msra.mxu0 0.0
        %700 = vmatprep.subr.mxu0 0.0
        %701 = vmatpush1.msra.mxu0 0.0
        %702 = vmatprep.subr.mxu0 0.0
        %703 = vmatpush1.msra.mxu0 0.0
        %704 = vmatprep.subr.mxu0 0.0
        %705 = vmatpush1.msra.mxu0 0.0
        %706 = vmatprep.subr.mxu0 0.0
        %707 = vmatpush1.msra.mxu0 0.0
        %708 = vmatprep.subr.mxu0 0.0
        %709 = vmatpush1.msra.mxu0 0.0
        %710 = vmatprep.subr.mxu0 0.0
        %711 = vmatpush1.msra.mxu0 0.0
        %712 = vmatprep.subr.mxu0 0.0
        %713 = vmatpush1.msra.mxu0 0.0
        %714 = vmatprep.subr.mxu0 0.0
        %715 = vmatpush1.msra.mxu0 0.0
        %716 = vmatprep.subr.mxu0 0.0
        %717 = vmatpush1.msra.mxu0 0.0
        %718 = vmatprep.subr.mxu0 0.0
        %719 = vmatpush1.msra.mxu0 0.0
        %720 = vmatprep.subr.mxu0 0.0
        %721 = vmatpush1.msra.mxu0 0.0
        %722 = vmatprep.subr.mxu0 0.0
        %723 = vmatpush1.msra.mxu0 0.0
        %724 = vmatprep.subr.mxu0 0.0
        %725 = vmatpush1.msra.mxu0 0.0
        %726 = vmatprep.subr.mxu0 0.0
        %727 = vmatpush1.msra.mxu0 0.0
        %728 = vmatprep.subr.mxu0 0.0
        %729 = vmatpush1.msra.mxu0 0.0
        %730 = vmatprep.subr.mxu0 0.0
        %731 = vmatpush1.msra.mxu0 0.0
        %732 = vmatprep.subr.mxu0 0.0
        %733 = vmatpush1.msra.mxu0 0.0
        %734 = vmatprep.subr.mxu0 0.0
        %735 = vmatpush1.msra.mxu0 0.0
        %736 = vmatprep.subr.mxu0 0.0
        %737 = vmatpush1.msra.mxu0 0.0
        %738 = vmatprep.subr.mxu0 0.0
        %739 = vmatpush1.msra.mxu0 0.0
        %740 = vmatprep.subr.mxu0 0.0
        %741 = vmatpush1.msra.mxu0 0.0
        %742 = vmatprep.mubr.f32.mxu0 0.0
        %743 = vmatmul.mubr.f32.gmra.mrb[0].mxu0 %v676
        %v744 = vpop.f32.mrb[0].mxu0
        %v745 = vadd.f32 0.0, %v744
        %v746 = vpop.f32.mrb[0].mxu0
        %v747 = vadd.f32 0.0, %v746
        %748 = vdwg.mxu0
        %v751 = vcombine.low %v745, %v747
        %v753 = vunpack.c.l.s4 1966171168
        %v754 = vunpack.c.0.s8 %v753
        %v755 = vlaneseq
        %v756 = vshrl.u32 %v755, 7
        %v757 = vsub.s32 %v754, %v756
        %v758 = vrot.slane %v751, %v757
        %v760 = vunpack.c.l.s4 1966171168
        %v761 = vunpack.c.0.s8 %v760
        %v762 = vlaneseq
        %v763 = vshrl.u32 %v762, 7
        %v764 = vsub.s32 %v761, %v763
        %v765 = vrot.slane %v758, %v764
        %v767 = vadd.f32 %v674, %v765
        %v768 = vsub.f32 0.0, %v767
        %v769 = vmul.f32 %v768, 1.442695
        %v770 = vpow.pop %v769
        %v771 = vadd.f32 %v770, 1.0
        %v772 = vrcp.pop %v771
        %v773 = vmul.f32 1.0, %v772
        %v775 = vrot.slane %v767, 1
        %v777 = vtanh.pop %v775
        %778 = vrot.lane.b32.xlu0 %v767, 64
        %v779 = vpop.permute.xlu0 %778
        %v780 = vrot.slane %v779, 1
        %v782 = vsub.f32 0.0, %v780
        %v783 = vmul.f32 %v782, 1.442695
        %v784 = vpow.pop %v783
        %v785 = vadd.f32 %v784, 1.0
        %v786 = vrcp.pop %v785
        %v787 = vmul.f32 1.0, %v786
        %v788 = vmul.f32 %v773, %v665
        %v789 = vmul.f32 %v773, %v777
        %791 = vrot.lane.b32.xlu0 %v789, 64
        %v792 = vpop.permute.xlu0 %791
        %v794 = vadd.f32 %v788, %v792
        %v795 = vtanh.pop %v794
        %797 = vrot.lane.b32.xlu0 %v795, 64
        %v798 = vpop.permute.xlu0 %797
        %v800 = vmul.f32 %v787, %v798
        %v801 = vadd.f32 %v672, %v800
        %s802 = scalar_lea.vmem [#allocation2], 3
        %v803 = vld [vmem:[%s802] ss:$8 sm:$0x3]
        %v805 = vsel %vm416, %v800, 0
        %807 = vmatprep.subr.mxu0 %v401
        %808 = vmatpush1.msra.mxu0 %v400
        %809 = vmatprep.subr.mxu0 %v403
        %810 = vmatpush1.msra.mxu0 %v402
        %811 = vmatprep.subr.mxu0 %v405
        %812 = vmatpush1.msra.mxu0 %v404
        %813 = vmatprep.subr.mxu0 %v407
        %814 = vmatpush1.msra.mxu0 %v406
        %815 = vmatprep.subr.mxu0 %v409
        %816 = vmatpush1.msra.mxu0 %v408
        %817 = vmatprep.subr.mxu0 %v411
        %818 = vmatpush1.msra.mxu0 %v410
        %819 = vmatprep.subr.mxu0 %v413
        %820 = vmatpush1.msra.mxu0 %v412
        %821 = vmatprep.subr.mxu0 %v415
        %822 = vmatpush1.msra.mxu0 %v414
        %823 = vmatprep.subr.mxu0 0.0
        %824 = vmatpush1.msra.mxu0 0.0
        %825 = vmatprep.subr.mxu0 0.0
        %826 = vmatpush1.msra.mxu0 0.0
        %827 = vmatprep.subr.mxu0 0.0
        %828 = vmatpush1.msra.mxu0 0.0
        %829 = vmatprep.subr.mxu0 0.0
        %830 = vmatpush1.msra.mxu0 0.0
        %831 = vmatprep.subr.mxu0 0.0
        %832 = vmatpush1.msra.mxu0 0.0
        %833 = vmatprep.subr.mxu0 0.0
        %834 = vmatpush1.msra.mxu0 0.0
        %835 = vmatprep.subr.mxu0 0.0
        %836 = vmatpush1.msra.mxu0 0.0
        %837 = vmatprep.subr.mxu0 0.0
        %838 = vmatpush1.msra.mxu0 0.0
        %839 = vmatprep.subr.mxu0 0.0
        %840 = vmatpush1.msra.mxu0 0.0
        %841 = vmatprep.subr.mxu0 0.0
        %842 = vmatpush1.msra.mxu0 0.0
        %843 = vmatprep.subr.mxu0 0.0
        %844 = vmatpush1.msra.mxu0 0.0
        %845 = vmatprep.subr.mxu0 0.0
        %846 = vmatpush1.msra.mxu0 0.0
        %847 = vmatprep.subr.mxu0 0.0
        %848 = vmatpush1.msra.mxu0 0.0
        %849 = vmatprep.subr.mxu0 0.0
        %850 = vmatpush1.msra.mxu0 0.0
        %851 = vmatprep.subr.mxu0 0.0
        %852 = vmatpush1.msra.mxu0 0.0
        %853 = vmatprep.subr.mxu0 0.0
        %854 = vmatpush1.msra.mxu0 0.0
        %855 = vmatprep.subr.mxu0 0.0
        %856 = vmatpush1.msra.mxu0 0.0
        %857 = vmatprep.subr.mxu0 0.0
        %858 = vmatpush1.msra.mxu0 0.0
        %859 = vmatprep.subr.mxu0 0.0
        %860 = vmatpush1.msra.mxu0 0.0
        %861 = vmatprep.subr.mxu0 0.0
        %862 = vmatpush1.msra.mxu0 0.0
        %863 = vmatprep.subr.mxu0 0.0
        %864 = vmatpush1.msra.mxu0 0.0
        %865 = vmatprep.subr.mxu0 0.0
        %866 = vmatpush1.msra.mxu0 0.0
        %867 = vmatprep.subr.mxu0 0.0
        %868 = vmatpush1.msra.mxu0 0.0
        %869 = vmatprep.subr.mxu0 0.0
        %870 = vmatpush1.msra.mxu0 0.0
        %871 = vmatprep.mubr.f32.mxu0 0.0
        %872 = vmatmul.mubr.f32.gmra.mrb[0].mxu0 %v805
        %v873 = vpop.f32.mrb[0].mxu0
        %v874 = vadd.f32 0.0, %v873
        %v875 = vpop.f32.mrb[0].mxu0
        %v876 = vadd.f32 0.0, %v875
        %877 = vdwg.mxu0
        %v880 = vcombine.low %v874, %v876
        %v882 = vunpack.c.l.s4 1966171168
        %v883 = vunpack.c.0.s8 %v882
        %v884 = vlaneseq
        %v885 = vshrl.u32 %v884, 7
        %v886 = vsub.s32 %v883, %v885
        %v887 = vrot.slane %v880, %v886
        %v889 = vunpack.c.l.s4 1966171168
        %v890 = vunpack.c.0.s8 %v889
        %v891 = vlaneseq
        %v892 = vshrl.u32 %v891, 7
        %v893 = vsub.s32 %v890, %v892
        %v894 = vrot.slane %v887, %v893
        %v896 = vadd.f32 %v803, %v894
        %v897 = vsub.f32 0.0, %v896
        %v898 = vmul.f32 %v897, 1.442695
        %v899 = vpow.pop %v898
        %v900 = vadd.f32 %v899, 1.0
        %v901 = vrcp.pop %v900
        %v902 = vmul.f32 1.0, %v901
        %v904 = vrot.slane %v896, 1
        %v906 = vtanh.pop %v904
        %907 = vrot.lane.b32.xlu0 %v896, 64
        %v908 = vpop.permute.xlu0 %907
        %v909 = vrot.slane %v908, 1
        %v911 = vsub.f32 0.0, %v909
        %v912 = vmul.f32 %v911, 1.442695
        %v913 = vpow.pop %v912
        %v914 = vadd.f32 %v913, 1.0
        %v915 = vrcp.pop %v914
        %v916 = vmul.f32 1.0, %v915
        %v917 = vmul.f32 %v902, %v794
        %v918 = vmul.f32 %v902, %v906
        %920 = vrot.lane.b32.xlu0 %v918, 64
        %v921 = vpop.permute.xlu0 %920
        %v923 = vadd.f32 %v917, %v921
        %v924 = vtanh.pop %v923
        %926 = vrot.lane.b32.xlu0 %v924, 64
        %v927 = vpop.permute.xlu0 %926
        %v929 = vmul.f32 %v916, %v927
        %v930 = vadd.f32 %v801, %v929
        %s931 = scalar_lea.vmem [#allocation2], 4
        %v932 = vld [vmem:[%s931] ss:$8 sm:$0x3]
        %v934 = vsel %vm416, %v929, 0
        %936 = vmatprep.subr.mxu0 %v401
        %937 = vmatpush1.msra.mxu0 %v400
        %938 = vmatprep.subr.mxu0 %v403
        %939 = vmatpush1.msra.mxu0 %v402
        %940 = vmatprep.subr.mxu0 %v405
        %941 = vmatpush1.msra.mxu0 %v404
        %942 = vmatprep.subr.mxu0 %v407
        %943 = vmatpush1.msra.mxu0 %v406
        %944 = vmatprep.subr.mxu0 %v409
        %945 = vmatpush1.msra.mxu0 %v408
        %946 = vmatprep.subr.mxu0 %v411
        %947 = vmatpush1.msra.mxu0 %v410
        %948 = vmatprep.subr.mxu0 %v413
        %949 = vmatpush1.msra.mxu0 %v412
        %950 = vmatprep.subr.mxu0 %v415
        %951 = vmatpush1.msra.mxu0 %v414
        %952 = vmatprep.subr.mxu0 0.0
        %953 = vmatpush1.msra.mxu0 0.0
        %954 = vmatprep.subr.mxu0 0.0
        %955 = vmatpush1.msra.mxu0 0.0
        %956 = vmatprep.subr.mxu0 0.0
        %957 = vmatpush1.msra.mxu0 0.0
        %958 = vmatprep.subr.mxu0 0.0
        %959 = vmatpush1.msra.mxu0 0.0
        %960 = vmatprep.subr.mxu0 0.0
        %961 = vmatpush1.msra.mxu0 0.0
        %962 = vmatprep.subr.mxu0 0.0
        %963 = vmatpush1.msra.mxu0 0.0
        %964 = vmatprep.subr.mxu0 0.0
        %965 = vmatpush1.msra.mxu0 0.0
        %966 = vmatprep.subr.mxu0 0.0
        %967 = vmatpush1.msra.mxu0 0.0
        %968 = vmatprep.subr.mxu0 0.0
        %969 = vmatpush1.msra.mxu0 0.0
        %970 = vmatprep.subr.mxu0 0.0
        %971 = vmatpush1.msra.mxu0 0.0
        %972 = vmatprep.subr.mxu0 0.0
        %973 = vmatpush1.msra.mxu0 0.0
        %974 = vmatprep.subr.mxu0 0.0
        %975 = vmatpush1.msra.mxu0 0.0
        %976 = vmatprep.subr.mxu0 0.0
        %977 = vmatpush1.msra.mxu0 0.0
        %978 = vmatprep.subr.mxu0 0.0
        %979 = vmatpush1.msra.mxu0 0.0
        %980 = vmatprep.subr.mxu0 0.0
        %981 = vmatpush1.msra.mxu0 0.0
        %982 = vmatprep.subr.mxu0 0.0
        %983 = vmatpush1.msra.mxu0 0.0
        %984 = vmatprep.subr.mxu0 0.0
        %985 = vmatpush1.msra.mxu0 0.0
        %986 = vmatprep.subr.mxu0 0.0
        %987 = vmatpush1.msra.mxu0 0.0
        %988 = vmatprep.subr.mxu0 0.0
        %989 = vmatpush1.msra.mxu0 0.0
        %990 = vmatprep.subr.mxu0 0.0
        %991 = vmatpush1.msra.mxu0 0.0
        %992 = vmatprep.subr.mxu0 0.0
        %993 = vmatpush1.msra.mxu0 0.0
        %994 = vmatprep.subr.mxu0 0.0
        %995 = vmatpush1.msra.mxu0 0.0
        %996 = vmatprep.subr.mxu0 0.0
        %997 = vmatpush1.msra.mxu0 0.0
        %998 = vmatprep.subr.mxu0 0.0
        %999 = vmatpush1.msra.mxu0 0.0
        %1000 = vmatprep.mubr.f32.mxu0 0.0
        %1001 = vmatmul.mubr.f32.gmra.mrb[0].mxu0 %v934
        %v1002 = vpop.f32.mrb[0].mxu0
        %v1003 = vadd.f32 0.0, %v1002
        %v1004 = vpop.f32.mrb[0].mxu0
        %v1005 = vadd.f32 0.0, %v1004
        %1006 = vdwg.mxu0
        %v1009 = vcombine.low %v1003, %v1005
        %v1011 = vunpack.c.l.s4 1966171168
        %v1012 = vunpack.c.0.s8 %v1011
        %v1013 = vlaneseq
        %v1014 = vshrl.u32 %v1013, 7
        %v1015 = vsub.s32 %v1012, %v1014
        %v1016 = vrot.slane %v1009, %v1015
        %v1018 = vunpack.c.l.s4 1966171168
        %v1019 = vunpack.c.0.s8 %v1018
        %v1020 = vlaneseq
        %v1021 = vshrl.u32 %v1020, 7
        %v1022 = vsub.s32 %v1019, %v1021
        %v1023 = vrot.slane %v1016, %v1022
        %v1025 = vadd.f32 %v932, %v1023
        %v1026 = vsub.f32 0.0, %v1025
        %v1027 = vmul.f32 %v1026, 1.442695
        %v1028 = vpow.pop %v1027
        %v1029 = vadd.f32 %v1028, 1.0
        %v1030 = vrcp.pop %v1029
        %v1031 = vmul.f32 1.0, %v1030
        %v1033 = vrot.slane %v1025, 1
        %v1035 = vtanh.pop %v1033
        %1036 = vrot.lane.b32.xlu0 %v1025, 64
        %v1037 = vpop.permute.xlu0 %1036
        %v1038 = vrot.slane %v1037, 1
        %v1040 = vsub.f32 0.0, %v1038
        %v1041 = vmul.f32 %v1040, 1.442695
        %v1042 = vpow.pop %v1041
        %v1043 = vadd.f32 %v1042, 1.0
        %v1044 = vrcp.pop %v1043
        %v1045 = vmul.f32 1.0, %v1044
        %v1046 = vmul.f32 %v1031, %v923
        %v1047 = vmul.f32 %v1031, %v1035
        %1049 = vrot.lane.b32.xlu0 %v1047, 64
        %v1050 = vpop.permute.xlu0 %1049
        %v1052 = vadd.f32 %v1046, %v1050
        %v1053 = vtanh.pop %v1052
        %1055 = vrot.lane.b32.xlu0 %v1053, 64
        %v1056 = vpop.permute.xlu0 %1055
        %v1058 = vmul.f32 %v1045, %v1056
        %v1059 = vadd.f32 %v930, %v1058
        %s1060 = scalar_lea.vmem [#allocation2], 5
        %v1061 = vld [vmem:[%s1060] ss:$8 sm:$0x3]
        %v1063 = vsel %vm416, %v1058, 0
        %1065 = vmatprep.subr.mxu0 %v401
        %1066 = vmatpush1.msra.mxu0 %v400
        %1067 = vmatprep.subr.mxu0 %v403
        %1068 = vmatpush1.msra.mxu0 %v402
        %1069 = vmatprep.subr.mxu0 %v405
        %1070 = vmatpush1.msra.mxu0 %v404
        %1071 = vmatprep.subr.mxu0 %v407
        %1072 = vmatpush1.msra.mxu0 %v406
        %1073 = vmatprep.subr.mxu0 %v409
        %1074 = vmatpush1.msra.mxu0 %v408
        %1075 = vmatprep.subr.mxu0 %v411
        %1076 = vmatpush1.msra.mxu0 %v410
        %1077 = vmatprep.subr.mxu0 %v413
        %1078 = vmatpush1.msra.mxu0 %v412
        %1079 = vmatprep.subr.mxu0 %v415
        %1080 = vmatpush1.msra.mxu0 %v414
        %1081 = vmatprep.subr.mxu0 0.0
        %1082 = vmatpush1.msra.mxu0 0.0
        %1083 = vmatprep.subr.mxu0 0.0
        %1084 = vmatpush1.msra.mxu0 0.0
        %1085 = vmatprep.subr.mxu0 0.0
        %1086 = vmatpush1.msra.mxu0 0.0
        %1087 = vmatprep.subr.mxu0 0.0
        %1088 = vmatpush1.msra.mxu0 0.0
        %1089 = vmatprep.subr.mxu0 0.0
        %1090 = vmatpush1.msra.mxu0 0.0
        %1091 = vmatprep.subr.mxu0 0.0
        %1092 = vmatpush1.msra.mxu0 0.0
        %1093 = vmatprep.subr.mxu0 0.0
        %1094 = vmatpush1.msra.mxu0 0.0
        %1095 = vmatprep.subr.mxu0 0.0
        %1096 = vmatpush1.msra.mxu0 0.0
        %1097 = vmatprep.subr.mxu0 0.0
        %1098 = vmatpush1.msra.mxu0 0.0
        %1099 = vmatprep.subr.mxu0 0.0
        %1100 = vmatpush1.msra.mxu0 0.0
        %1101 = vmatprep.subr.mxu0 0.0
        %1102 = vmatpush1.msra.mxu0 0.0
        %1103 = vmatprep.subr.mxu0 0.0
        %1104 = vmatpush1.msra.mxu0 0.0
        %1105 = vmatprep.subr.mxu0 0.0
        %1106 = vmatpush1.msra.mxu0 0.0
        %1107 = vmatprep.subr.mxu0 0.0
        %1108 = vmatpush1.msra.mxu0 0.0
        %1109 = vmatprep.subr.mxu0 0.0
        %1110 = vmatpush1.msra.mxu0 0.0
        %1111 = vmatprep.subr.mxu0 0.0
        %1112 = vmatpush1.msra.mxu0 0.0
        %1113 = vmatprep.subr.mxu0 0.0
        %1114 = vmatpush1.msra.mxu0 0.0
        %1115 = vmatprep.subr.mxu0 0.0
        %1116 = vmatpush1.msra.mxu0 0.0
        %1117 = vmatprep.subr.mxu0 0.0
        %1118 = vmatpush1.msra.mxu0 0.0
        %1119 = vmatprep.subr.mxu0 0.0
        %1120 = vmatpush1.msra.mxu0 0.0
        %1121 = vmatprep.subr.mxu0 0.0
        %1122 = vmatpush1.msra.mxu0 0.0
        %1123 = vmatprep.subr.mxu0 0.0
        %1124 = vmatpush1.msra.mxu0 0.0
        %1125 = vmatprep.subr.mxu0 0.0
        %1126 = vmatpush1.msra.mxu0 0.0
        %1127 = vmatprep.subr.mxu0 0.0
        %1128 = vmatpush1.msra.mxu0 0.0
        %1129 = vmatprep.mubr.f32.mxu0 0.0
        %1130 = vmatmul.mubr.f32.gmra.mrb[0].mxu0 %v1063
        %v1131 = vpop.f32.mrb[0].mxu0
        %v1132 = vadd.f32 0.0, %v1131
        %v1133 = vpop.f32.mrb[0].mxu0
        %v1134 = vadd.f32 0.0, %v1133
        %1135 = vdwg.mxu0
        %v1138 = vcombine.low %v1132, %v1134
        %v1140 = vunpack.c.l.s4 1966171168
        %v1141 = vunpack.c.0.s8 %v1140
        %v1142 = vlaneseq
        %v1143 = vshrl.u32 %v1142, 7
        %v1144 = vsub.s32 %v1141, %v1143
        %v1145 = vrot.slane %v1138, %v1144
        %v1147 = vunpack.c.l.s4 1966171168
        %v1148 = vunpack.c.0.s8 %v1147
        %v1149 = vlaneseq
        %v1150 = vshrl.u32 %v1149, 7
        %v1151 = vsub.s32 %v1148, %v1150
        %v1152 = vrot.slane %v1145, %v1151
        %v1154 = vadd.f32 %v1061, %v1152
        %v1155 = vsub.f32 0.0, %v1154
        %v1156 = vmul.f32 %v1155, 1.442695
        %v1157 = vpow.pop %v1156
        %v1158 = vadd.f32 %v1157, 1.0
        %v1159 = vrcp.pop %v1158
        %v1160 = vmul.f32 1.0, %v1159
        %v1162 = vrot.slane %v1154, 1
        %v1164 = vtanh.pop %v1162
        %1165 = vrot.lane.b32.xlu0 %v1154, 64
        %v1166 = vpop.permute.xlu0 %1165
        %v1167 = vrot.slane %v1166, 1
        %v1169 = vsub.f32 0.0, %v1167
        %v1170 = vmul.f32 %v1169, 1.442695
        %v1171 = vpow.pop %v1170
        %v1172 = vadd.f32 %v1171, 1.0
        %v1173 = vrcp.pop %v1172
        %v1174 = vmul.f32 1.0, %v1173
        %v1175 = vmul.f32 %v1160, %v1052
        %v1176 = vmul.f32 %v1160, %v1164
        %1178 = vrot.lane.b32.xlu0 %v1176, 64
        %v1179 = vpop.permute.xlu0 %1178
        %v1181 = vadd.f32 %v1175, %v1179
        %v1182 = vtanh.pop %v1181
        %1184 = vrot.lane.b32.xlu0 %v1182, 64
        %v1185 = vpop.permute.xlu0 %1184
        %v1187 = vmul.f32 %v1174, %v1185
        %v1188 = vadd.f32 %v1059, %v1187
        %s1189 = scalar_lea.vmem [#allocation2], 6
        %v1190 = vld [vmem:[%s1189] ss:$8 sm:$0x3]
        %v1192 = vsel %vm416, %v1187, 0
        %1194 = vmatprep.subr.mxu0 %v401
        %1195 = vmatpush1.msra.mxu0 %v400
        %1196 = vmatprep.subr.mxu0 %v403
        %1197 = vmatpush1.msra.mxu0 %v402
        %1198 = vmatprep.subr.mxu0 %v405
        %1199 = vmatpush1.msra.mxu0 %v404
        %1200 = vmatprep.subr.mxu0 %v407
        %1201 = vmatpush1.msra.mxu0 %v406
        %1202 = vmatprep.subr.mxu0 %v409
        %1203 = vmatpush1.msra.mxu0 %v408
        %1204 = vmatprep.subr.mxu0 %v411
        %1205 = vmatpush1.msra.mxu0 %v410
        %1206 = vmatprep.subr.mxu0 %v413
        %1207 = vmatpush1.msra.mxu0 %v412
        %1208 = vmatprep.subr.mxu0 %v415
        %1209 = vmatpush1.msra.mxu0 %v414
        %1210 = vmatprep.subr.mxu0 0.0
        %1211 = vmatpush1.msra.mxu0 0.0
        %1212 = vmatprep.subr.mxu0 0.0
        %1213 = vmatpush1.msra.mxu0 0.0
        %1214 = vmatprep.subr.mxu0 0.0
        %1215 = vmatpush1.msra.mxu0 0.0
        %1216 = vmatprep.subr.mxu0 0.0
        %1217 = vmatpush1.msra.mxu0 0.0
        %1218 = vmatprep.subr.mxu0 0.0
        %1219 = vmatpush1.msra.mxu0 0.0
        %1220 = vmatprep.subr.mxu0 0.0
        %1221 = vmatpush1.msra.mxu0 0.0
        %1222 = vmatprep.subr.mxu0 0.0
        %1223 = vmatpush1.msra.mxu0 0.0
        %1224 = vmatprep.subr.mxu0 0.0
        %1225 = vmatpush1.msra.mxu0 0.0
        %1226 = vmatprep.subr.mxu0 0.0
        %1227 = vmatpush1.msra.mxu0 0.0
        %1228 = vmatprep.subr.mxu0 0.0
        %1229 = vmatpush1.msra.mxu0 0.0
        %1230 = vmatprep.subr.mxu0 0.0
        %1231 = vmatpush1.msra.mxu0 0.0
        %1232 = vmatprep.subr.mxu0 0.0
        %1233 = vmatpush1.msra.mxu0 0.0
        %1234 = vmatprep.subr.mxu0 0.0
        %1235 = vmatpush1.msra.mxu0 0.0
        %1236 = vmatprep.subr.mxu0 0.0
        %1237 = vmatpush1.msra.mxu0 0.0
        %1238 = vmatprep.subr.mxu0 0.0
        %1239 = vmatpush1.msra.mxu0 0.0
        %1240 = vmatprep.subr.mxu0 0.0
        %1241 = vmatpush1.msra.mxu0 0.0
        %1242 = vmatprep.subr.mxu0 0.0
        %1243 = vmatpush1.msra.mxu0 0.0
        %1244 = vmatprep.subr.mxu0 0.0
        %1245 = vmatpush1.msra.mxu0 0.0
        %1246 = vmatprep.subr.mxu0 0.0
        %1247 = vmatpush1.msra.mxu0 0.0
        %1248 = vmatprep.subr.mxu0 0.0
        %1249 = vmatpush1.msra.mxu0 0.0
        %1250 = vmatprep.subr.mxu0 0.0
        %1251 = vmatpush1.msra.mxu0 0.0
        %1252 = vmatprep.subr.mxu0 0.0
        %1253 = vmatpush1.msra.mxu0 0.0
        %1254 = vmatprep.subr.mxu0 0.0
        %1255 = vmatpush1.msra.mxu0 0.0
        %1256 = vmatprep.subr.mxu0 0.0
        %1257 = vmatpush1.msra.mxu0 0.0
        %1258 = vmatprep.mubr.f32.mxu0 0.0
        %1259 = vmatmul.mubr.f32.gmra.mrb[0].mxu0 %v1192
        %v1260 = vpop.f32.mrb[0].mxu0
        %v1261 = vadd.f32 0.0, %v1260
        %v1262 = vpop.f32.mrb[0].mxu0
        %v1263 = vadd.f32 0.0, %v1262
        %1264 = vdwg.mxu0
        %v1267 = vcombine.low %v1261, %v1263
        %v1269 = vunpack.c.l.s4 1966171168
        %v1270 = vunpack.c.0.s8 %v1269
        %v1271 = vlaneseq
        %v1272 = vshrl.u32 %v1271, 7
        %v1273 = vsub.s32 %v1270, %v1272
        %v1274 = vrot.slane %v1267, %v1273
        %v1276 = vunpack.c.l.s4 1966171168
        %v1277 = vunpack.c.0.s8 %v1276
        %v1278 = vlaneseq
        %v1279 = vshrl.u32 %v1278, 7
        %v1280 = vsub.s32 %v1277, %v1279
        %v1281 = vrot.slane %v1274, %v1280
        %v1283 = vadd.f32 %v1190, %v1281
        %v1284 = vsub.f32 0.0, %v1283
        %v1285 = vmul.f32 %v1284, 1.442695
        %v1286 = vpow.pop %v1285
        %v1287 = vadd.f32 %v1286, 1.0
        %v1288 = vrcp.pop %v1287
        %v1289 = vmul.f32 1.0, %v1288
        %v1291 = vrot.slane %v1283, 1
        %v1293 = vtanh.pop %v1291
        %1294 = vrot.lane.b32.xlu0 %v1283, 64
        %v1295 = vpop.permute.xlu0 %1294
        %v1296 = vrot.slane %v1295, 1
        %v1298 = vsub.f32 0.0, %v1296
        %v1299 = vmul.f32 %v1298, 1.442695
        %v1300 = vpow.pop %v1299
        %v1301 = vadd.f32 %v1300, 1.0
        %v1302 = vrcp.pop %v1301
        %v1303 = vmul.f32 1.0, %v1302
        %v1304 = vmul.f32 %v1289, %v1181
        %v1305 = vmul.f32 %v1289, %v1293
        %1307 = vrot.lane.b32.xlu0 %v1305, 64
        %v1308 = vpop.permute.xlu0 %1307
        %v1310 = vadd.f32 %v1304, %v1308
        %v1311 = vtanh.pop %v1310
        %1313 = vrot.lane.b32.xlu0 %v1311, 64
        %v1314 = vpop.permute.xlu0 %1313
        %v1316 = vmul.f32 %v1303, %v1314
        %v1317 = vadd.f32 %v1188, %v1316
        %s1318 = scalar_lea.vmem [#allocation2], 7
        %v1319 = vld [vmem:[%s1318] ss:$8 sm:$0x3]
        %v1321 = vsel %vm416, %v1316, 0
        %1323 = vmatprep.subr.mxu0 %v401
        %1324 = vmatpush1.msra.mxu0 %v400
        %1325 = vmatprep.subr.mxu0 %v403
        %1326 = vmatpush1.msra.mxu0 %v402
        %1327 = vmatprep.subr.mxu0 %v405
        %1328 = vmatpush1.msra.mxu0 %v404
        %1329 = vmatprep.subr.mxu0 %v407
        %1330 = vmatpush1.msra.mxu0 %v406
        %1331 = vmatprep.subr.mxu0 %v409
        %1332 = vmatpush1.msra.mxu0 %v408
        %1333 = vmatprep.subr.mxu0 %v411
        %1334 = vmatpush1.msra.mxu0 %v410
        %1335 = vmatprep.subr.mxu0 %v413
        %1336 = vmatpush1.msra.mxu0 %v412
        %1337 = vmatprep.subr.mxu0 %v415
        %1338 = vmatpush1.msra.mxu0 %v414
        %1339 = vmatprep.subr.mxu0 0.0
        %1340 = vmatpush1.msra.mxu0 0.0
        %1341 = vmatprep.subr.mxu0 0.0
        %1342 = vmatpush1.msra.mxu0 0.0
        %1343 = vmatprep.subr.mxu0 0.0
        %1344 = vmatpush1.msra.mxu0 0.0
        %1345 = vmatprep.subr.mxu0 0.0
        %1346 = vmatpush1.msra.mxu0 0.0
        %1347 = vmatprep.subr.mxu0 0.0
        %1348 = vmatpush1.msra.mxu0 0.0
        %1349 = vmatprep.subr.mxu0 0.0
        %1350 = vmatpush1.msra.mxu0 0.0
        %1351 = vmatprep.subr.mxu0 0.0
        %1352 = vmatpush1.msra.mxu0 0.0
        %1353 = vmatprep.subr.mxu0 0.0
        %1354 = vmatpush1.msra.mxu0 0.0
        %1355 = vmatprep.subr.mxu0 0.0
        %1356 = vmatpush1.msra.mxu0 0.0
        %1357 = vmatprep.subr.mxu0 0.0
        %1358 = vmatpush1.msra.mxu0 0.0
        %1359 = vmatprep.subr.mxu0 0.0
        %1360 = vmatpush1.msra.mxu0 0.0
        %1361 = vmatprep.subr.mxu0 0.0
        %1362 = vmatpush1.msra.mxu0 0.0
        %1363 = vmatprep.subr.mxu0 0.0
        %1364 = vmatpush1.msra.mxu0 0.0
        %1365 = vmatprep.subr.mxu0 0.0
        %1366 = vmatpush1.msra.mxu0 0.0
        %1367 = vmatprep.subr.mxu0 0.0
        %1368 = vmatpush1.msra.mxu0 0.0
        %1369 = vmatprep.subr.mxu0 0.0
        %1370 = vmatpush1.msra.mxu0 0.0
        %1371 = vmatprep.subr.mxu0 0.0
        %1372 = vmatpush1.msra.mxu0 0.0
        %1373 = vmatprep.subr.mxu0 0.0
        %1374 = vmatpush1.msra.mxu0 0.0
        %1375 = vmatprep.subr.mxu0 0.0
        %1376 = vmatpush1.msra.mxu0 0.0
        %1377 = vmatprep.subr.mxu0 0.0
        %1378 = vmatpush1.msra.mxu0 0.0
        %1379 = vmatprep.subr.mxu0 0.0
        %1380 = vmatpush1.msra.mxu0 0.0
        %1381 = vmatprep.subr.mxu0 0.0
        %1382 = vmatpush1.msra.mxu0 0.0
        %1383 = vmatprep.subr.mxu0 0.0
        %1384 = vmatpush1.msra.mxu0 0.0
        %1385 = vmatprep.subr.mxu0 0.0
        %1386 = vmatpush1.msra.mxu0 0.0
        %1387 = vmatprep.mubr.f32.mxu0 0.0
        %1388 = vmatmul.mubr.f32.gmra.mrb[0].mxu0 %v1321
        %v1389 = vpop.f32.mrb[0].mxu0
        %v1390 = vadd.f32 0.0, %v1389
        %v1391 = vpop.f32.mrb[0].mxu0
        %v1392 = vadd.f32 0.0, %v1391
        %1393 = vdwg.mxu0
        %v1396 = vcombine.low %v1390, %v1392
        %v1398 = vunpack.c.l.s4 1966171168
        %v1399 = vunpack.c.0.s8 %v1398
        %v1400 = vlaneseq
        %v1401 = vshrl.u32 %v1400, 7
        %v1402 = vsub.s32 %v1399, %v1401
        %v1403 = vrot.slane %v1396, %v1402
        %v1405 = vunpack.c.l.s4 1966171168
        %v1406 = vunpack.c.0.s8 %v1405
        %v1407 = vlaneseq
        %v1408 = vshrl.u32 %v1407, 7
        %v1409 = vsub.s32 %v1406, %v1408
        %v1410 = vrot.slane %v1403, %v1409
        %v1412 = vadd.f32 %v1319, %v1410
        %v1413 = vsub.f32 0.0, %v1412
        %v1414 = vmul.f32 %v1413, 1.442695
        %v1415 = vpow.pop %v1414
        %v1416 = vadd.f32 %v1415, 1.0
        %v1417 = vrcp.pop %v1416
        %v1418 = vmul.f32 1.0, %v1417
        %v1420 = vrot.slane %v1412, 1
        %v1422 = vtanh.pop %v1420
        %1423 = vrot.lane.b32.xlu0 %v1412, 64
        %v1424 = vpop.permute.xlu0 %1423
        %v1425 = vrot.slane %v1424, 1
        %v1427 = vsub.f32 0.0, %v1425
        %v1428 = vmul.f32 %v1427, 1.442695
        %v1429 = vpow.pop %v1428
        %v1430 = vadd.f32 %v1429, 1.0
        %v1431 = vrcp.pop %v1430
        %v1432 = vmul.f32 1.0, %v1431
        %v1433 = vmul.f32 %v1418, %v1310
        %v1434 = vmul.f32 %v1418, %v1422
        %1436 = vrot.lane.b32.xlu0 %v1434, 64
        %v1437 = vpop.permute.xlu0 %1436
        %v1439 = vadd.f32 %v1433, %v1437
        %v1440 = vtanh.pop %v1439
        %1442 = vrot.lane.b32.xlu0 %v1440, 64
        %v1443 = vpop.permute.xlu0 %1442
        %v1445 = vmul.f32 %v1432, %v1443
        %v1446 = vadd.f32 %v1317, %v1445
        %s1447 = scalar_lea.vmem [#allocation2], 16
        %v1448 = vld [vmem:[%s1447] ss:$8 sm:$0x3]
        %v1450 = vsel %vm416, %v1445, 0
        %1452 = vmatprep.subr.mxu0 %v401
        %1453 = vmatpush1.msra.mxu0 %v400
        %1454 = vmatprep.subr.mxu0 %v403
        %1455 = vmatpush1.msra.mxu0 %v402
        %1456 = vmatprep.subr.mxu0 %v405
        %1457 = vmatpush1.msra.mxu0 %v404
        %1458 = vmatprep.subr.mxu0 %v407
        %1459 = vmatpush1.msra.mxu0 %v406
        %1460 = vmatprep.subr.mxu0 %v409
        %1461 = vmatpush1.msra.mxu0 %v408
        %1462 = vmatprep.subr.mxu0 %v411
        %1463 = vmatpush1.msra.mxu0 %v410
        %1464 = vmatprep.subr.mxu0 %v413
        %1465 = vmatpush1.msra.mxu0 %v412
        %1466 = vmatprep.subr.mxu0 %v415
        %1467 = vmatpush1.msra.mxu0 %v414
        %1468 = vmatprep.subr.mxu0 0.0
        %1469 = vmatpush1.msra.mxu0 0.0
        %1470 = vmatprep.subr.mxu0 0.0
        %1471 = vmatpush1.msra.mxu0 0.0
        %1472 = vmatprep.subr.mxu0 0.0
        %1473 = vmatpush1.msra.mxu0 0.0
        %1474 = vmatprep.subr.mxu0 0.0
        %1475 = vmatpush1.msra.mxu0 0.0
        %1476 = vmatprep.subr.mxu0 0.0
        %1477 = vmatpush1.msra.mxu0 0.0
        %1478 = vmatprep.subr.mxu0 0.0
        %1479 = vmatpush1.msra.mxu0 0.0
        %1480 = vmatprep.subr.mxu0 0.0
        %1481 = vmatpush1.msra.mxu0 0.0
        %1482 = vmatprep.subr.mxu0 0.0
        %1483 = vmatpush1.msra.mxu0 0.0
        %1484 = vmatprep.subr.mxu0 0.0
        %1485 = vmatpush1.msra.mxu0 0.0
        %1486 = vmatprep.subr.mxu0 0.0
        %1487 = vmatpush1.msra.mxu0 0.0
        %1488 = vmatprep.subr.mxu0 0.0
        %1489 = vmatpush1.msra.mxu0 0.0
        %1490 = vmatprep.subr.mxu0 0.0
        %1491 = vmatpush1.msra.mxu0 0.0
        %1492 = vmatprep.subr.mxu0 0.0
        %1493 = vmatpush1.msra.mxu0 0.0
        %1494 = vmatprep.subr.mxu0 0.0
        %1495 = vmatpush1.msra.mxu0 0.0
        %1496 = vmatprep.subr.mxu0 0.0
        %1497 = vmatpush1.msra.mxu0 0.0
        %1498 = vmatprep.subr.mxu0 0.0
        %1499 = vmatpush1.msra.mxu0 0.0
        %1500 = vmatprep.subr.mxu0 0.0
        %1501 = vmatpush1.msra.mxu0 0.0
        %1502 = vmatprep.subr.mxu0 0.0
        %1503 = vmatpush1.msra.mxu0 0.0
        %1504 = vmatprep.subr.mxu0 0.0
        %1505 = vmatpush1.msra.mxu0 0.0
        %1506 = vmatprep.subr.mxu0 0.0
        %1507 = vmatpush1.msra.mxu0 0.0
        %1508 = vmatprep.subr.mxu0 0.0
        %1509 = vmatpush1.msra.mxu0 0.0
        %1510 = vmatprep.subr.mxu0 0.0
        %1511 = vmatpush1.msra.mxu0 0.0
        %1512 = vmatprep.subr.mxu0 0.0
        %1513 = vmatpush1.msra.mxu0 0.0
        %1514 = vmatprep.subr.mxu0 0.0
        %1515 = vmatpush1.msra.mxu0 0.0
        %1516 = vmatprep.mubr.f32.mxu0 0.0
        %1517 = vmatmul.mubr.f32.gmra.mrb[0].mxu0 %v1450
        %v1518 = vpop.f32.mrb[0].mxu0
        %v1519 = vadd.f32 0.0, %v1518
        %v1520 = vpop.f32.mrb[0].mxu0
        %v1521 = vadd.f32 0.0, %v1520
        %1522 = vdwg.mxu0
        %v1525 = vcombine.low %v1519, %v1521
        %v1527 = vunpack.c.l.s4 1966171168
        %v1528 = vunpack.c.0.s8 %v1527
        %v1529 = vlaneseq
        %v1530 = vshrl.u32 %v1529, 7
        %v1531 = vsub.s32 %v1528, %v1530
        %v1532 = vrot.slane %v1525, %v1531
        %v1534 = vunpack.c.l.s4 1966171168
        %v1535 = vunpack.c.0.s8 %v1534
        %v1536 = vlaneseq
        %v1537 = vshrl.u32 %v1536, 7
        %v1538 = vsub.s32 %v1535, %v1537
        %v1539 = vrot.slane %v1532, %v1538
        %v1541 = vadd.f32 %v1448, %v1539
        %v1542 = vsub.f32 0.0, %v1541
        %v1543 = vmul.f32 %v1542, 1.442695
        %v1544 = vpow.pop %v1543
        %v1545 = vadd.f32 %v1544, 1.0
        %v1546 = vrcp.pop %v1545
        %v1547 = vmul.f32 1.0, %v1546
        %v1549 = vrot.slane %v1541, 1
        %v1551 = vtanh.pop %v1549
        %1552 = vrot.lane.b32.xlu0 %v1541, 64
        %v1553 = vpop.permute.xlu0 %1552
        %v1554 = vrot.slane %v1553, 1
        %v1556 = vsub.f32 0.0, %v1554
        %v1557 = vmul.f32 %v1556, 1.442695
        %v1558 = vpow.pop %v1557
        %v1559 = vadd.f32 %v1558, 1.0
        %v1560 = vrcp.pop %v1559
        %v1561 = vmul.f32 1.0, %v1560
        %v1562 = vmul.f32 %v1547, %v1439
        %v1563 = vmul.f32 %v1547, %v1551
        %1565 = vrot.lane.b32.xlu0 %v1563, 64
        %v1566 = vpop.permute.xlu0 %1565
        %v1568 = vadd.f32 %v1562, %v1566
        %v1569 = vtanh.pop %v1568
        %1571 = vrot.lane.b32.xlu0 %v1569, 64
        %v1572 = vpop.permute.xlu0 %1571
        %v1574 = vmul.f32 %v1561, %v1572
        %v1575 = vadd.f32 %v1446, %v1574
        %s1576 = scalar_lea.vmem [#allocation2], 17
        %v1577 = vld [vmem:[%s1576] ss:$8 sm:$0x3]
        %v1579 = vsel %vm416, %v1574, 0
        %1581 = vmatprep.subr.mxu0 %v401
        %1582 = vmatpush1.msra.mxu0 %v400
        %1583 = vmatprep.subr.mxu0 %v403
        %1584 = vmatpush1.msra.mxu0 %v402
        %1585 = vmatprep.subr.mxu0 %v405
        %1586 = vmatpush1.msra.mxu0 %v404
        %1587 = vmatprep.subr.mxu0 %v407
        %1588 = vmatpush1.msra.mxu0 %v406
        %1589 = vmatprep.subr.mxu0 %v409
        %1590 = vmatpush1.msra.mxu0 %v408
        %1591 = vmatprep.subr.mxu0 %v411
        %1592 = vmatpush1.msra.mxu0 %v410
        %1593 = vmatprep.subr.mxu0 %v413
        %1594 = vmatpush1.msra.mxu0 %v412
        %1595 = vmatprep.subr.mxu0 %v415
        %1596 = vmatpush1.msra.mxu0 %v414
        %1597 = vmatprep.subr.mxu0 0.0
        %1598 = vmatpush1.msra.mxu0 0.0
        %1599 = vmatprep.subr.mxu0 0.0
        %1600 = vmatpush1.msra.mxu0 0.0
        %1601 = vmatprep.subr.mxu0 0.0
        %1602 = vmatpush1.msra.mxu0 0.0
        %1603 = vmatprep.subr.mxu0 0.0
        %1604 = vmatpush1.msra.mxu0 0.0
        %1605 = vmatprep.subr.mxu0 0.0
        %1606 = vmatpush1.msra.mxu0 0.0
        %1607 = vmatprep.subr.mxu0 0.0
        %1608 = vmatpush1.msra.mxu0 0.0
        %1609 = vmatprep.subr.mxu0 0.0
        %1610 = vmatpush1.msra.mxu0 0.0
        %1611 = vmatprep.subr.mxu0 0.0
        %1612 = vmatpush1.msra.mxu0 0.0
        %1613 = vmatprep.subr.mxu0 0.0
        %1614 = vmatpush1.msra.mxu0 0.0
        %1615 = vmatprep.subr.mxu0 0.0
        %1616 = vmatpush1.msra.mxu0 0.0
        %1617 = vmatprep.subr.mxu0 0.0
        %1618 = vmatpush1.msra.mxu0 0.0
        %1619 = vmatprep.subr.mxu0 0.0
        %1620 = vmatpush1.msra.mxu0 0.0
        %1621 = vmatprep.subr.mxu0 0.0
        %1622 = vmatpush1.msra.mxu0 0.0
        %1623 = vmatprep.subr.mxu0 0.0
        %1624 = vmatpush1.msra.mxu0 0.0
        %1625 = vmatprep.subr.mxu0 0.0
        %1626 = vmatpush1.msra.mxu0 0.0
        %1627 = vmatprep.subr.mxu0 0.0
        %1628 = vmatpush1.msra.mxu0 0.0
        %1629 = vmatprep.subr.mxu0 0.0
        %1630 = vmatpush1.msra.mxu0 0.0
        %1631 = vmatprep.subr.mxu0 0.0
        %1632 = vmatpush1.msra.mxu0 0.0
        %1633 = vmatprep.subr.mxu0 0.0
        %1634 = vmatpush1.msra.mxu0 0.0
        %1635 = vmatprep.subr.mxu0 0.0
        %1636 = vmatpush1.msra.mxu0 0.0
        %1637 = vmatprep.subr.mxu0 0.0
        %1638 = vmatpush1.msra.mxu0 0.0
        %1639 = vmatprep.subr.mxu0 0.0
        %1640 = vmatpush1.msra.mxu0 0.0
        %1641 = vmatprep.subr.mxu0 0.0
        %1642 = vmatpush1.msra.mxu0 0.0
        %1643 = vmatprep.subr.mxu0 0.0
        %1644 = vmatpush1.msra.mxu0 0.0
        %1645 = vmatprep.mubr.f32.mxu0 0.0
        %1646 = vmatmul.mubr.f32.gmra.mrb[0].mxu0 %v1579
        %v1647 = vpop.f32.mrb[0].mxu0
        %v1648 = vadd.f32 0.0, %v1647
        %v1649 = vpop.f32.mrb[0].mxu0
        %v1650 = vadd.f32 0.0, %v1649
        %1651 = vdwg.mxu0
        %v1654 = vcombine.low %v1648, %v1650
        %v1656 = vunpack.c.l.s4 1966171168
        %v1657 = vunpack.c.0.s8 %v1656
        %v1658 = vlaneseq
        %v1659 = vshrl.u32 %v1658, 7
        %v1660 = vsub.s32 %v1657, %v1659
        %v1661 = vrot.slane %v1654, %v1660
        %v1663 = vunpack.c.l.s4 1966171168
        %v1664 = vunpack.c.0.s8 %v1663
        %v1665 = vlaneseq
        %v1666 = vshrl.u32 %v1665, 7
        %v1667 = vsub.s32 %v1664, %v1666
        %v1668 = vrot.slane %v1661, %v1667
        %v1670 = vadd.f32 %v1577, %v1668
        %v1671 = vsub.f32 0.0, %v1670
        %v1672 = vmul.f32 %v1671, 1.442695
        %v1673 = vpow.pop %v1672
        %v1674 = vadd.f32 %v1673, 1.0
        %v1675 = vrcp.pop %v1674
        %v1676 = vmul.f32 1.0, %v1675
        %v1678 = vrot.slane %v1670, 1
        %v1680 = vtanh.pop %v1678
        %1681 = vrot.lane.b32.xlu0 %v1670, 64
        %v1682 = vpop.permute.xlu0 %1681
        %v1683 = vrot.slane %v1682, 1
        %v1685 = vsub.f32 0.0, %v1683
        %v1686 = vmul.f32 %v1685, 1.442695
        %v1687 = vpow.pop %v1686
        %v1688 = vadd.f32 %v1687, 1.0
        %v1689 = vrcp.pop %v1688
        %v1690 = vmul.f32 1.0, %v1689
        %v1691 = vmul.f32 %v1676, %v1568
        %v1692 = vmul.f32 %v1676, %v1680
        %1694 = vrot.lane.b32.xlu0 %v1692, 64
        %v1695 = vpop.permute.xlu0 %1694
        %v1697 = vadd.f32 %v1691, %v1695
        %v1698 = vtanh.pop %v1697
        %1700 = vrot.lane.b32.xlu0 %v1698, 64
        %v1701 = vpop.permute.xlu0 %1700
        %v1703 = vmul.f32 %v1690, %v1701
        %v1704 = vadd.f32 %v1575, %v1703
        %s1705 = scalar_lea.vmem [#allocation2], 18
        %v1706 = vld [vmem:[%s1705] ss:$8 sm:$0x3]
        %v1708 = vsel %vm416, %v1703, 0
        %1710 = vmatprep.subr.mxu0 %v401
        %1711 = vmatpush1.msra.mxu0 %v400
        %1712 = vmatprep.subr.mxu0 %v403
        %1713 = vmatpush1.msra.mxu0 %v402
        %1714 = vmatprep.subr.mxu0 %v405
        %1715 = vmatpush1.msra.mxu0 %v404
        %1716 = vmatprep.subr.mxu0 %v407
        %1717 = vmatpush1.msra.mxu0 %v406
        %1718 = vmatprep.subr.mxu0 %v409
        %1719 = vmatpush1.msra.mxu0 %v408
        %1720 = vmatprep.subr.mxu0 %v411
        %1721 = vmatpush1.msra.mxu0 %v410
        %1722 = vmatprep.subr.mxu0 %v413
        %1723 = vmatpush1.msra.mxu0 %v412
        %1724 = vmatprep.subr.mxu0 %v415
        %1725 = vmatpush1.msra.mxu0 %v414
        %1726 = vmatprep.subr.mxu0 0.0
        %1727 = vmatpush1.msra.mxu0 0.0
        %1728 = vmatprep.subr.mxu0 0.0
        %1729 = vmatpush1.msra.mxu0 0.0
        %1730 = vmatprep.subr.mxu0 0.0
        %1731 = vmatpush1.msra.mxu0 0.0
        %1732 = vmatprep.subr.mxu0 0.0
        %1733 = vmatpush1.msra.mxu0 0.0
        %1734 = vmatprep.subr.mxu0 0.0
        %1735 = vmatpush1.msra.mxu0 0.0
        %1736 = vmatprep.subr.mxu0 0.0
        %1737 = vmatpush1.msra.mxu0 0.0
        %1738 = vmatprep.subr.mxu0 0.0
        %1739 = vmatpush1.msra.mxu0 0.0
        %1740 = vmatprep.subr.mxu0 0.0
        %1741 = vmatpush1.msra.mxu0 0.0
        %1742 = vmatprep.subr.mxu0 0.0
        %1743 = vmatpush1.msra.mxu0 0.0
        %1744 = vmatprep.subr.mxu0 0.0
        %1745 = vmatpush1.msra.mxu0 0.0
        %1746 = vmatprep.subr.mxu0 0.0
        %1747 = vmatpush1.msra.mxu0 0.0
        %1748 = vmatprep.subr.mxu0 0.0
        %1749 = vmatpush1.msra.mxu0 0.0
        %1750 = vmatprep.subr.mxu0 0.0
        %1751 = vmatpush1.msra.mxu0 0.0
        %1752 = vmatprep.subr.mxu0 0.0
        %1753 = vmatpush1.msra.mxu0 0.0
        %1754 = vmatprep.subr.mxu0 0.0
        %1755 = vmatpush1.msra.mxu0 0.0
        %1756 = vmatprep.subr.mxu0 0.0
        %1757 = vmatpush1.msra.mxu0 0.0
        %1758 = vmatprep.subr.mxu0 0.0
        %1759 = vmatpush1.msra.mxu0 0.0
        %1760 = vmatprep.subr.mxu0 0.0
        %1761 = vmatpush1.msra.mxu0 0.0
        %1762 = vmatprep.subr.mxu0 0.0
        %1763 = vmatpush1.msra.mxu0 0.0
        %1764 = vmatprep.subr.mxu0 0.0
        %1765 = vmatpush1.msra.mxu0 0.0
        %1766 = vmatprep.subr.mxu0 0.0
        %1767 = vmatpush1.msra.mxu0 0.0
        %1768 = vmatprep.subr.mxu0 0.0
        %1769 = vmatpush1.msra.mxu0 0.0
        %1770 = vmatprep.subr.mxu0 0.0
        %1771 = vmatpush1.msra.mxu0 0.0
        %1772 = vmatprep.subr.mxu0 0.0
        %1773 = vmatpush1.msra.mxu0 0.0
        %1774 = vmatprep.mubr.f32.mxu0 0.0
        %1775 = vmatmul.mubr.f32.gmra.mrb[0].mxu0 %v1708
        %v1776 = vpop.f32.mrb[0].mxu0
        %v1777 = vadd.f32 0.0, %v1776
        %v1778 = vpop.f32.mrb[0].mxu0
        %v1779 = vadd.f32 0.0, %v1778
        %1780 = vdwg.mxu0
        %v1783 = vcombine.low %v1777, %v1779
        %v1785 = vunpack.c.l.s4 1966171168
        %v1786 = vunpack.c.0.s8 %v1785
        %v1787 = vlaneseq
        %v1788 = vshrl.u32 %v1787, 7
        %v1789 = vsub.s32 %v1786, %v1788
        %v1790 = vrot.slane %v1783, %v1789
        %v1792 = vunpack.c.l.s4 1966171168
        %v1793 = vunpack.c.0.s8 %v1792
        %v1794 = vlaneseq
        %v1795 = vshrl.u32 %v1794, 7
        %v1796 = vsub.s32 %v1793, %v1795
        %v1797 = vrot.slane %v1790, %v1796
        %v1799 = vadd.f32 %v1706, %v1797
        %v1800 = vsub.f32 0.0, %v1799
        %v1801 = vmul.f32 %v1800, 1.442695
        %v1802 = vpow.pop %v1801
        %v1803 = vadd.f32 %v1802, 1.0
        %v1804 = vrcp.pop %v1803
        %v1805 = vmul.f32 1.0, %v1804
        %v1807 = vrot.slane %v1799, 1
        %v1809 = vtanh.pop %v1807
        %1810 = vrot.lane.b32.xlu0 %v1799, 64
        %v1811 = vpop.permute.xlu0 %1810
        %v1812 = vrot.slane %v1811, 1
        %v1814 = vsub.f32 0.0, %v1812
        %v1815 = vmul.f32 %v1814, 1.442695
        %v1816 = vpow.pop %v1815
        %v1817 = vadd.f32 %v1816, 1.0
        %v1818 = vrcp.pop %v1817
        %v1819 = vmul.f32 1.0, %v1818
        %v1820 = vmul.f32 %v1805, %v1697
        %v1821 = vmul.f32 %v1805, %v1809
        %1823 = vrot.lane.b32.xlu0 %v1821, 64
        %v1824 = vpop.permute.xlu0 %1823
        %v1826 = vadd.f32 %v1820, %v1824
        %v1827 = vtanh.pop %v1826
        %1829 = vrot.lane.b32.xlu0 %v1827, 64
        %v1830 = vpop.permute.xlu0 %1829
        %v1832 = vmul.f32 %v1819, %v1830
        %v1833 = vadd.f32 %v1704, %v1832
        %s1834 = scalar_lea.vmem [#allocation2], 19
        %v1835 = vld [vmem:[%s1834] ss:$8 sm:$0x3]
        %v1837 = vsel %vm416, %v1832, 0
        %1839 = vmatprep.subr.mxu0 %v401
        %1840 = vmatpush1.msra.mxu0 %v400
        %1841 = vmatprep.subr.mxu0 %v403
        %1842 = vmatpush1.msra.mxu0 %v402
        %1843 = vmatprep.subr.mxu0 %v405
        %1844 = vmatpush1.msra.mxu0 %v404
        %1845 = vmatprep.subr.mxu0 %v407
        %1846 = vmatpush1.msra.mxu0 %v406
        %1847 = vmatprep.subr.mxu0 %v409
        %1848 = vmatpush1.msra.mxu0 %v408
        %1849 = vmatprep.subr.mxu0 %v411
        %1850 = vmatpush1.msra.mxu0 %v410
        %1851 = vmatprep.subr.mxu0 %v413
        %1852 = vmatpush1.msra.mxu0 %v412
        %1853 = vmatprep.subr.mxu0 %v415
        %1854 = vmatpush1.msra.mxu0 %v414
        %1855 = vmatprep.subr.mxu0 0.0
        %1856 = vmatpush1.msra.mxu0 0.0
        %1857 = vmatprep.subr.mxu0 0.0
        %1858 = vmatpush1.msra.mxu0 0.0
        %1859 = vmatprep.subr.mxu0 0.0
        %1860 = vmatpush1.msra.mxu0 0.0
        %1861 = vmatprep.subr.mxu0 0.0
        %1862 = vmatpush1.msra.mxu0 0.0
        %1863 = vmatprep.subr.mxu0 0.0
        %1864 = vmatpush1.msra.mxu0 0.0
        %1865 = vmatprep.subr.mxu0 0.0
        %1866 = vmatpush1.msra.mxu0 0.0
        %1867 = vmatprep.subr.mxu0 0.0
        %1868 = vmatpush1.msra.mxu0 0.0
        %1869 = vmatprep.subr.mxu0 0.0
        %1870 = vmatpush1.msra.mxu0 0.0
        %1871 = vmatprep.subr.mxu0 0.0
        %1872 = vmatpush1.msra.mxu0 0.0
        %1873 = vmatprep.subr.mxu0 0.0
        %1874 = vmatpush1.msra.mxu0 0.0
        %1875 = vmatprep.subr.mxu0 0.0
        %1876 = vmatpush1.msra.mxu0 0.0
        %1877 = vmatprep.subr.mxu0 0.0
        %1878 = vmatpush1.msra.mxu0 0.0
        %1879 = vmatprep.subr.mxu0 0.0
        %1880 = vmatpush1.msra.mxu0 0.0
        %1881 = vmatprep.subr.mxu0 0.0
        %1882 = vmatpush1.msra.mxu0 0.0
        %1883 = vmatprep.subr.mxu0 0.0
        %1884 = vmatpush1.msra.mxu0 0.0
        %1885 = vmatprep.subr.mxu0 0.0
        %1886 = vmatpush1.msra.mxu0 0.0
        %1887 = vmatprep.subr.mxu0 0.0
        %1888 = vmatpush1.msra.mxu0 0.0
        %1889 = vmatprep.subr.mxu0 0.0
        %1890 = vmatpush1.msra.mxu0 0.0
        %1891 = vmatprep.subr.mxu0 0.0
        %1892 = vmatpush1.msra.mxu0 0.0
        %1893 = vmatprep.subr.mxu0 0.0
        %1894 = vmatpush1.msra.mxu0 0.0
        %1895 = vmatprep.subr.mxu0 0.0
        %1896 = vmatpush1.msra.mxu0 0.0
        %1897 = vmatprep.subr.mxu0 0.0
        %1898 = vmatpush1.msra.mxu0 0.0
        %1899 = vmatprep.subr.mxu0 0.0
        %1900 = vmatpush1.msra.mxu0 0.0
        %1901 = vmatprep.subr.mxu0 0.0
        %1902 = vmatpush1.msra.mxu0 0.0
        %1903 = vmatprep.mubr.f32.mxu0 0.0
        %1904 = vmatmul.mubr.f32.gmra.mrb[0].mxu0 %v1837
        %v1905 = vpop.f32.mrb[0].mxu0
        %v1906 = vadd.f32 0.0, %v1905
        %v1907 = vpop.f32.mrb[0].mxu0
        %v1908 = vadd.f32 0.0, %v1907
        %1909 = vdwg.mxu0
        %v1912 = vcombine.low %v1906, %v1908
        %v1914 = vunpack.c.l.s4 1966171168
        %v1915 = vunpack.c.0.s8 %v1914
        %v1916 = vlaneseq
        %v1917 = vshrl.u32 %v1916, 7
        %v1918 = vsub.s32 %v1915, %v1917
        %v1919 = vrot.slane %v1912, %v1918
        %v1921 = vunpack.c.l.s4 1966171168
        %v1922 = vunpack.c.0.s8 %v1921
        %v1923 = vlaneseq
        %v1924 = vshrl.u32 %v1923, 7
        %v1925 = vsub.s32 %v1922, %v1924
        %v1926 = vrot.slane %v1919, %v1925
        %v1928 = vadd.f32 %v1835, %v1926
        %v1929 = vsub.f32 0.0, %v1928
        %v1930 = vmul.f32 %v1929, 1.442695
        %v1931 = vpow.pop %v1930
        %v1932 = vadd.f32 %v1931, 1.0
        %v1933 = vrcp.pop %v1932
        %v1934 = vmul.f32 1.0, %v1933
        %v1936 = vrot.slane %v1928, 1
        %v1938 = vtanh.pop %v1936
        %1939 = vrot.lane.b32.xlu0 %v1928, 64
        %v1940 = vpop.permute.xlu0 %1939
        %v1941 = vrot.slane %v1940, 1
        %v1943 = vsub.f32 0.0, %v1941
        %v1944 = vmul.f32 %v1943, 1.442695
        %v1945 = vpow.pop %v1944
        %v1946 = vadd.f32 %v1945, 1.0
        %v1947 = vrcp.pop %v1946
        %v1948 = vmul.f32 1.0, %v1947
        %v1949 = vmul.f32 %v1934, %v1826
        %v1950 = vmul.f32 %v1934, %v1938
        %1952 = vrot.lane.b32.xlu0 %v1950, 64
        %v1953 = vpop.permute.xlu0 %1952
        %v1955 = vadd.f32 %v1949, %v1953
        %v1956 = vtanh.pop %v1955
        %1958 = vrot.lane.b32.xlu0 %v1956, 64
        %v1959 = vpop.permute.xlu0 %1958
        %v1961 = vmul.f32 %v1948, %v1959
        %v1962 = vadd.f32 %v1833, %v1961
        %s1963 = scalar_lea.vmem [#allocation2], 20
        %v1964 = vld [vmem:[%s1963] ss:$8 sm:$0x3]
        %v1966 = vsel %vm416, %v1961, 0
        %1968 = vmatprep.subr.mxu0 %v401
        %1969 = vmatpush1.msra.mxu0 %v400
        %1970 = vmatprep.subr.mxu0 %v403
        %1971 = vmatpush1.msra.mxu0 %v402
        %1972 = vmatprep.subr.mxu0 %v405
        %1973 = vmatpush1.msra.mxu0 %v404
        %1974 = vmatprep.subr.mxu0 %v407
        %1975 = vmatpush1.msra.mxu0 %v406
        %1976 = vmatprep.subr.mxu0 %v409
        %1977 = vmatpush1.msra.mxu0 %v408
        %1978 = vmatprep.subr.mxu0 %v411
        %1979 = vmatpush1.msra.mxu0 %v410
        %1980 = vmatprep.subr.mxu0 %v413
        %1981 = vmatpush1.msra.mxu0 %v412
        %1982 = vmatprep.subr.mxu0 %v415
        %1983 = vmatpush1.msra.mxu0 %v414
        %1984 = vmatprep.subr.mxu0 0.0
        %1985 = vmatpush1.msra.mxu0 0.0
        %1986 = vmatprep.subr.mxu0 0.0
        %1987 = vmatpush1.msra.mxu0 0.0
        %1988 = vmatprep.subr.mxu0 0.0
        %1989 = vmatpush1.msra.mxu0 0.0
        %1990 = vmatprep.subr.mxu0 0.0
        %1991 = vmatpush1.msra.mxu0 0.0
        %1992 = vmatprep.subr.mxu0 0.0
        %1993 = vmatpush1.msra.mxu0 0.0
        %1994 = vmatprep.subr.mxu0 0.0
        %1995 = vmatpush1.msra.mxu0 0.0
        %1996 = vmatprep.subr.mxu0 0.0
        %1997 = vmatpush1.msra.mxu0 0.0
        %1998 = vmatprep.subr.mxu0 0.0
        %1999 = vmatpush1.msra.mxu0 0.0
        %2000 = vmatprep.subr.mxu0 0.0
        %2001 = vmatpush1.msra.mxu0 0.0
        %2002 = vmatprep.subr.mxu0 0.0
        %2003 = vmatpush1.msra.mxu0 0.0
        %2004 = vmatprep.subr.mxu0 0.0
        %2005 = vmatpush1.msra.mxu0 0.0
        %2006 = vmatprep.subr.mxu0 0.0
        %2007 = vmatpush1.msra.mxu0 0.0
        %2008 = vmatprep.subr.mxu0 0.0
        %2009 = vmatpush1.msra.mxu0 0.0
        %2010 = vmatprep.subr.mxu0 0.0
        %2011 = vmatpush1.msra.mxu0 0.0
        %2012 = vmatprep.subr.mxu0 0.0
        %2013 = vmatpush1.msra.mxu0 0.0
        %2014 = vmatprep.subr.mxu0 0.0
        %2015 = vmatpush1.msra.mxu0 0.0
        %2016 = vmatprep.subr.mxu0 0.0
        %2017 = vmatpush1.msra.mxu0 0.0
        %2018 = vmatprep.subr.mxu0 0.0
        %2019 = vmatpush1.msra.mxu0 0.0
        %2020 = vmatprep.subr.mxu0 0.0
        %2021 = vmatpush1.msra.mxu0 0.0
        %2022 = vmatprep.subr.mxu0 0.0
        %2023 = vmatpush1.msra.mxu0 0.0
        %2024 = vmatprep.subr.mxu0 0.0
        %2025 = vmatpush1.msra.mxu0 0.0
        %2026 = vmatprep.subr.mxu0 0.0
        %2027 = vmatpush1.msra.mxu0 0.0
        %2028 = vmatprep.subr.mxu0 0.0
        %2029 = vmatpush1.msra.mxu0 0.0
        %2030 = vmatprep.subr.mxu0 0.0
        %2031 = vmatpush1.msra.mxu0 0.0
        %2032 = vmatprep.mubr.f32.mxu0 0.0
        %2033 = vmatmul.mubr.f32.gmra.mrb[0].mxu0 %v1966
        %v2034 = vpop.f32.mrb[0].mxu0
        %v2035 = vadd.f32 0.0, %v2034
        %v2036 = vpop.f32.mrb[0].mxu0
        %v2037 = vadd.f32 0.0, %v2036
        %2038 = vdwg.mxu0
        %v2041 = vcombine.low %v2035, %v2037
        %v2043 = vunpack.c.l.s4 1966171168
        %v2044 = vunpack.c.0.s8 %v2043
        %v2045 = vlaneseq
        %v2046 = vshrl.u32 %v2045, 7
        %v2047 = vsub.s32 %v2044, %v2046
        %v2048 = vrot.slane %v2041, %v2047
        %v2050 = vunpack.c.l.s4 1966171168
        %v2051 = vunpack.c.0.s8 %v2050
        %v2052 = vlaneseq
        %v2053 = vshrl.u32 %v2052, 7
        %v2054 = vsub.s32 %v2051, %v2053
        %v2055 = vrot.slane %v2048, %v2054
        %v2057 = vadd.f32 %v1964, %v2055
        %v2058 = vsub.f32 0.0, %v2057
        %v2059 = vmul.f32 %v2058, 1.442695
        %v2060 = vpow.pop %v2059
        %v2061 = vadd.f32 %v2060, 1.0
        %v2062 = vrcp.pop %v2061
        %v2063 = vmul.f32 1.0, %v2062
        %v2065 = vrot.slane %v2057, 1
        %v2067 = vtanh.pop %v2065
        %2068 = vrot.lane.b32.xlu0 %v2057, 64
        %v2069 = vpop.permute.xlu0 %2068
        %v2070 = vrot.slane %v2069, 1
        %v2072 = vsub.f32 0.0, %v2070
        %v2073 = vmul.f32 %v2072, 1.442695
        %v2074 = vpow.pop %v2073
        %v2075 = vadd.f32 %v2074, 1.0
        %v2076 = vrcp.pop %v2075
        %v2077 = vmul.f32 1.0, %v2076
        %v2078 = vmul.f32 %v2063, %v1955
        %v2079 = vmul.f32 %v2063, %v2067
        %2081 = vrot.lane.b32.xlu0 %v2079, 64
        %v2082 = vpop.permute.xlu0 %2081
        %v2084 = vadd.f32 %v2078, %v2082
        %v2085 = vtanh.pop %v2084
        %2087 = vrot.lane.b32.xlu0 %v2085, 64
        %v2088 = vpop.permute.xlu0 %2087
        %v2090 = vmul.f32 %v2077, %v2088
        %v2091 = vadd.f32 %v1962, %v2090
        %s2092 = scalar_lea.vmem [#allocation2], 21
        %v2093 = vld [vmem:[%s2092] ss:$8 sm:$0x3]
        %v2095 = vsel %vm416, %v2090, 0
        %2097 = vmatprep.subr.mxu0 %v401
        %2098 = vmatpush1.msra.mxu0 %v400
        %2099 = vmatprep.subr.mxu0 %v403
        %2100 = vmatpush1.msra.mxu0 %v402
        %2101 = vmatprep.subr.mxu0 %v405
        %2102 = vmatpush1.msra.mxu0 %v404
        %2103 = vmatprep.subr.mxu0 %v407
        %2104 = vmatpush1.msra.mxu0 %v406
        %2105 = vmatprep.subr.mxu0 %v409
        %2106 = vmatpush1.msra.mxu0 %v408
        %2107 = vmatprep.subr.mxu0 %v411
        %2108 = vmatpush1.msra.mxu0 %v410
        %2109 = vmatprep.subr.mxu0 %v413
        %2110 = vmatpush1.msra.mxu0 %v412
        %2111 = vmatprep.subr.mxu0 %v415
        %2112 = vmatpush1.msra.mxu0 %v414
        %2113 = vmatprep.subr.mxu0 0.0
        %2114 = vmatpush1.msra.mxu0 0.0
        %2115 = vmatprep.subr.mxu0 0.0
        %2116 = vmatpush1.msra.mxu0 0.0
        %2117 = vmatprep.subr.mxu0 0.0
        %2118 = vmatpush1.msra.mxu0 0.0
        %2119 = vmatprep.subr.mxu0 0.0
        %2120 = vmatpush1.msra.mxu0 0.0
        %2121 = vmatprep.subr.mxu0 0.0
        %2122 = vmatpush1.msra.mxu0 0.0
        %2123 = vmatprep.subr.mxu0 0.0
        %2124 = vmatpush1.msra.mxu0 0.0
        %2125 = vmatprep.subr.mxu0 0.0
        %2126 = vmatpush1.msra.mxu0 0.0
        %2127 = vmatprep.subr.mxu0 0.0
        %2128 = vmatpush1.msra.mxu0 0.0
        %2129 = vmatprep.subr.mxu0 0.0
        %2130 = vmatpush1.msra.mxu0 0.0
        %2131 = vmatprep.subr.mxu0 0.0
        %2132 = vmatpush1.msra.mxu0 0.0
        %2133 = vmatprep.subr.mxu0 0.0
        %2134 = vmatpush1.msra.mxu0 0.0
        %2135 = vmatprep.subr.mxu0 0.0
        %2136 = vmatpush1.msra.mxu0 0.0
        %2137 = vmatprep.subr.mxu0 0.0
        %2138 = vmatpush1.msra.mxu0 0.0
        %2139 = vmatprep.subr.mxu0 0.0
        %2140 = vmatpush1.msra.mxu0 0.0
        %2141 = vmatprep.subr.mxu0 0.0
        %2142 = vmatpush1.msra.mxu0 0.0
        %2143 = vmatprep.subr.mxu0 0.0
        %2144 = vmatpush1.msra.mxu0 0.0
        %2145 = vmatprep.subr.mxu0 0.0
        %2146 = vmatpush1.msra.mxu0 0.0
        %2147 = vmatprep.subr.mxu0 0.0
        %2148 = vmatpush1.msra.mxu0 0.0
        %2149 = vmatprep.subr.mxu0 0.0
        %2150 = vmatpush1.msra.mxu0 0.0
        %2151 = vmatprep.subr.mxu0 0.0
        %2152 = vmatpush1.msra.mxu0 0.0
        %2153 = vmatprep.subr.mxu0 0.0
        %2154 = vmatpush1.msra.mxu0 0.0
        %2155 = vmatprep.subr.mxu0 0.0
        %2156 = vmatpush1.msra.mxu0 0.0
        %2157 = vmatprep.subr.mxu0 0.0
        %2158 = vmatpush1.msra.mxu0 0.0
        %2159 = vmatprep.subr.mxu0 0.0
        %2160 = vmatpush1.msra.mxu0 0.0
        %2161 = vmatprep.mubr.f32.mxu0 0.0
        %2162 = vmatmul.mubr.f32.gmra.mrb[0].mxu0 %v2095
        %v2163 = vpop.f32.mrb[0].mxu0
        %v2164 = vadd.f32 0.0, %v2163
        %v2165 = vpop.f32.mrb[0].mxu0
        %v2166 = vadd.f32 0.0, %v2165
        %2167 = vdwg.mxu0
        %v2170 = vcombine.low %v2164, %v2166
        %v2172 = vunpack.c.l.s4 1966171168
        %v2173 = vunpack.c.0.s8 %v2172
        %v2174 = vlaneseq
        %v2175 = vshrl.u32 %v2174, 7
        %v2176 = vsub.s32 %v2173, %v2175
        %v2177 = vrot.slane %v2170, %v2176
        %v2179 = vunpack.c.l.s4 1966171168
        %v2180 = vunpack.c.0.s8 %v2179
        %v2181 = vlaneseq
        %v2182 = vshrl.u32 %v2181, 7
        %v2183 = vsub.s32 %v2180, %v2182
        %v2184 = vrot.slane %v2177, %v2183
        %v2186 = vadd.f32 %v2093, %v2184
        %v2187 = vsub.f32 0.0, %v2186
        %v2188 = vmul.f32 %v2187, 1.442695
        %v2189 = vpow.pop %v2188
        %v2190 = vadd.f32 %v2189, 1.0
        %v2191 = vrcp.pop %v2190
        %v2192 = vmul.f32 1.0, %v2191
        %v2194 = vrot.slane %v2186, 1
        %v2196 = vtanh.pop %v2194
        %2197 = vrot.lane.b32.xlu0 %v2186, 64
        %v2198 = vpop.permute.xlu0 %2197
        %v2199 = vrot.slane %v2198, 1
        %v2201 = vsub.f32 0.0, %v2199
        %v2202 = vmul.f32 %v2201, 1.442695
        %v2203 = vpow.pop %v2202
        %v2204 = vadd.f32 %v2203, 1.0
        %v2205 = vrcp.pop %v2204
        %v2206 = vmul.f32 1.0, %v2205
        %v2207 = vmul.f32 %v2192, %v2084
        %v2208 = vmul.f32 %v2192, %v2196
        %2210 = vrot.lane.b32.xlu0 %v2208, 64
        %v2211 = vpop.permute.xlu0 %2210
        %v2213 = vadd.f32 %v2207, %v2211
        %v2214 = vtanh.pop %v2213
        %2216 = vrot.lane.b32.xlu0 %v2214, 64
        %v2217 = vpop.permute.xlu0 %2216
        %v2219 = vmul.f32 %v2206, %v2217
        %v2220 = vadd.f32 %v2091, %v2219
        %s2221 = scalar_lea.vmem [#allocation2], 22
        %v2222 = vld [vmem:[%s2221] ss:$8 sm:$0x3]
        %v2224 = vsel %vm416, %v2219, 0
        %2226 = vmatprep.subr.mxu0 %v401
        %2227 = vmatpush1.msra.mxu0 %v400
        %2228 = vmatprep.subr.mxu0 %v403
        %2229 = vmatpush1.msra.mxu0 %v402
        %2230 = vmatprep.subr.mxu0 %v405
        %2231 = vmatpush1.msra.mxu0 %v404
        %2232 = vmatprep.subr.mxu0 %v407
        %2233 = vmatpush1.msra.mxu0 %v406
        %2234 = vmatprep.subr.mxu0 %v409
        %2235 = vmatpush1.msra.mxu0 %v408
        %2236 = vmatprep.subr.mxu0 %v411
        %2237 = vmatpush1.msra.mxu0 %v410
        %2238 = vmatprep.subr.mxu0 %v413
        %2239 = vmatpush1.msra.mxu0 %v412
        %2240 = vmatprep.subr.mxu0 %v415
        %2241 = vmatpush1.msra.mxu0 %v414
        %2242 = vmatprep.subr.mxu0 0.0
        %2243 = vmatpush1.msra.mxu0 0.0
        %2244 = vmatprep.subr.mxu0 0.0
        %2245 = vmatpush1.msra.mxu0 0.0
        %2246 = vmatprep.subr.mxu0 0.0
        %2247 = vmatpush1.msra.mxu0 0.0
        %2248 = vmatprep.subr.mxu0 0.0
        %2249 = vmatpush1.msra.mxu0 0.0
        %2250 = vmatprep.subr.mxu0 0.0
        %2251 = vmatpush1.msra.mxu0 0.0
        %2252 = vmatprep.subr.mxu0 0.0
        %2253 = vmatpush1.msra.mxu0 0.0
        %2254 = vmatprep.subr.mxu0 0.0
        %2255 = vmatpush1.msra.mxu0 0.0
        %2256 = vmatprep.subr.mxu0 0.0
        %2257 = vmatpush1.msra.mxu0 0.0
        %2258 = vmatprep.subr.mxu0 0.0
        %2259 = vmatpush1.msra.mxu0 0.0
        %2260 = vmatprep.subr.mxu0 0.0
        %2261 = vmatpush1.msra.mxu0 0.0
        %2262 = vmatprep.subr.mxu0 0.0
        %2263 = vmatpush1.msra.mxu0 0.0
        %2264 = vmatprep.subr.mxu0 0.0
        %2265 = vmatpush1.msra.mxu0 0.0
        %2266 = vmatprep.subr.mxu0 0.0
        %2267 = vmatpush1.msra.mxu0 0.0
        %2268 = vmatprep.subr.mxu0 0.0
        %2269 = vmatpush1.msra.mxu0 0.0
        %2270 = vmatprep.subr.mxu0 0.0
        %2271 = vmatpush1.msra.mxu0 0.0
        %2272 = vmatprep.subr.mxu0 0.0
        %2273 = vmatpush1.msra.mxu0 0.0
        %2274 = vmatprep.subr.mxu0 0.0
        %2275 = vmatpush1.msra.mxu0 0.0
        %2276 = vmatprep.subr.mxu0 0.0
        %2277 = vmatpush1.msra.mxu0 0.0
        %2278 = vmatprep.subr.mxu0 0.0
        %2279 = vmatpush1.msra.mxu0 0.0
        %2280 = vmatprep.subr.mxu0 0.0
        %2281 = vmatpush1.msra.mxu0 0.0
        %2282 = vmatprep.subr.mxu0 0.0
        %2283 = vmatpush1.msra.mxu0 0.0
        %2284 = vmatprep.subr.mxu0 0.0
        %2285 = vmatpush1.msra.mxu0 0.0
        %2286 = vmatprep.subr.mxu0 0.0
        %2287 = vmatpush1.msra.mxu0 0.0
        %2288 = vmatprep.subr.mxu0 0.0
        %2289 = vmatpush1.msra.mxu0 0.0
        %2290 = vmatprep.mubr.f32.mxu0 0.0
        %2291 = vmatmul.mubr.f32.gmra.mrb[0].mxu0 %v2224
        %v2292 = vpop.f32.mrb[0].mxu0
        %v2293 = vadd.f32 0.0, %v2292
        %v2294 = vpop.f32.mrb[0].mxu0
        %v2295 = vadd.f32 0.0, %v2294
        %2296 = vdwg.mxu0
        %v2299 = vcombine.low %v2293, %v2295
        %v2301 = vunpack.c.l.s4 1966171168
        %v2302 = vunpack.c.0.s8 %v2301
        %v2303 = vlaneseq
        %v2304 = vshrl.u32 %v2303, 7
        %v2305 = vsub.s32 %v2302, %v2304
        %v2306 = vrot.slane %v2299, %v2305
        %v2308 = vunpack.c.l.s4 1966171168
        %v2309 = vunpack.c.0.s8 %v2308
        %v2310 = vlaneseq
        %v2311 = vshrl.u32 %v2310, 7
        %v2312 = vsub.s32 %v2309, %v2311
        %v2313 = vrot.slane %v2306, %v2312
        %v2315 = vadd.f32 %v2222, %v2313
        %v2316 = vsub.f32 0.0, %v2315
        %v2317 = vmul.f32 %v2316, 1.442695
        %v2318 = vpow.pop %v2317
        %v2319 = vadd.f32 %v2318, 1.0
        %v2320 = vrcp.pop %v2319
        %v2321 = vmul.f32 1.0, %v2320
        %v2323 = vrot.slane %v2315, 1
        %v2325 = vtanh.pop %v2323
        %2326 = vrot.lane.b32.xlu0 %v2315, 64
        %v2327 = vpop.permute.xlu0 %2326
        %v2328 = vrot.slane %v2327, 1
        %v2330 = vsub.f32 0.0, %v2328
        %v2331 = vmul.f32 %v2330, 1.442695
        %v2332 = vpow.pop %v2331
        %v2333 = vadd.f32 %v2332, 1.0
        %v2334 = vrcp.pop %v2333
        %v2335 = vmul.f32 1.0, %v2334
        %v2336 = vmul.f32 %v2321, %v2213
        %v2337 = vmul.f32 %v2321, %v2325
        %2339 = vrot.lane.b32.xlu0 %v2337, 64
        %v2340 = vpop.permute.xlu0 %2339
        %v2342 = vadd.f32 %v2336, %v2340
        %v2343 = vtanh.pop %v2342
        %2345 = vrot.lane.b32.xlu0 %v2343, 64
        %v2346 = vpop.permute.xlu0 %2345
        %v2348 = vmul.f32 %v2335, %v2346
        %v2349 = vadd.f32 %v2220, %v2348
        %s2350 = scalar_lea.vmem [#allocation2], 23
        %v2351 = vld [vmem:[%s2350] ss:$8 sm:$0x3]
        %v2353 = vsel %vm416, %v2348, 0
        %2355 = vmatprep.subr.mxu0 %v401
        %2356 = vmatpush1.msra.mxu0 %v400
        %2357 = vmatprep.subr.mxu0 %v403
        %2358 = vmatpush1.msra.mxu0 %v402
        %2359 = vmatprep.subr.mxu0 %v405
        %2360 = vmatpush1.msra.mxu0 %v404
        %2361 = vmatprep.subr.mxu0 %v407
        %2362 = vmatpush1.msra.mxu0 %v406
        %2363 = vmatprep.subr.mxu0 %v409
        %2364 = vmatpush1.msra.mxu0 %v408
        %2365 = vmatprep.subr.mxu0 %v411
        %2366 = vmatpush1.msra.mxu0 %v410
        %2367 = vmatprep.subr.mxu0 %v413
        %2368 = vmatpush1.msra.mxu0 %v412
        %2369 = vmatprep.subr.mxu0 %v415
        %2370 = vmatpush1.msra.mxu0 %v414
        %2371 = vmatprep.subr.mxu0 0.0
        %2372 = vmatpush1.msra.mxu0 0.0
        %2373 = vmatprep.subr.mxu0 0.0
        %2374 = vmatpush1.msra.mxu0 0.0
        %2375 = vmatprep.subr.mxu0 0.0
        %2376 = vmatpush1.msra.mxu0 0.0
        %2377 = vmatprep.subr.mxu0 0.0
        %2378 = vmatpush1.msra.mxu0 0.0
        %2379 = vmatprep.subr.mxu0 0.0
        %2380 = vmatpush1.msra.mxu0 0.0
        %2381 = vmatprep.subr.mxu0 0.0
        %2382 = vmatpush1.msra.mxu0 0.0
        %2383 = vmatprep.subr.mxu0 0.0
        %2384 = vmatpush1.msra.mxu0 0.0
        %2385 = vmatprep.subr.mxu0 0.0
        %2386 = vmatpush1.msra.mxu0 0.0
        %2387 = vmatprep.subr.mxu0 0.0
        %2388 = vmatpush1.msra.mxu0 0.0
        %2389 = vmatprep.subr.mxu0 0.0
        %2390 = vmatpush1.msra.mxu0 0.0
        %2391 = vmatprep.subr.mxu0 0.0
        %2392 = vmatpush1.msra.mxu0 0.0
        %2393 = vmatprep.subr.mxu0 0.0
        %2394 = vmatpush1.msra.mxu0 0.0
        %2395 = vmatprep.subr.mxu0 0.0
        %2396 = vmatpush1.msra.mxu0 0.0
        %2397 = vmatprep.subr.mxu0 0.0
        %2398 = vmatpush1.msra.mxu0 0.0
        %2399 = vmatprep.subr.mxu0 0.0
        %2400 = vmatpush1.msra.mxu0 0.0
        %2401 = vmatprep.subr.mxu0 0.0
        %2402 = vmatpush1.msra.mxu0 0.0
        %2403 = vmatprep.subr.mxu0 0.0
        %2404 = vmatpush1.msra.mxu0 0.0
        %2405 = vmatprep.subr.mxu0 0.0
        %2406 = vmatpush1.msra.mxu0 0.0
        %2407 = vmatprep.subr.mxu0 0.0
        %2408 = vmatpush1.msra.mxu0 0.0
        %2409 = vmatprep.subr.mxu0 0.0
        %2410 = vmatpush1.msra.mxu0 0.0
        %2411 = vmatprep.subr.mxu0 0.0
        %2412 = vmatpush1.msra.mxu0 0.0
        %2413 = vmatprep.subr.mxu0 0.0
        %2414 = vmatpush1.msra.mxu0 0.0
        %2415 = vmatprep.subr.mxu0 0.0
        %2416 = vmatpush1.msra.mxu0 0.0
        %2417 = vmatprep.subr.mxu0 0.0
        %2418 = vmatpush1.msra.mxu0 0.0
        %2419 = vmatprep.mubr.f32.mxu0 0.0
        %2420 = vmatmul.mubr.f32.gmra.mrb[0].mxu0 %v2353
        %v2421 = vpop.f32.mrb[0].mxu0
        %v2422 = vadd.f32 0.0, %v2421
        %v2423 = vpop.f32.mrb[0].mxu0
        %v2424 = vadd.f32 0.0, %v2423
        %2425 = vdwg.mxu0
        %v2428 = vcombine.low %v2422, %v2424
        %v2430 = vunpack.c.l.s4 1966171168
        %v2431 = vunpack.c.0.s8 %v2430
        %v2432 = vlaneseq
        %v2433 = vshrl.u32 %v2432, 7
        %v2434 = vsub.s32 %v2431, %v2433
        %v2435 = vrot.slane %v2428, %v2434
        %v2437 = vunpack.c.l.s4 1966171168
        %v2438 = vunpack.c.0.s8 %v2437
        %v2439 = vlaneseq
        %v2440 = vshrl.u32 %v2439, 7
        %v2441 = vsub.s32 %v2438, %v2440
        %v2442 = vrot.slane %v2435, %v2441
        %v2444 = vadd.f32 %v2351, %v2442
        %v2445 = vsub.f32 0.0, %v2444
        %v2446 = vmul.f32 %v2445, 1.442695
        %v2447 = vpow.pop %v2446
        %v2448 = vadd.f32 %v2447, 1.0
        %v2449 = vrcp.pop %v2448
        %v2450 = vmul.f32 1.0, %v2449
        %v2452 = vrot.slane %v2444, 1
        %v2454 = vtanh.pop %v2452
        %2455 = vrot.lane.b32.xlu0 %v2444, 64
        %v2456 = vpop.permute.xlu0 %2455
        %v2457 = vrot.slane %v2456, 1
        %v2459 = vsub.f32 0.0, %v2457
        %v2460 = vmul.f32 %v2459, 1.442695
        %v2461 = vpow.pop %v2460
        %v2462 = vadd.f32 %v2461, 1.0
        %v2463 = vrcp.pop %v2462
        %v2464 = vmul.f32 1.0, %v2463
        %v2465 = vmul.f32 %v2450, %v2342
        %v2466 = vmul.f32 %v2450, %v2454
        %2468 = vrot.lane.b32.xlu0 %v2466, 64
        %v2469 = vpop.permute.xlu0 %2468
        %v2471 = vadd.f32 %v2465, %v2469
        %v2472 = vtanh.pop %v2471
        %2474 = vrot.lane.b32.xlu0 %v2472, 64
        %v2475 = vpop.permute.xlu0 %2474
        %v2477 = vmul.f32 %v2464, %v2475
        %v2478 = vadd.f32 %v2349, %v2477
        %v2479 = vmul.f32 %v2478, 0.0625
        %v2480 = vld [vmem:[%s4] sm:$0xff]
        %v2481 = vld [vmem:[%s4 + $0x8] sm:$0xff]
        %v2482 = vld [vmem:[%s4 + $0x10] sm:$0xff]
        %v2483 = vld [vmem:[%s4 + $0x18] sm:$0xff]
        %v2484 = vld [vmem:[%s4 + $0x20] sm:$0xff]
        %v2485 = vld [vmem:[%s4 + $0x28] sm:$0xff]
        %v2486 = vld [vmem:[%s4 + $0x30] sm:$0xff]
        %v2487 = vld [vmem:[%s4 + $0x38] sm:$0xff]
        %v2488 = vld [vmem:[%s5] sm:$0x1]
        %v2490 = vsel %vm416, %v2479, 0
        %2492 = vmatprep.subr.mxu0 0.0
        %2493 = vmatpush1.msra.mxu0 %v2480
        %2494 = vmatprep.subr.mxu0 0.0
        %2495 = vmatpush1.msra.mxu0 %v2481
        %2496 = vmatprep.subr.mxu0 0.0
        %2497 = vmatpush1.msra.mxu0 %v2482
        %2498 = vmatprep.subr.mxu0 0.0
        %2499 = vmatpush1.msra.mxu0 %v2483
        %2500 = vmatprep.subr.mxu0 0.0
        %2501 = vmatpush1.msra.mxu0 %v2484
        %2502 = vmatprep.subr.mxu0 0.0
        %2503 = vmatpush1.msra.mxu0 %v2485
        %2504 = vmatprep.subr.mxu0 0.0
        %2505 = vmatpush1.msra.mxu0 %v2486
        %2506 = vmatprep.subr.mxu0 0.0
        %2507 = vmatpush1.msra.mxu0 %v2487
        %2508 = vmatprep.subr.mxu0 0.0
        %2509 = vmatpush1.msra.mxu0 0.0
        %2510 = vmatprep.subr.mxu0 0.0
        %2511 = vmatpush1.msra.mxu0 0.0
        %2512 = vmatprep.subr.mxu0 0.0
        %2513 = vmatpush1.msra.mxu0 0.0
        %2514 = vmatprep.subr.mxu0 0.0
        %2515 = vmatpush1.msra.mxu0 0.0
        %2516 = vmatprep.subr.mxu0 0.0
        %2517 = vmatpush1.msra.mxu0 0.0
        %2518 = vmatprep.subr.mxu0 0.0
        %2519 = vmatpush1.msra.mxu0 0.0
        %2520 = vmatprep.subr.mxu0 0.0
        %2521 = vmatpush1.msra.mxu0 0.0
        %2522 = vmatprep.subr.mxu0 0.0
        %2523 = vmatpush1.msra.mxu0 0.0
        %2524 = vmatprep.subr.mxu0 0.0
        %2525 = vmatpush1.msra.mxu0 0.0
        %2526 = vmatprep.subr.mxu0 0.0
        %2527 = vmatpush1.msra.mxu0 0.0
        %2528 = vmatprep.subr.mxu0 0.0
        %2529 = vmatpush1.msra.mxu0 0.0
        %2530 = vmatprep.subr.mxu0 0.0
        %2531 = vmatpush1.msra.mxu0 0.0
        %2532 = vmatprep.subr.mxu0 0.0
        %2533 = vmatpush1.msra.mxu0 0.0
        %2534 = vmatprep.subr.mxu0 0.0
        %2535 = vmatpush1.msra.mxu0 0.0
        %2536 = vmatprep.subr.mxu0 0.0
        %2537 = vmatpush1.msra.mxu0 0.0
        %2538 = vmatprep.subr.mxu0 0.0
        %2539 = vmatpush1.msra.mxu0 0.0
        %2540 = vmatprep.subr.mxu0 0.0
        %2541 = vmatpush1.msra.mxu0 0.0
        %2542 = vmatprep.subr.mxu0 0.0
        %2543 = vmatpush1.msra.mxu0 0.0
        %2544 = vmatprep.subr.mxu0 0.0
        %2545 = vmatpush1.msra.mxu0 0.0
        %2546 = vmatprep.subr.mxu0 0.0
        %2547 = vmatpush1.msra.mxu0 0.0
        %2548 = vmatprep.subr.mxu0 0.0
        %2549 = vmatpush1.msra.mxu0 0.0
        %2550 = vmatprep.subr.mxu0 0.0
        %2551 = vmatpush1.msra.mxu0 0.0
        %2552 = vmatprep.subr.mxu0 0.0
        %2553 = vmatpush1.msra.mxu0 0.0
        %2554 = vmatprep.subr.mxu0 0.0
        %2555 = vmatpush1.msra.mxu0 0.0
        %2556 = vmatprep.mubr.f32.mxu0 0.0
        %2557 = vmatmul.mubr.f32.gmra.mrb[0].mxu0 %v2490
        %v2558 = vpop.f32.mrb[0].mxu0
        %v2559 = vadd.f32 %v2488, %v2558
        %v2560 = vpop.f32.mrb[0].mxu0
        %2561 = vdwg.mxu0
        %vm2562 = vcmask 8192
        %2563 = vst.msk [vmem:[%s283] sm:$0x1] %vm2562, %v2559
        %s2564 = sand.u32 %s163, 1
        %s2565 = scalar_lea.sflag [#allocation5], %s2564
        %s2566 = sand.u32 %s163, 1
        %s2567 = scalar_lea.vmem [#allocation8], %s2566
        // Predicated region
        $region53: #{tpu_custom_call.1} parent=43 // pred_check
          %p2568 = pneg %p173
        $region54: #{tpu_custom_call.1} parent=43 // pred_check_branch
          %2570 = sbr.rel (%p2568) target = $region56
        $region55: #{tpu_custom_call.1} parent=43 // pred_region
          %s2572 = ssub.s32 16, 16
          %2573 = vsyncadd %s2565, %s2572
          %s2574 = smul.addr %s24, 16
          %s2575 = scalar_lea.hbm %s6, %s2574
          %s2577 = sshll.u32 %s2567, 4
          %s2578 = int_to_ptr.vmem [resolvable:$true] %s2577
          %2580 = dma.vmem_to_hbm [thread:$0]  %s2578, 16, %s2575, %s2565
        $region56: #{tpu_custom_call.1} parent=43 // pred_fallthru
          _
      $region44: #{tpu_custom_call.1} parent=5 // pred_fallthru
        _
      %p2581 = scmp.le.s32.totalorder 2, %s19
      // Predicated region
      $region57: #{tpu_custom_call.1} parent=5 // pred_check
        %p2582 = pneg %p2581
      $region58: #{tpu_custom_call.1} parent=5 // pred_check_branch
        %2584 = sbr.rel (%p2582) target = $region60
      $region59: #{tpu_custom_call.1} parent=5 // pred_region
        %s2585 = ssub.s32 %s19, 2
        // Predicated region
        $region61: #{tpu_custom_call.1} parent=59 // pred_check
          %p2586 = pneg %p179
        $region62: #{tpu_custom_call.1} parent=59 // pred_check_branch
          %2588 = sbr.rel (%p2586) target = $region64
        $region63: #{tpu_custom_call.1} parent=59 // pred_region
          %s2589 = sand.u32 %s164, 1
          %s2590 = scalar_lea.sflag [#allocation5], %s2589
          %s2591 = sand.u32 %s164, 1
          %s2592 = scalar_lea.vmem [#allocation8], %s2591
          %2593 = dma.done %s2590, 16
        $region64: #{tpu_custom_call.1} parent=59 // pred_fallthru
          _
      $region60: #{tpu_custom_call.1} parent=5 // pred_fallthru
        _
    $region6: #{tpu_custom_call.1} parent=1 // loop_footer
      %s23 = sadd.s32 1, %s19
    $region7: #{tpu_custom_call.1} parent=1 // loop_footer_branch
      %18 = sbr.rel target = $region3
    $region8: #{tpu_custom_call.1} parent=1 // loop_exit
      _
    %2594 = vsyncpa [#allocation4], 1
    %s2595 = scalar_lea.sflag [#allocation4], 1
    %2596 = vsyncpa %s2595, 1
    %2597 = vsyncpa [#allocation7], 1
    %2598 = vsyncpa [#allocation5], 1
    %s2599 = scalar_lea.sflag [#allocation5], 1
    %2600 = vsyncpa %s2599, 1

</llo_original>
